<compile_context>
chip_gen: v7x
topology: tpu7x:2x2x1
jax: 0.10.0
libtpu: 0.0.40
codegen_flags: <defaults>
</compile_context>

<pallas_src>
import math

import jax
import jax.numpy as jnp
from jax import lax
from jax.experimental import pallas as pl
from jax.experimental.pallas import tpu as pltpu

# ---------------- config (small, synthetic) ----------------
BATCH = 2
SEQ = 8
D = 128                 # embedding_dim == hidden_dim (768 in the real module)
HEADS = 2
HD = D // HEADS         # head dim
FFN = 4 * D
LAYERS = 2
VOCAB = 32
NUM_CLASSES = 5
CPAD = 128              # logits lane-padded width (sliced to NUM_CLASSES outside)
LN_EPS = 1e-12
BS = BATCH * SEQ
H = D                   # LSTM hidden size

# ---------------- packed-slab layouts ----------------
# Small f32 slab [SMALL_ROWS, SMALL_W]: one parameter vector per row.
SMALL_W = 1024
ROW_EMB_G = 0
ROW_EMB_B = 1
ROW_LAYER0 = 2
R_BQKV, R_BO, R_G1, R_BE1, R_B1, R_B2, R_G2, R_BE2 = range(8)   # per-layer rows
ROW_LSTM_B = ROW_LAYER0 + 8 * LAYERS
ROW_LB = ROW_LSTM_B + 1
SMALL_ROWS = ((ROW_LB + 1 + 7) // 8) * 8

# bf16 weight slab with lane width 128: [wo_0, wo_1, w2_0, w2_1, lw_pad]
W128_WO = 0
W128_W2 = LAYERS * D
W128_LW = W128_W2 + LAYERS * FFN
W128_ROWS = W128_LW + 2 * H

# bf16 weight slab with lane width 1024: [wih_cat, whh_cat]
W1024_WIH = 0
W1024_WHH = D


def _ln(y, g, b):
    m = jnp.mean(y, axis=-1, keepdims=True)
    v = jnp.mean((y - m) ** 2, axis=-1, keepdims=True)
    return (y - m) * lax.rsqrt(v + LN_EPS) * g + b


# ---------------- the single fused kernel ----------------
def fused_forward_kernel(x0_ref, small_ref, w128_ref, w384_ref, w512_ref,
                         w1024_ref, out_ref, gates_ref, lstm_ref):
    f32, bf16 = jnp.float32, jnp.bfloat16

    def srow(r, width):
        return small_ref[r:r + 1, 0:width]                 # [1, width] f32

    # ---- BERT embedding LayerNorm (gather + positional add done in wrapper) ----
    x = _ln(x0_ref[...], srow(ROW_EMB_G, D), srow(ROW_EMB_B, D))

    scale = 1.0 / math.sqrt(HD)

    # ---- transformer encoder layers (static unroll, weights VMEM-resident) ----
    for l in range(LAYERS):
        sb = ROW_LAYER0 + 8 * l
        x16 = x.astype(bf16)

        # Fused QKV projection: one lane-dense [16,128]@[128,384] MXU op.
        qkv = jnp.dot(x16, w384_ref[l * D:(l + 1) * D, :],
                      preferred_element_type=f32) + srow(sb + R_BQKV, 3 * D)

        ctx_heads = []
        for h in range(HEADS):                              # static head loop
            q3 = qkv[:, h * HD:(h + 1) * HD].reshape(BATCH, SEQ, HD).astype(bf16)
            k3 = qkv[:, D + h * HD:D + (h + 1) * HD].reshape(BATCH, SEQ, HD).astype(bf16)
            v3 = qkv[:, 2 * D + h * HD:2 * D + (h + 1) * HD].reshape(BATCH, SEQ, HD).astype(bf16)
            s = jnp.einsum("bqd,bkd->bqk", q3, k3,
                           preferred_element_type=f32) * scale         # [B,S,S] f32
            s = s - jnp.max(s, axis=-1, keepdims=True)
            p = jnp.exp(s)
            p = p * pl.reciprocal(jnp.sum(p, axis=-1, keepdims=True), approx=True)
            ctx = jnp.einsum("bqk,bkd->bqd", p.astype(bf16), v3,
                             preferred_element_type=f32)               # [B,S,HD]
            ctx_heads.append(ctx.reshape(BS, HD))
        # Cheap lane concat of the head contexts, then ONE full-width W_O matmul.
        ctx_full = jnp.concatenate(ctx_heads, axis=-1).astype(bf16)    # [BS, D]
        attn = jnp.dot(ctx_full,
                       w128_ref[W128_WO + l * D:W128_WO + (l + 1) * D, :],
                       preferred_element_type=f32) + srow(sb + R_BO, D)
        x = _ln(x + attn, srow(sb + R_G1, D), srow(sb + R_BE1, D))

        x16 = x.astype(bf16)
        h1 = jnp.dot(x16, w512_ref[l * D:(l + 1) * D, :],
                     preferred_element_type=f32) + srow(sb + R_B1, FFN)
        # TODO(synk): HF BERT uses the exact erf GELU; tanh approximation kept.
        h1 = jax.nn.gelu(h1, approximate=True)
        h2 = jnp.dot(h1.astype(bf16),
                     w128_ref[W128_W2 + l * FFN:W128_W2 + (l + 1) * FFN, :],
                     preferred_element_type=f32) + srow(sb + R_B2, D)
        x = _ln(x + h2, srow(sb + R_G2, D), srow(sb + R_BE2, D))

    # ---- BiLSTM over axis 0 of [B, S, D] (nn.LSTM batch_first=False fidelity) ----
    # Input projections of BOTH directions hoisted out of the recurrence and
    # kept in a VMEM scratch (sliced per timestep; avoids vreg pressure).
    gates_ref[...] = (jnp.dot(x.astype(bf16),
                              w1024_ref[W1024_WIH:W1024_WIH + D, :],
                              preferred_element_type=f32)
                      + srow(ROW_LSTM_B, 8 * H))            # [BS, 8H]

    h_cat = jnp.zeros((2 * SEQ, H), f32)                    # rows 0:S fwd, S:2S bwd
    c_f = jnp.zeros((SEQ, H), f32)
    c_b = jnp.zeros((SEQ, H), f32)

    for t in range(BATCH):                    # T = BATCH (recurrence over axis 0)
        tb = BATCH - 1 - t
        # Fused fwd+bwd recurrent matmul: one [16,128]@[128,1024] per step; each
        # direction reads its row half and column half of the result.
        rec = jnp.dot(h_cat.astype(bf16),
                      w1024_ref[W1024_WHH:W1024_WHH + H, :],
                      preferred_element_type=f32)                      # [2S, 8H]
        g_f = gates_ref[t * SEQ:(t + 1) * SEQ, 0:4 * H] + rec[0:SEQ, 0:4 * H]
        g_b = (gates_ref[tb * SEQ:(tb + 1) * SEQ, 4 * H:8 * H]
               + rec[SEQ:2 * SEQ, 4 * H:8 * H])

        def cell(g, c_prev):                  # gate order i, f, g, o (PyTorch)
            i = jax.nn.sigmoid(g[:, 0:H])
            f = jax.nn.sigmoid(g[:, H:2 * H])
            gg = jnp.tanh(g[:, 2 * H:3 * H])
            o = jax.nn.sigmoid(g[:, 3 * H:4 * H])
            c_new = f * c_prev + i * gg
            return o * jnp.tanh(c_new), c_new

        h_f, c_f = cell(g_f, c_f)
        h_b, c_b = cell(g_b, c_b)
        # Write step outputs straight into the [BS, 2H] scratch (no concats).
        lstm_ref[t * SEQ:(t + 1) * SEQ, 0:H] = h_f
        lstm_ref[tb * SEQ:(tb + 1) * SEQ, H:2 * H] = h_b
        h_cat = jnp.concatenate([h_f, h_b], axis=0)

    # ---- final linear: lane-dense padded logits store ----
    logits = jnp.dot(lstm_ref[...].astype(bf16),
                     w128_ref[W128_LW:W128_LW + 2 * H, :],
                     preferred_element_type=f32) + srow(ROW_LB, CPAD)  # [BS, CPAD]
    out_ref[...] = logits


# ---------------- parameter init (synthetic, deterministic) ----------------
def init_params(key):
    keys = iter(jax.random.split(key, 64))

    def nrm(shape, scale=0.02):
        return (scale * jax.random.normal(next(keys), shape)).astype(jnp.float32)

    params = {
        "tok_emb": nrm((VOCAB, D)),
        "pos_emb": nrm((SEQ, D)),
        "emb_ln_g": jnp.ones((D,), jnp.float32),
        "emb_ln_b": jnp.zeros((D,), jnp.float32),
    }

    layers = []
    for _ in range(LAYERS):
        layers.append(dict(
            wq=nrm((D, D)), bq=nrm((D,)),
            wk=nrm((D, D)), bk=nrm((D,)),
            wv=nrm((D, D)), bv=nrm((D,)),
            wo=nrm((D, D)), bo=nrm((D,)),
            g1=jnp.ones((D,), jnp.float32), be1=jnp.zeros((D,), jnp.float32),
            w1=nrm((D, FFN)), b1=nrm((FFN,)),
            w2=nrm((FFN, D)), b2=nrm((D,)),
            g2=jnp.ones((D,), jnp.float32), be2=jnp.zeros((D,), jnp.float32),
        ))
    params["layers"] = layers

    bound = 1.0 / math.sqrt(H)

    def uni(shape):
        return jax.random.uniform(next(keys), shape, jnp.float32, -bound, bound)

    # PyTorch nn.LSTM params (gate order i, f, g, o), weight shapes [4H, in].
    params["lstm"] = dict(
        wih_f=uni((4 * H, D)), whh_f=uni((4 * H, H)),
        bih_f=uni((4 * H,)), bhh_f=uni((4 * H,)),
        wih_b=uni((4 * H, D)), whh_b=uni((4 * H, H)),
        bih_b=uni((4 * H,)), bhh_b=uni((4 * H,)),
    )

    lb = 1.0 / math.sqrt(2 * H)
    params["linear"] = dict(
        w=jax.random.uniform(next(keys), (NUM_CLASSES, 2 * H), jnp.float32, -lb, lb),
        b=jax.random.uniform(next(keys), (NUM_CLASSES,), jnp.float32, -lb, lb),
    )
    return params


# ---------------- host-side packing into a few lane-dense slabs ----------------
def pack_params(p):
    f32, bf16 = jnp.float32, jnp.bfloat16
    Ls = p["layers"]
    lstm = p["lstm"]

    # Width-384 slab: per-layer fused QKV weight [D, 3D] (cols = [q | k | v],
    # head h of each block at cols h*HD:(h+1)*HD).
    w384 = jnp.concatenate(
        [jnp.concatenate([lp["wq"], lp["wk"], lp["wv"]], axis=1) for lp in Ls],
        axis=0).astype(bf16)                                          # [L*D, 3D]

    # Width-512 slab: FFN first matmul weights.
    w512 = jnp.concatenate([lp["w1"] for lp in Ls], axis=0).astype(bf16)  # [L*D, FFN]

    # Width-128 slab: [wo_0, wo_1, w2_0, w2_1, lw_pad].
    lw_pad = jnp.zeros((2 * H, CPAD), f32).at[:, :NUM_CLASSES].set(p["linear"]["w"].T)
    w128 = jnp.concatenate(
        [lp["wo"] for lp in Ls] + [lp["w2"] for lp in Ls] + [lw_pad],
        axis=0).astype(bf16)                                          # [W128_ROWS, D]
    assert w128.shape[0] == W128_ROWS

    # Width-1024 slab: LSTM input and recurrent weights, fwd|bwd along columns.
    wih_cat = jnp.concatenate([lstm["wih_f"].T, lstm["wih_b"].T], axis=1)  # [D, 8H]
    whh_cat = jnp.concatenate([lstm["whh_f"].T, lstm["whh_b"].T], axis=1)  # [H, 8H]
    w1024 = jnp.concatenate([wih_cat, whh_cat], axis=0).astype(bf16)       # [2D, 8H]

    # Small f32 slab: all biases / LN params, one per row.
    rows = []

    def row(vec):
        v = jnp.asarray(vec, f32).reshape(-1)
        rows.append(jnp.zeros((SMALL_W,), f32).at[:v.shape[0]].set(v))

    row(p["emb_ln_g"])
    row(p["emb_ln_b"])
    for lp in Ls:
        row(jnp.concatenate([lp["bq"], lp["bk"], lp["bv"]]))          # [3D]
        row(lp["bo"]); row(lp["g1"]); row(lp["be1"])
        row(lp["b1"]); row(lp["b2"]); row(lp["g2"]); row(lp["be2"])
    row(jnp.concatenate([lstm["bih_f"] + lstm["bhh_f"],
                         lstm["bih_b"] + lstm["bhh_b"]]))             # [8H]
    row(jnp.zeros((CPAD,), f32).at[:NUM_CLASSES].set(p["linear"]["b"]))
    small = jnp.stack(rows)
    if small.shape[0] < SMALL_ROWS:
        small = jnp.concatenate(
            [small, jnp.zeros((SMALL_ROWS - small.shape[0], SMALL_W), f32)], axis=0)

    return dict(small=small, w128=w128, w384=w384, w512=w512, w1024=w1024,
                tok_emb=p["tok_emb"].astype(f32), pos_emb=p["pos_emb"].astype(f32))


def _flop_estimate():
    mm = lambda m, k, n: 2 * m * k * n
    per_layer = (mm(BS, D, 3 * D)
                 + HEADS * BATCH * (mm(SEQ, HD, SEQ) + mm(SEQ, SEQ, HD))
                 + mm(BS, D, D)
                 + mm(BS, D, FFN) + mm(BS, FFN, D))
    fl = LAYERS * per_layer
    fl += mm(BS, D, 8 * H)                       # LSTM input projections
    fl += BATCH * mm(2 * SEQ, H, 8 * H)          # fused recurrent matmuls
    fl += mm(BS, 2 * H, CPAD)                    # final linear (padded)
    trans = (LAYERS * (HEADS * BATCH * SEQ * SEQ + BS * FFN)
             + 2 * BATCH * SEQ * 5 * H)
    return int(fl), int(trans)


# ---------------- full forward: one pallas_call ----------------
def bert_ner_bilstm(tokens, kp):
    B, S = tokens.shape
    assert (B, S) == (BATCH, SEQ)
    # Embedding gather + positional add in plain JAX (trivially cheap; avoids a
    # padded int32 VMEM operand and in-kernel one-hot work).
    x0 = (jnp.take(kp["tok_emb"], tokens.reshape(BS), axis=0)
          + jnp.tile(kp["pos_emb"], (BATCH, 1))).astype(jnp.float32)   # [BS, D]

    args = [x0, kp["small"], kp["w128"], kp["w384"], kp["w512"], kp["w1024"]]

    flops, trans = _flop_estimate()
    bytes_accessed = int(sum(a.size * a.dtype.itemsize for a in args)
                         + BS * CPAD * 4)

    vmem = lambda: pl.BlockSpec(memory_space=pltpu.MemorySpace.VMEM)
    logits_pad = pl.pallas_call(
        fused_forward_kernel,
        out_shape=jax.ShapeDtypeStruct((BS, CPAD), jnp.float32),
        in_specs=[vmem() for _ in args],
        out_specs=vmem(),
        scratch_shapes=[pltpu.VMEM((BS, 8 * H), jnp.float32),   # LSTM input gates
                        pltpu.VMEM((BS, 2 * H), jnp.float32)],  # LSTM outputs
        cost_estimate=pl.CostEstimate(flops=flops, transcendentals=trans,
                                      bytes_accessed=bytes_accessed),
    )(*args)
    return logits_pad[:, :NUM_CLASSES].reshape(B, S, NUM_CLASSES)


if __name__ == "__main__":
    key = jax.random.PRNGKey(0)
    pkey, tkey = jax.random.split(key)
    params = init_params(pkey)
    kparams = pack_params(params)
    tokens = jax.random.randint(tkey, (BATCH, SEQ), 0, VOCAB, dtype=jnp.int32)

    fwd = jax.jit(bert_ner_bilstm)
    logits = jax.block_until_ready(fwd(tokens, kparams))
    assert logits.shape == (BATCH, SEQ, NUM_CLASSES), logits.shape
    assert bool(jnp.all(jnp.isfinite(logits)))
    print("KERNEL_OK")
</pallas_src>

<mosaic_0001>
module attributes {stable_mosaic.version = 11 : i64} {
  func.func @fused_forward_kernel(%arg0: memref<16x128xf32, #tpu.memory_space<vmem>>, %arg1: memref<24x1024xf32, #tpu.memory_space<vmem>>, %arg2: memref<1536x128xbf16, #tpu.memory_space<vmem>>, %arg3: memref<256x384xbf16, #tpu.memory_space<vmem>>, %arg4: memref<256x512xbf16, #tpu.memory_space<vmem>>, %arg5: memref<256x1024xbf16, #tpu.memory_space<vmem>>, %arg6: memref<16x128xf32, #tpu.memory_space<vmem>>, %arg7: memref<16x1024xf32, #tpu.memory_space<vmem>>, %arg8: memref<16x256xf32, #tpu.memory_space<vmem>>) attributes {dimension_semantics = [], scalar_prefetch = 0 : i64, scratch_operands = 2 : i64, tpu.core_type = #tpu.core_type<tc>} {
    %c0 = arith.constant 0 : index
    %c0_0 = arith.constant 0 : index
    %0 = vector.load %arg0[%c0, %c0_0] : memref<16x128xf32, #tpu.memory_space<vmem>>, vector<16x128xf32>
    %c0_1 = arith.constant 0 : index
    %c0_2 = arith.constant 0 : index
    %1 = vector.load %arg1[%c0_1, %c0_2] : memref<24x1024xf32, #tpu.memory_space<vmem>>, vector<1x128xf32>
    %c1 = arith.constant 1 : index
    %c0_3 = arith.constant 0 : index
    %2 = vector.load %arg1[%c1, %c0_3] : memref<24x1024xf32, #tpu.memory_space<vmem>>, vector<1x128xf32>
    %cst = arith.constant dense<0.000000e+00> : vector<16xf32>
    %3 = vector.multi_reduction <add>, %0, %cst [1] : vector<16x128xf32> to vector<16xf32>
    %4 = vector.shape_cast %3 : vector<16xf32> to vector<16x1xf32>
    %cst_4 = arith.constant 1.280000e+02 : f32
    %5 = vector.broadcast %cst_4 : f32 to vector<16x1xf32>
    %6 = arith.divf %4, %5 : vector<16x1xf32>
    %7 = vector.broadcast %6 : vector<16x1xf32> to vector<16x128xf32>
    %8 = arith.subf %0, %7 : vector<16x128xf32>
    %9 = arith.mulf %8, %8 : vector<16x128xf32>
    %cst_5 = arith.constant dense<0.000000e+00> : vector<16xf32>
    %10 = vector.multi_reduction <add>, %9, %cst_5 [1] : vector<16x128xf32> to vector<16xf32>
    %11 = vector.shape_cast %10 : vector<16xf32> to vector<16x1xf32>
    %cst_6 = arith.constant 1.280000e+02 : f32
    %12 = vector.broadcast %cst_6 : f32 to vector<16x1xf32>
    %13 = arith.divf %11, %12 : vector<16x1xf32>
    %14 = vector.broadcast %6 : vector<16x1xf32> to vector<16x128xf32>
    %15 = arith.subf %0, %14 : vector<16x128xf32>
    %cst_7 = arith.constant 9.99999996E-13 : f32
    %16 = vector.broadcast %cst_7 : f32 to vector<16x1xf32>
    %17 = arith.addf %13, %16 : vector<16x1xf32>
    %18 = math.rsqrt %17 : vector<16x1xf32>
    %19 = vector.broadcast %18 : vector<16x1xf32> to vector<16x128xf32>
    %20 = arith.mulf %15, %19 : vector<16x128xf32>
    %21 = vector.broadcast %1 : vector<1x128xf32> to vector<16x128xf32>
    %22 = arith.mulf %20, %21 : vector<16x128xf32>
    %23 = vector.broadcast %2 : vector<1x128xf32> to vector<16x128xf32>
    %24 = arith.addf %22, %23 : vector<16x128xf32>
    %25 = arith.truncf %24 : vector<16x128xf32> to vector<16x128xbf16>
    %c0_8 = arith.constant 0 : index
    %c0_9 = arith.constant 0 : index
    %26 = vector.load %arg3[%c0_8, %c0_9] : memref<256x384xbf16, #tpu.memory_space<vmem>>, vector<128x384xbf16>
    %cst_10 = arith.constant dense<0.000000e+00> : vector<16x384xf32>
    %27 = tpu.matmul %25, %26, %cst_10 {dimension_numbers = #tpu.dot_dimension_numbers<[1], [0], [0], [1], [0, 0, 1, 1], [], []>} : vector<16x128xbf16>, vector<128x384xbf16>, vector<16x384xf32> -> vector<16x384xf32>
    %c2 = arith.constant 2 : index
    %c0_11 = arith.constant 0 : index
    %28 = vector.load %arg1[%c2, %c0_11] : memref<24x1024xf32, #tpu.memory_space<vmem>>, vector<1x384xf32>
    %29 = vector.broadcast %28 : vector<1x384xf32> to vector<16x384xf32>
    %30 = arith.addf %27, %29 : vector<16x384xf32>
    %31 = vector.extract_strided_slice %30 {offsets = [0, 0], sizes = [16, 64], strides = [1, 1]} : vector<16x384xf32> to vector<16x64xf32>
    %32 = vector.shape_cast %31 : vector<16x64xf32> to vector<2x8x64xf32>
    %33 = arith.truncf %32 : vector<2x8x64xf32> to vector<2x8x64xbf16>
    %34 = vector.extract_strided_slice %30 {offsets = [0, 128], sizes = [16, 64], strides = [1, 1]} : vector<16x384xf32> to vector<16x64xf32>
    %35 = vector.shape_cast %34 : vector<16x64xf32> to vector<2x8x64xf32>
    %36 = arith.truncf %35 : vector<2x8x64xf32> to vector<2x8x64xbf16>
    %37 = vector.extract_strided_slice %30 {offsets = [0, 256], sizes = [16, 64], strides = [1, 1]} : vector<16x384xf32> to vector<16x64xf32>
    %38 = vector.shape_cast %37 : vector<16x64xf32> to vector<2x8x64xf32>
    %39 = arith.truncf %38 : vector<2x8x64xf32> to vector<2x8x64xbf16>
    "tpu.trace_start"() <{level = 10 : i32, message = "bqd,bkd->bqk"}> : () -> ()
    %cst_12 = arith.constant dense<0.000000e+00> : vector<2x8x8xf32>
    %40 = tpu.matmul %33, %36, %cst_12 {dimension_numbers = #tpu.dot_dimension_numbers<[2], [2], [1], [1], [0, 0, 0, 1, 1, 1], [0], [0]>} : vector<2x8x64xbf16>, vector<2x8x64xbf16>, vector<2x8x8xf32> -> vector<2x8x8xf32>
    "tpu.trace_stop"() : () -> ()
    %cst_13 = arith.constant 1.250000e-01 : f32
    %41 = vector.broadcast %cst_13 : f32 to vector<2x8x8xf32>
    %42 = arith.mulf %40, %41 : vector<2x8x8xf32>
    %cst_14 = arith.constant dense<0xFF800000> : vector<2x8xf32>
    %43 = vector.multi_reduction <maximumf>, %42, %cst_14 [2] : vector<2x8x8xf32> to vector<2x8xf32>
    %44 = vector.shape_cast %43 : vector<2x8xf32> to vector<2x8x1xf32>
    %45 = vector.broadcast %44 : vector<2x8x1xf32> to vector<2x8x8xf32>
    %46 = arith.subf %42, %45 : vector<2x8x8xf32>
    %47 = math.exp %46 : vector<2x8x8xf32>
    %cst_15 = arith.constant dense<0.000000e+00> : vector<2x8xf32>
    %48 = vector.multi_reduction <add>, %47, %cst_15 [2] : vector<2x8x8xf32> to vector<2x8xf32>
    %49 = vector.shape_cast %48 : vector<2x8xf32> to vector<2x8x1xf32>
    %50 = tpu.reciprocal %49 {approx = true} : vector<2x8x1xf32> -> vector<2x8x1xf32>
    %51 = vector.broadcast %50 : vector<2x8x1xf32> to vector<2x8x8xf32>
    %52 = arith.mulf %47, %51 : vector<2x8x8xf32>
    %53 = arith.truncf %52 : vector<2x8x8xf32> to vector<2x8x8xbf16>
    "tpu.trace_start"() <{level = 10 : i32, message = "bqk,bkd->bqd"}> : () -> ()
    %cst_16 = arith.constant dense<0.000000e+00> : vector<2x8x64xf32>
    %54 = tpu.matmul %53, %39, %cst_16 {dimension_numbers = #tpu.dot_dimension_numbers<[2], [1], [1], [2], [0, 0, 0, 1, 1, 2], [0], [0]>} : vector<2x8x8xbf16>, vector<2x8x64xbf16>, vector<2x8x64xf32> -> vector<2x8x64xf32>
    "tpu.trace_stop"() : () -> ()
    %55 = vector.shape_cast %54 : vector<2x8x64xf32> to vector<16x64xf32>
    %56 = vector.extract_strided_slice %30 {offsets = [0, 64], sizes = [16, 64], strides = [1, 1]} : vector<16x384xf32> to vector<16x64xf32>
    %57 = vector.shape_cast %56 : vector<16x64xf32> to vector<2x8x64xf32>
    %58 = arith.truncf %57 : vector<2x8x64xf32> to vector<2x8x64xbf16>
    %59 = vector.extract_strided_slice %30 {offsets = [0, 192], sizes = [16, 64], strides = [1, 1]} : vector<16x384xf32> to vector<16x64xf32>
    %60 = vector.shape_cast %59 : vector<16x64xf32> to vector<2x8x64xf32>
    %61 = arith.truncf %60 : vector<2x8x64xf32> to vector<2x8x64xbf16>
    %62 = vector.extract_strided_slice %30 {offsets = [0, 320], sizes = [16, 64], strides = [1, 1]} : vector<16x384xf32> to vector<16x64xf32>
    %63 = vector.shape_cast %62 : vector<16x64xf32> to vector<2x8x64xf32>
    %64 = arith.truncf %63 : vector<2x8x64xf32> to vector<2x8x64xbf16>
    "tpu.trace_start"() <{level = 10 : i32, message = "bqd,bkd->bqk"}> : () -> ()
    %cst_17 = arith.constant dense<0.000000e+00> : vector<2x8x8xf32>
    %65 = tpu.matmul %58, %61, %cst_17 {dimension_numbers = #tpu.dot_dimension_numbers<[2], [2], [1], [1], [0, 0, 0, 1, 1, 1], [0], [0]>} : vector<2x8x64xbf16>, vector<2x8x64xbf16>, vector<2x8x8xf32> -> vector<2x8x8xf32>
    "tpu.trace_stop"() : () -> ()
    %cst_18 = arith.constant 1.250000e-01 : f32
    %66 = vector.broadcast %cst_18 : f32 to vector<2x8x8xf32>
    %67 = arith.mulf %65, %66 : vector<2x8x8xf32>
    %cst_19 = arith.constant dense<0xFF800000> : vector<2x8xf32>
    %68 = vector.multi_reduction <maximumf>, %67, %cst_19 [2] : vector<2x8x8xf32> to vector<2x8xf32>
    %69 = vector.shape_cast %68 : vector<2x8xf32> to vector<2x8x1xf32>
    %70 = vector.broadcast %69 : vector<2x8x1xf32> to vector<2x8x8xf32>
    %71 = arith.subf %67, %70 : vector<2x8x8xf32>
    %72 = math.exp %71 : vector<2x8x8xf32>
    %cst_20 = arith.constant dense<0.000000e+00> : vector<2x8xf32>
    %73 = vector.multi_reduction <add>, %72, %cst_20 [2] : vector<2x8x8xf32> to vector<2x8xf32>
    %74 = vector.shape_cast %73 : vector<2x8xf32> to vector<2x8x1xf32>
    %75 = tpu.reciprocal %74 {approx = true} : vector<2x8x1xf32> -> vector<2x8x1xf32>
    %76 = vector.broadcast %75 : vector<2x8x1xf32> to vector<2x8x8xf32>
    %77 = arith.mulf %72, %76 : vector<2x8x8xf32>
    %78 = arith.truncf %77 : vector<2x8x8xf32> to vector<2x8x8xbf16>
    "tpu.trace_start"() <{level = 10 : i32, message = "bqk,bkd->bqd"}> : () -> ()
    %cst_21 = arith.constant dense<0.000000e+00> : vector<2x8x64xf32>
    %79 = tpu.matmul %78, %64, %cst_21 {dimension_numbers = #tpu.dot_dimension_numbers<[2], [1], [1], [2], [0, 0, 0, 1, 1, 2], [0], [0]>} : vector<2x8x8xbf16>, vector<2x8x64xbf16>, vector<2x8x64xf32> -> vector<2x8x64xf32>
    "tpu.trace_stop"() : () -> ()
    %80 = vector.shape_cast %79 : vector<2x8x64xf32> to vector<16x64xf32>
    %81 = tpu.concatenate %55, %80 in 1 : vector<16x64xf32>, vector<16x64xf32> -> vector<16x128xf32>
    %82 = arith.truncf %81 : vector<16x128xf32> to vector<16x128xbf16>
    %c0_22 = arith.constant 0 : index
    %c0_23 = arith.constant 0 : index
    %83 = vector.load %arg2[%c0_22, %c0_23] : memref<1536x128xbf16, #tpu.memory_space<vmem>>, vector<128x128xbf16>
    %cst_24 = arith.constant dense<0.000000e+00> : vector<16x128xf32>
    %84 = tpu.matmul %82, %83, %cst_24 {dimension_numbers = #tpu.dot_dimension_numbers<[1], [0], [0], [1], [0, 0, 1, 1], [], []>} : vector<16x128xbf16>, vector<128x128xbf16>, vector<16x128xf32> -> vector<16x128xf32>
    %c3 = arith.constant 3 : index
    %c0_25 = arith.constant 0 : index
    %85 = vector.load %arg1[%c3, %c0_25] : memref<24x1024xf32, #tpu.memory_space<vmem>>, vector<1x128xf32>
    %86 = vector.broadcast %85 : vector<1x128xf32> to vector<16x128xf32>
    %87 = arith.addf %84, %86 : vector<16x128xf32>
    %88 = arith.addf %24, %87 : vector<16x128xf32>
    %c4 = arith.constant 4 : index
    %c0_26 = arith.constant 0 : index
    %89 = vector.load %arg1[%c4, %c0_26] : memref<24x1024xf32, #tpu.memory_space<vmem>>, vector<1x128xf32>
    %c5 = arith.constant 5 : index
    %c0_27 = arith.constant 0 : index
    %90 = vector.load %arg1[%c5, %c0_27] : memref<24x1024xf32, #tpu.memory_space<vmem>>, vector<1x128xf32>
    %cst_28 = arith.constant dense<0.000000e+00> : vector<16xf32>
    %91 = vector.multi_reduction <add>, %88, %cst_28 [1] : vector<16x128xf32> to vector<16xf32>
    %92 = vector.shape_cast %91 : vector<16xf32> to vector<16x1xf32>
    %cst_29 = arith.constant 1.280000e+02 : f32
    %93 = vector.broadcast %cst_29 : f32 to vector<16x1xf32>
    %94 = arith.divf %92, %93 : vector<16x1xf32>
    %95 = vector.broadcast %94 : vector<16x1xf32> to vector<16x128xf32>
    %96 = arith.subf %88, %95 : vector<16x128xf32>
    %97 = arith.mulf %96, %96 : vector<16x128xf32>
    %cst_30 = arith.constant dense<0.000000e+00> : vector<16xf32>
    %98 = vector.multi_reduction <add>, %97, %cst_30 [1] : vector<16x128xf32> to vector<16xf32>
    %99 = vector.shape_cast %98 : vector<16xf32> to vector<16x1xf32>
    %cst_31 = arith.constant 1.280000e+02 : f32
    %100 = vector.broadcast %cst_31 : f32 to vector<16x1xf32>
    %101 = arith.divf %99, %100 : vector<16x1xf32>
    %102 = vector.broadcast %94 : vector<16x1xf32> to vector<16x128xf32>
    %103 = arith.subf %88, %102 : vector<16x128xf32>
    %cst_32 = arith.constant 9.99999996E-13 : f32
    %104 = vector.broadcast %cst_32 : f32 to vector<16x1xf32>
    %105 = arith.addf %101, %104 : vector<16x1xf32>
    %106 = math.rsqrt %105 : vector<16x1xf32>
    %107 = vector.broadcast %106 : vector<16x1xf32> to vector<16x128xf32>
    %108 = arith.mulf %103, %107 : vector<16x128xf32>
    %109 = vector.broadcast %89 : vector<1x128xf32> to vector<16x128xf32>
    %110 = arith.mulf %108, %109 : vector<16x128xf32>
    %111 = vector.broadcast %90 : vector<1x128xf32> to vector<16x128xf32>
    %112 = arith.addf %110, %111 : vector<16x128xf32>
    %113 = arith.truncf %112 : vector<16x128xf32> to vector<16x128xbf16>
    %c0_33 = arith.constant 0 : index
    %c0_34 = arith.constant 0 : index
    %114 = vector.load %arg4[%c0_33, %c0_34] : memref<256x512xbf16, #tpu.memory_space<vmem>>, vector<128x512xbf16>
    %cst_35 = arith.constant dense<0.000000e+00> : vector<16x512xf32>
    %115 = tpu.matmul %113, %114, %cst_35 {dimension_numbers = #tpu.dot_dimension_numbers<[1], [0], [0], [1], [0, 0, 1, 1], [], []>} : vector<16x128xbf16>, vector<128x512xbf16>, vector<16x512xf32> -> vector<16x512xf32>
    %c6 = arith.constant 6 : index
    %c0_36 = arith.constant 0 : index
    %116 = vector.load %arg1[%c6, %c0_36] : memref<24x1024xf32, #tpu.memory_space<vmem>>, vector<1x512xf32>
    %117 = vector.broadcast %116 : vector<1x512xf32> to vector<16x512xf32>
    %118 = arith.addf %115, %117 : vector<16x512xf32>
    %119 = arith.mulf %118, %118 : vector<16x512xf32>
    %120 = arith.mulf %118, %119 : vector<16x512xf32>
    %cst_37 = arith.constant 4.471500e-02 : f32
    %121 = vector.broadcast %cst_37 : f32 to vector<16x512xf32>
    %122 = arith.mulf %121, %120 : vector<16x512xf32>
    %123 = arith.addf %118, %122 : vector<16x512xf32>
    %cst_38 = arith.constant 0.797884583 : f32
    %124 = vector.broadcast %cst_38 : f32 to vector<16x512xf32>
    %125 = arith.mulf %124, %123 : vector<16x512xf32>
    %126 = math.tanh %125 : vector<16x512xf32>
    %cst_39 = arith.constant 1.000000e+00 : f32
    %127 = vector.broadcast %cst_39 : f32 to vector<16x512xf32>
    %128 = arith.addf %127, %126 : vector<16x512xf32>
    %cst_40 = arith.constant 5.000000e-01 : f32
    %129 = vector.broadcast %cst_40 : f32 to vector<16x512xf32>
    %130 = arith.mulf %129, %128 : vector<16x512xf32>
    %131 = arith.mulf %118, %130 : vector<16x512xf32>
    %132 = arith.truncf %131 : vector<16x512xf32> to vector<16x512xbf16>
    %c256 = arith.constant 256 : index
    %c0_41 = arith.constant 0 : index
    %133 = vector.load %arg2[%c256, %c0_41] : memref<1536x128xbf16, #tpu.memory_space<vmem>>, vector<512x128xbf16>
    %cst_42 = arith.constant dense<0.000000e+00> : vector<16x128xf32>
    %134 = tpu.matmul %132, %133, %cst_42 {dimension_numbers = #tpu.dot_dimension_numbers<[1], [0], [0], [1], [0, 0, 1, 1], [], []>} : vector<16x512xbf16>, vector<512x128xbf16>, vector<16x128xf32> -> vector<16x128xf32>
    %c7 = arith.constant 7 : index
    %c0_43 = arith.constant 0 : index
    %135 = vector.load %arg1[%c7, %c0_43] : memref<24x1024xf32, #tpu.memory_space<vmem>>, vector<1x128xf32>
    %136 = vector.broadcast %135 : vector<1x128xf32> to vector<16x128xf32>
    %137 = arith.addf %134, %136 : vector<16x128xf32>
    %138 = arith.addf %112, %137 : vector<16x128xf32>
    %c8 = arith.constant 8 : index
    %c0_44 = arith.constant 0 : index
    %139 = vector.load %arg1[%c8, %c0_44] : memref<24x1024xf32, #tpu.memory_space<vmem>>, vector<1x128xf32>
    %c9 = arith.constant 9 : index
    %c0_45 = arith.constant 0 : index
    %140 = vector.load %arg1[%c9, %c0_45] : memref<24x1024xf32, #tpu.memory_space<vmem>>, vector<1x128xf32>
    %cst_46 = arith.constant dense<0.000000e+00> : vector<16xf32>
    %141 = vector.multi_reduction <add>, %138, %cst_46 [1] : vector<16x128xf32> to vector<16xf32>
    %142 = vector.shape_cast %141 : vector<16xf32> to vector<16x1xf32>
    %cst_47 = arith.constant 1.280000e+02 : f32
    %143 = vector.broadcast %cst_47 : f32 to vector<16x1xf32>
    %144 = arith.divf %142, %143 : vector<16x1xf32>
    %145 = vector.broadcast %144 : vector<16x1xf32> to vector<16x128xf32>
    %146 = arith.subf %138, %145 : vector<16x128xf32>
    %147 = arith.mulf %146, %146 : vector<16x128xf32>
    %cst_48 = arith.constant dense<0.000000e+00> : vector<16xf32>
    %148 = vector.multi_reduction <add>, %147, %cst_48 [1] : vector<16x128xf32> to vector<16xf32>
    %149 = vector.shape_cast %148 : vector<16xf32> to vector<16x1xf32>
    %cst_49 = arith.constant 1.280000e+02 : f32
    %150 = vector.broadcast %cst_49 : f32 to vector<16x1xf32>
    %151 = arith.divf %149, %150 : vector<16x1xf32>
    %152 = vector.broadcast %144 : vector<16x1xf32> to vector<16x128xf32>
    %153 = arith.subf %138, %152 : vector<16x128xf32>
    %cst_50 = arith.constant 9.99999996E-13 : f32
    %154 = vector.broadcast %cst_50 : f32 to vector<16x1xf32>
    %155 = arith.addf %151, %154 : vector<16x1xf32>
    %156 = math.rsqrt %155 : vector<16x1xf32>
    %157 = vector.broadcast %156 : vector<16x1xf32> to vector<16x128xf32>
    %158 = arith.mulf %153, %157 : vector<16x128xf32>
    %159 = vector.broadcast %139 : vector<1x128xf32> to vector<16x128xf32>
    %160 = arith.mulf %158, %159 : vector<16x128xf32>
    %161 = vector.broadcast %140 : vector<1x128xf32> to vector<16x128xf32>
    %162 = arith.addf %160, %161 : vector<16x128xf32>
    %163 = arith.truncf %162 : vector<16x128xf32> to vector<16x128xbf16>
    %c128 = arith.constant 128 : index
    %c0_51 = arith.constant 0 : index
    %164 = vector.load %arg3[%c128, %c0_51] : memref<256x384xbf16, #tpu.memory_space<vmem>>, vector<128x384xbf16>
    %cst_52 = arith.constant dense<0.000000e+00> : vector<16x384xf32>
    %165 = tpu.matmul %163, %164, %cst_52 {dimension_numbers = #tpu.dot_dimension_numbers<[1], [0], [0], [1], [0, 0, 1, 1], [], []>} : vector<16x128xbf16>, vector<128x384xbf16>, vector<16x384xf32> -> vector<16x384xf32>
    %c10 = arith.constant 10 : index
    %c0_53 = arith.constant 0 : index
    %166 = vector.load %arg1[%c10, %c0_53] : memref<24x1024xf32, #tpu.memory_space<vmem>>, vector<1x384xf32>
    %167 = vector.broadcast %166 : vector<1x384xf32> to vector<16x384xf32>
    %168 = arith.addf %165, %167 : vector<16x384xf32>
    %169 = vector.extract_strided_slice %168 {offsets = [0, 0], sizes = [16, 64], strides = [1, 1]} : vector<16x384xf32> to vector<16x64xf32>
    %170 = vector.shape_cast %169 : vector<16x64xf32> to vector<2x8x64xf32>
    %171 = arith.truncf %170 : vector<2x8x64xf32> to vector<2x8x64xbf16>
    %172 = vector.extract_strided_slice %168 {offsets = [0, 128], sizes = [16, 64], strides = [1, 1]} : vector<16x384xf32> to vector<16x64xf32>
    %173 = vector.shape_cast %172 : vector<16x64xf32> to vector<2x8x64xf32>
    %174 = arith.truncf %173 : vector<2x8x64xf32> to vector<2x8x64xbf16>
    %175 = vector.extract_strided_slice %168 {offsets = [0, 256], sizes = [16, 64], strides = [1, 1]} : vector<16x384xf32> to vector<16x64xf32>
    %176 = vector.shape_cast %175 : vector<16x64xf32> to vector<2x8x64xf32>
    %177 = arith.truncf %176 : vector<2x8x64xf32> to vector<2x8x64xbf16>
    "tpu.trace_start"() <{level = 10 : i32, message = "bqd,bkd->bqk"}> : () -> ()
    %cst_54 = arith.constant dense<0.000000e+00> : vector<2x8x8xf32>
    %178 = tpu.matmul %171, %174, %cst_54 {dimension_numbers = #tpu.dot_dimension_numbers<[2], [2], [1], [1], [0, 0, 0, 1, 1, 1], [0], [0]>} : vector<2x8x64xbf16>, vector<2x8x64xbf16>, vector<2x8x8xf32> -> vector<2x8x8xf32>
    "tpu.trace_stop"() : () -> ()
    %cst_55 = arith.constant 1.250000e-01 : f32
    %179 = vector.broadcast %cst_55 : f32 to vector<2x8x8xf32>
    %180 = arith.mulf %178, %179 : vector<2x8x8xf32>
    %cst_56 = arith.constant dense<0xFF800000> : vector<2x8xf32>
    %181 = vector.multi_reduction <maximumf>, %180, %cst_56 [2] : vector<2x8x8xf32> to vector<2x8xf32>
    %182 = vector.shape_cast %181 : vector<2x8xf32> to vector<2x8x1xf32>
    %183 = vector.broadcast %182 : vector<2x8x1xf32> to vector<2x8x8xf32>
    %184 = arith.subf %180, %183 : vector<2x8x8xf32>
    %185 = math.exp %184 : vector<2x8x8xf32>
    %cst_57 = arith.constant dense<0.000000e+00> : vector<2x8xf32>
    %186 = vector.multi_reduction <add>, %185, %cst_57 [2] : vector<2x8x8xf32> to vector<2x8xf32>
    %187 = vector.shape_cast %186 : vector<2x8xf32> to vector<2x8x1xf32>
    %188 = tpu.reciprocal %187 {approx = true} : vector<2x8x1xf32> -> vector<2x8x1xf32>
    %189 = vector.broadcast %188 : vector<2x8x1xf32> to vector<2x8x8xf32>
    %190 = arith.mulf %185, %189 : vector<2x8x8xf32>
    %191 = arith.truncf %190 : vector<2x8x8xf32> to vector<2x8x8xbf16>
    "tpu.trace_start"() <{level = 10 : i32, message = "bqk,bkd->bqd"}> : () -> ()
    %cst_58 = arith.constant dense<0.000000e+00> : vector<2x8x64xf32>
    %192 = tpu.matmul %191, %177, %cst_58 {dimension_numbers = #tpu.dot_dimension_numbers<[2], [1], [1], [2], [0, 0, 0, 1, 1, 2], [0], [0]>} : vector<2x8x8xbf16>, vector<2x8x64xbf16>, vector<2x8x64xf32> -> vector<2x8x64xf32>
    "tpu.trace_stop"() : () -> ()
    %193 = vector.shape_cast %192 : vector<2x8x64xf32> to vector<16x64xf32>
    %194 = vector.extract_strided_slice %168 {offsets = [0, 64], sizes = [16, 64], strides = [1, 1]} : vector<16x384xf32> to vector<16x64xf32>
    %195 = vector.shape_cast %194 : vector<16x64xf32> to vector<2x8x64xf32>
    %196 = arith.truncf %195 : vector<2x8x64xf32> to vector<2x8x64xbf16>
    %197 = vector.extract_strided_slice %168 {offsets = [0, 192], sizes = [16, 64], strides = [1, 1]} : vector<16x384xf32> to vector<16x64xf32>
    %198 = vector.shape_cast %197 : vector<16x64xf32> to vector<2x8x64xf32>
    %199 = arith.truncf %198 : vector<2x8x64xf32> to vector<2x8x64xbf16>
    %200 = vector.extract_strided_slice %168 {offsets = [0, 320], sizes = [16, 64], strides = [1, 1]} : vector<16x384xf32> to vector<16x64xf32>
    %201 = vector.shape_cast %200 : vector<16x64xf32> to vector<2x8x64xf32>
    %202 = arith.truncf %201 : vector<2x8x64xf32> to vector<2x8x64xbf16>
    "tpu.trace_start"() <{level = 10 : i32, message = "bqd,bkd->bqk"}> : () -> ()
    %cst_59 = arith.constant dense<0.000000e+00> : vector<2x8x8xf32>
    %203 = tpu.matmul %196, %199, %cst_59 {dimension_numbers = #tpu.dot_dimension_numbers<[2], [2], [1], [1], [0, 0, 0, 1, 1, 1], [0], [0]>} : vector<2x8x64xbf16>, vector<2x8x64xbf16>, vector<2x8x8xf32> -> vector<2x8x8xf32>
    "tpu.trace_stop"() : () -> ()
    %cst_60 = arith.constant 1.250000e-01 : f32
    %204 = vector.broadcast %cst_60 : f32 to vector<2x8x8xf32>
    %205 = arith.mulf %203, %204 : vector<2x8x8xf32>
    %cst_61 = arith.constant dense<0xFF800000> : vector<2x8xf32>
    %206 = vector.multi_reduction <maximumf>, %205, %cst_61 [2] : vector<2x8x8xf32> to vector<2x8xf32>
    %207 = vector.shape_cast %206 : vector<2x8xf32> to vector<2x8x1xf32>
    %208 = vector.broadcast %207 : vector<2x8x1xf32> to vector<2x8x8xf32>
    %209 = arith.subf %205, %208 : vector<2x8x8xf32>
    %210 = math.exp %209 : vector<2x8x8xf32>
    %cst_62 = arith.constant dense<0.000000e+00> : vector<2x8xf32>
    %211 = vector.multi_reduction <add>, %210, %cst_62 [2] : vector<2x8x8xf32> to vector<2x8xf32>
    %212 = vector.shape_cast %211 : vector<2x8xf32> to vector<2x8x1xf32>
    %213 = tpu.reciprocal %212 {approx = true} : vector<2x8x1xf32> -> vector<2x8x1xf32>
    %214 = vector.broadcast %213 : vector<2x8x1xf32> to vector<2x8x8xf32>
    %215 = arith.mulf %210, %214 : vector<2x8x8xf32>
    %216 = arith.truncf %215 : vector<2x8x8xf32> to vector<2x8x8xbf16>
    "tpu.trace_start"() <{level = 10 : i32, message = "bqk,bkd->bqd"}> : () -> ()
    %cst_63 = arith.constant dense<0.000000e+00> : vector<2x8x64xf32>
    %217 = tpu.matmul %216, %202, %cst_63 {dimension_numbers = #tpu.dot_dimension_numbers<[2], [1], [1], [2], [0, 0, 0, 1, 1, 2], [0], [0]>} : vector<2x8x8xbf16>, vector<2x8x64xbf16>, vector<2x8x64xf32> -> vector<2x8x64xf32>
    "tpu.trace_stop"() : () -> ()
    %218 = vector.shape_cast %217 : vector<2x8x64xf32> to vector<16x64xf32>
    %219 = tpu.concatenate %193, %218 in 1 : vector<16x64xf32>, vector<16x64xf32> -> vector<16x128xf32>
    %220 = arith.truncf %219 : vector<16x128xf32> to vector<16x128xbf16>
    %c128_64 = arith.constant 128 : index
    %c0_65 = arith.constant 0 : index
    %221 = vector.load %arg2[%c128_64, %c0_65] : memref<1536x128xbf16, #tpu.memory_space<vmem>>, vector<128x128xbf16>
    %cst_66 = arith.constant dense<0.000000e+00> : vector<16x128xf32>
    %222 = tpu.matmul %220, %221, %cst_66 {dimension_numbers = #tpu.dot_dimension_numbers<[1], [0], [0], [1], [0, 0, 1, 1], [], []>} : vector<16x128xbf16>, vector<128x128xbf16>, vector<16x128xf32> -> vector<16x128xf32>
    %c11 = arith.constant 11 : index
    %c0_67 = arith.constant 0 : index
    %223 = vector.load %arg1[%c11, %c0_67] : memref<24x1024xf32, #tpu.memory_space<vmem>>, vector<1x128xf32>
    %224 = vector.broadcast %223 : vector<1x128xf32> to vector<16x128xf32>
    %225 = arith.addf %222, %224 : vector<16x128xf32>
    %226 = arith.addf %162, %225 : vector<16x128xf32>
    %c12 = arith.constant 12 : index
    %c0_68 = arith.constant 0 : index
    %227 = vector.load %arg1[%c12, %c0_68] : memref<24x1024xf32, #tpu.memory_space<vmem>>, vector<1x128xf32>
    %c13 = arith.constant 13 : index
    %c0_69 = arith.constant 0 : index
    %228 = vector.load %arg1[%c13, %c0_69] : memref<24x1024xf32, #tpu.memory_space<vmem>>, vector<1x128xf32>
    %cst_70 = arith.constant dense<0.000000e+00> : vector<16xf32>
    %229 = vector.multi_reduction <add>, %226, %cst_70 [1] : vector<16x128xf32> to vector<16xf32>
    %230 = vector.shape_cast %229 : vector<16xf32> to vector<16x1xf32>
    %cst_71 = arith.constant 1.280000e+02 : f32
    %231 = vector.broadcast %cst_71 : f32 to vector<16x1xf32>
    %232 = arith.divf %230, %231 : vector<16x1xf32>
    %233 = vector.broadcast %232 : vector<16x1xf32> to vector<16x128xf32>
    %234 = arith.subf %226, %233 : vector<16x128xf32>
    %235 = arith.mulf %234, %234 : vector<16x128xf32>
    %cst_72 = arith.constant dense<0.000000e+00> : vector<16xf32>
    %236 = vector.multi_reduction <add>, %235, %cst_72 [1] : vector<16x128xf32> to vector<16xf32>
    %237 = vector.shape_cast %236 : vector<16xf32> to vector<16x1xf32>
    %cst_73 = arith.constant 1.280000e+02 : f32
    %238 = vector.broadcast %cst_73 : f32 to vector<16x1xf32>
    %239 = arith.divf %237, %238 : vector<16x1xf32>
    %240 = vector.broadcast %232 : vector<16x1xf32> to vector<16x128xf32>
    %241 = arith.subf %226, %240 : vector<16x128xf32>
    %cst_74 = arith.constant 9.99999996E-13 : f32
    %242 = vector.broadcast %cst_74 : f32 to vector<16x1xf32>
    %243 = arith.addf %239, %242 : vector<16x1xf32>
    %244 = math.rsqrt %243 : vector<16x1xf32>
    %245 = vector.broadcast %244 : vector<16x1xf32> to vector<16x128xf32>
    %246 = arith.mulf %241, %245 : vector<16x128xf32>
    %247 = vector.broadcast %227 : vector<1x128xf32> to vector<16x128xf32>
    %248 = arith.mulf %246, %247 : vector<16x128xf32>
    %249 = vector.broadcast %228 : vector<1x128xf32> to vector<16x128xf32>
    %250 = arith.addf %248, %249 : vector<16x128xf32>
    %251 = arith.truncf %250 : vector<16x128xf32> to vector<16x128xbf16>
    %c128_75 = arith.constant 128 : index
    %c0_76 = arith.constant 0 : index
    %252 = vector.load %arg4[%c128_75, %c0_76] : memref<256x512xbf16, #tpu.memory_space<vmem>>, vector<128x512xbf16>
    %cst_77 = arith.constant dense<0.000000e+00> : vector<16x512xf32>
    %253 = tpu.matmul %251, %252, %cst_77 {dimension_numbers = #tpu.dot_dimension_numbers<[1], [0], [0], [1], [0, 0, 1, 1], [], []>} : vector<16x128xbf16>, vector<128x512xbf16>, vector<16x512xf32> -> vector<16x512xf32>
    %c14 = arith.constant 14 : index
    %c0_78 = arith.constant 0 : index
    %254 = vector.load %arg1[%c14, %c0_78] : memref<24x1024xf32, #tpu.memory_space<vmem>>, vector<1x512xf32>
    %255 = vector.broadcast %254 : vector<1x512xf32> to vector<16x512xf32>
    %256 = arith.addf %253, %255 : vector<16x512xf32>
    %257 = arith.mulf %256, %256 : vector<16x512xf32>
    %258 = arith.mulf %256, %257 : vector<16x512xf32>
    %cst_79 = arith.constant 4.471500e-02 : f32
    %259 = vector.broadcast %cst_79 : f32 to vector<16x512xf32>
    %260 = arith.mulf %259, %258 : vector<16x512xf32>
    %261 = arith.addf %256, %260 : vector<16x512xf32>
    %cst_80 = arith.constant 0.797884583 : f32
    %262 = vector.broadcast %cst_80 : f32 to vector<16x512xf32>
    %263 = arith.mulf %262, %261 : vector<16x512xf32>
    %264 = math.tanh %263 : vector<16x512xf32>
    %cst_81 = arith.constant 1.000000e+00 : f32
    %265 = vector.broadcast %cst_81 : f32 to vector<16x512xf32>
    %266 = arith.addf %265, %264 : vector<16x512xf32>
    %cst_82 = arith.constant 5.000000e-01 : f32
    %267 = vector.broadcast %cst_82 : f32 to vector<16x512xf32>
    %268 = arith.mulf %267, %266 : vector<16x512xf32>
    %269 = arith.mulf %256, %268 : vector<16x512xf32>
    %270 = arith.truncf %269 : vector<16x512xf32> to vector<16x512xbf16>
    %c768 = arith.constant 768 : index
    %c0_83 = arith.constant 0 : index
    %271 = vector.load %arg2[%c768, %c0_83] : memref<1536x128xbf16, #tpu.memory_space<vmem>>, vector<512x128xbf16>
    %cst_84 = arith.constant dense<0.000000e+00> : vector<16x128xf32>
    %272 = tpu.matmul %270, %271, %cst_84 {dimension_numbers = #tpu.dot_dimension_numbers<[1], [0], [0], [1], [0, 0, 1, 1], [], []>} : vector<16x512xbf16>, vector<512x128xbf16>, vector<16x128xf32> -> vector<16x128xf32>
    %c15 = arith.constant 15 : index
    %c0_85 = arith.constant 0 : index
    %273 = vector.load %arg1[%c15, %c0_85] : memref<24x1024xf32, #tpu.memory_space<vmem>>, vector<1x128xf32>
    %274 = vector.broadcast %273 : vector<1x128xf32> to vector<16x128xf32>
    %275 = arith.addf %272, %274 : vector<16x128xf32>
    %276 = arith.addf %250, %275 : vector<16x128xf32>
    %c16 = arith.constant 16 : index
    %c0_86 = arith.constant 0 : index
    %277 = vector.load %arg1[%c16, %c0_86] : memref<24x1024xf32, #tpu.memory_space<vmem>>, vector<1x128xf32>
    %c17 = arith.constant 17 : index
    %c0_87 = arith.constant 0 : index
    %278 = vector.load %arg1[%c17, %c0_87] : memref<24x1024xf32, #tpu.memory_space<vmem>>, vector<1x128xf32>
    %cst_88 = arith.constant dense<0.000000e+00> : vector<16xf32>
    %279 = vector.multi_reduction <add>, %276, %cst_88 [1] : vector<16x128xf32> to vector<16xf32>
    %280 = vector.shape_cast %279 : vector<16xf32> to vector<16x1xf32>
    %cst_89 = arith.constant 1.280000e+02 : f32
    %281 = vector.broadcast %cst_89 : f32 to vector<16x1xf32>
    %282 = arith.divf %280, %281 : vector<16x1xf32>
    %283 = vector.broadcast %282 : vector<16x1xf32> to vector<16x128xf32>
    %284 = arith.subf %276, %283 : vector<16x128xf32>
    %285 = arith.mulf %284, %284 : vector<16x128xf32>
    %cst_90 = arith.constant dense<0.000000e+00> : vector<16xf32>
    %286 = vector.multi_reduction <add>, %285, %cst_90 [1] : vector<16x128xf32> to vector<16xf32>
    %287 = vector.shape_cast %286 : vector<16xf32> to vector<16x1xf32>
    %cst_91 = arith.constant 1.280000e+02 : f32
    %288 = vector.broadcast %cst_91 : f32 to vector<16x1xf32>
    %289 = arith.divf %287, %288 : vector<16x1xf32>
    %290 = vector.broadcast %282 : vector<16x1xf32> to vector<16x128xf32>
    %291 = arith.subf %276, %290 : vector<16x128xf32>
    %cst_92 = arith.constant 9.99999996E-13 : f32
    %292 = vector.broadcast %cst_92 : f32 to vector<16x1xf32>
    %293 = arith.addf %289, %292 : vector<16x1xf32>
    %294 = math.rsqrt %293 : vector<16x1xf32>
    %295 = vector.broadcast %294 : vector<16x1xf32> to vector<16x128xf32>
    %296 = arith.mulf %291, %295 : vector<16x128xf32>
    %297 = vector.broadcast %277 : vector<1x128xf32> to vector<16x128xf32>
    %298 = arith.mulf %296, %297 : vector<16x128xf32>
    %299 = vector.broadcast %278 : vector<1x128xf32> to vector<16x128xf32>
    %300 = arith.addf %298, %299 : vector<16x128xf32>
    %301 = arith.truncf %300 : vector<16x128xf32> to vector<16x128xbf16>
    %c0_93 = arith.constant 0 : index
    %c0_94 = arith.constant 0 : index
    %302 = vector.load %arg5[%c0_93, %c0_94] : memref<256x1024xbf16, #tpu.memory_space<vmem>>, vector<128x1024xbf16>
    %cst_95 = arith.constant dense<0.000000e+00> : vector<16x1024xf32>
    %303 = tpu.matmul %301, %302, %cst_95 {dimension_numbers = #tpu.dot_dimension_numbers<[1], [0], [0], [1], [0, 0, 1, 1], [], []>} : vector<16x128xbf16>, vector<128x1024xbf16>, vector<16x1024xf32> -> vector<16x1024xf32>
    %c18 = arith.constant 18 : index
    %c0_96 = arith.constant 0 : index
    %304 = vector.load %arg1[%c18, %c0_96] : memref<24x1024xf32, #tpu.memory_space<vmem>>, vector<1x1024xf32>
    %305 = vector.broadcast %304 : vector<1x1024xf32> to vector<16x1024xf32>
    %306 = arith.addf %303, %305 : vector<16x1024xf32>
    %c0_97 = arith.constant 0 : index
    %c0_98 = arith.constant 0 : index
    %307 = vector.load %arg7[%c0_97, %c0_98] : memref<16x1024xf32, #tpu.memory_space<vmem>>, vector<16x1024xf32>
    tpu.vector_store %arg7[%c0_97, %c0_98], %306 {strides = array<i32>} : memref<16x1024xf32, #tpu.memory_space<vmem>>, vector<16x1024xf32>,
    %cst_99 = arith.constant 0.000000e+00 : f32
    %308 = vector.broadcast %cst_99 : f32 to vector<16x128xf32>
    %cst_100 = arith.constant 0.000000e+00 : f32
    %309 = vector.broadcast %cst_100 : f32 to vector<8x128xf32>
    %cst_101 = arith.constant 0.000000e+00 : f32
    %310 = vector.broadcast %cst_101 : f32 to vector<8x128xf32>
    %311 = arith.truncf %308 : vector<16x128xf32> to vector<16x128xbf16>
    %c128_102 = arith.constant 128 : index
    %c0_103 = arith.constant 0 : index
    %312 = vector.load %arg5[%c128_102, %c0_103] : memref<256x1024xbf16, #tpu.memory_space<vmem>>, vector<128x1024xbf16>
    %cst_104 = arith.constant dense<0.000000e+00> : vector<16x1024xf32>
    %313 = tpu.matmul %311, %312, %cst_104 {dimension_numbers = #tpu.dot_dimension_numbers<[1], [0], [0], [1], [0, 0, 1, 1], [], []>} : vector<16x128xbf16>, vector<128x1024xbf16>, vector<16x1024xf32> -> vector<16x1024xf32>
    %c0_105 = arith.constant 0 : index
    %c0_106 = arith.constant 0 : index
    %314 = vector.load %arg7[%c0_105, %c0_106] : memref<16x1024xf32, #tpu.memory_space<vmem>>, vector<8x512xf32>
    %315 = vector.extract_strided_slice %313 {offsets = [0, 0], sizes = [8, 512], strides = [1, 1]} : vector<16x1024xf32> to vector<8x512xf32>
    %316 = arith.addf %314, %315 : vector<8x512xf32>
    %c8_107 = arith.constant 8 : index
    %c512 = arith.constant 512 : index
    %317 = vector.load %arg7[%c8_107, %c512] : memref<16x1024xf32, #tpu.memory_space<vmem>>, vector<8x512xf32>
    %318 = vector.extract_strided_slice %313 {offsets = [8, 512], sizes = [8, 512], strides = [1, 1]} : vector<16x1024xf32> to vector<8x512xf32>
    %319 = arith.addf %317, %318 : vector<8x512xf32>
    %320 = vector.extract_strided_slice %316 {offsets = [0, 0], sizes = [8, 128], strides = [1, 1]} : vector<8x512xf32> to vector<8x128xf32>
    %321 = arith.negf %320 : vector<8x128xf32>
    %322 = math.exp %321 : vector<8x128xf32>
    %cst_108 = arith.constant 1.000000e+00 : f32
    %323 = vector.broadcast %cst_108 : f32 to vector<8x128xf32>
    %324 = arith.addf %323, %322 : vector<8x128xf32>
    %325 = arith.divf %323, %324 : vector<8x128xf32>
    %326 = vector.extract_strided_slice %316 {offsets = [0, 128], sizes = [8, 128], strides = [1, 1]} : vector<8x512xf32> to vector<8x128xf32>
    %327 = arith.negf %326 : vector<8x128xf32>
    %328 = math.exp %327 : vector<8x128xf32>
    %cst_109 = arith.constant 1.000000e+00 : f32
    %329 = vector.broadcast %cst_109 : f32 to vector<8x128xf32>
    %330 = arith.addf %329, %328 : vector<8x128xf32>
    %331 = arith.divf %329, %330 : vector<8x128xf32>
    %332 = vector.extract_strided_slice %316 {offsets = [0, 256], sizes = [8, 128], strides = [1, 1]} : vector<8x512xf32> to vector<8x128xf32>
    %333 = math.tanh %332 : vector<8x128xf32>
    %334 = vector.extract_strided_slice %316 {offsets = [0, 384], sizes = [8, 128], strides = [1, 1]} : vector<8x512xf32> to vector<8x128xf32>
    %335 = arith.negf %334 : vector<8x128xf32>
    %336 = math.exp %335 : vector<8x128xf32>
    %cst_110 = arith.constant 1.000000e+00 : f32
    %337 = vector.broadcast %cst_110 : f32 to vector<8x128xf32>
    %338 = arith.addf %337, %336 : vector<8x128xf32>
    %339 = arith.divf %337, %338 : vector<8x128xf32>
    %340 = arith.mulf %331, %309 : vector<8x128xf32>
    %341 = arith.mulf %325, %333 : vector<8x128xf32>
    %342 = arith.addf %340, %341 : vector<8x128xf32>
    %343 = math.tanh %342 : vector<8x128xf32>
    %344 = arith.mulf %339, %343 : vector<8x128xf32>
    %345 = vector.extract_strided_slice %319 {offsets = [0, 0], sizes = [8, 128], strides = [1, 1]} : vector<8x512xf32> to vector<8x128xf32>
    %346 = arith.negf %345 : vector<8x128xf32>
    %347 = math.exp %346 : vector<8x128xf32>
    %cst_111 = arith.constant 1.000000e+00 : f32
    %348 = vector.broadcast %cst_111 : f32 to vector<8x128xf32>
    %349 = arith.addf %348, %347 : vector<8x128xf32>
    %350 = arith.divf %348, %349 : vector<8x128xf32>
    %351 = vector.extract_strided_slice %319 {offsets = [0, 128], sizes = [8, 128], strides = [1, 1]} : vector<8x512xf32> to vector<8x128xf32>
    %352 = arith.negf %351 : vector<8x128xf32>
    %353 = math.exp %352 : vector<8x128xf32>
    %cst_112 = arith.constant 1.000000e+00 : f32
    %354 = vector.broadcast %cst_112 : f32 to vector<8x128xf32>
    %355 = arith.addf %354, %353 : vector<8x128xf32>
    %356 = arith.divf %354, %355 : vector<8x128xf32>
    %357 = vector.extract_strided_slice %319 {offsets = [0, 256], sizes = [8, 128], strides = [1, 1]} : vector<8x512xf32> to vector<8x128xf32>
    %358 = math.tanh %357 : vector<8x128xf32>
    %359 = vector.extract_strided_slice %319 {offsets = [0, 384], sizes = [8, 128], strides = [1, 1]} : vector<8x512xf32> to vector<8x128xf32>
    %360 = arith.negf %359 : vector<8x128xf32>
    %361 = math.exp %360 : vector<8x128xf32>
    %cst_113 = arith.constant 1.000000e+00 : f32
    %362 = vector.broadcast %cst_113 : f32 to vector<8x128xf32>
    %363 = arith.addf %362, %361 : vector<8x128xf32>
    %364 = arith.divf %362, %363 : vector<8x128xf32>
    %365 = arith.mulf %356, %310 : vector<8x128xf32>
    %366 = arith.mulf %350, %358 : vector<8x128xf32>
    %367 = arith.addf %365, %366 : vector<8x128xf32>
    %368 = math.tanh %367 : vector<8x128xf32>
    %369 = arith.mulf %364, %368 : vector<8x128xf32>
    %c0_114 = arith.constant 0 : index
    %c0_115 = arith.constant 0 : index
    %370 = vector.load %arg8[%c0_114, %c0_115] : memref<16x256xf32, #tpu.memory_space<vmem>>, vector<8x128xf32>
    tpu.vector_store %arg8[%c0_114, %c0_115], %344 {strides = array<i32>} : memref<16x256xf32, #tpu.memory_space<vmem>>, vector<8x128xf32>,
    %c8_116 = arith.constant 8 : index
    %c128_117 = arith.constant 128 : index
    %371 = vector.load %arg8[%c8_116, %c128_117] : memref<16x256xf32, #tpu.memory_space<vmem>>, vector<8x128xf32>
    tpu.vector_store %arg8[%c8_116, %c128_117], %369 {strides = array<i32>} : memref<16x256xf32, #tpu.memory_space<vmem>>, vector<8x128xf32>,
    %372 = tpu.concatenate %344, %369 in 0 : vector<8x128xf32>, vector<8x128xf32> -> vector<16x128xf32>
    %373 = arith.truncf %372 : vector<16x128xf32> to vector<16x128xbf16>
    %c128_118 = arith.constant 128 : index
    %c0_119 = arith.constant 0 : index
    %374 = vector.load %arg5[%c128_118, %c0_119] : memref<256x1024xbf16, #tpu.memory_space<vmem>>, vector<128x1024xbf16>
    %cst_120 = arith.constant dense<0.000000e+00> : vector<16x1024xf32>
    %375 = tpu.matmul %373, %374, %cst_120 {dimension_numbers = #tpu.dot_dimension_numbers<[1], [0], [0], [1], [0, 0, 1, 1], [], []>} : vector<16x128xbf16>, vector<128x1024xbf16>, vector<16x1024xf32> -> vector<16x1024xf32>
    %c8_121 = arith.constant 8 : index
    %c0_122 = arith.constant 0 : index
    %376 = vector.load %arg7[%c8_121, %c0_122] : memref<16x1024xf32, #tpu.memory_space<vmem>>, vector<8x512xf32>
    %377 = vector.extract_strided_slice %375 {offsets = [0, 0], sizes = [8, 512], strides = [1, 1]} : vector<16x1024xf32> to vector<8x512xf32>
    %378 = arith.addf %376, %377 : vector<8x512xf32>
    %c0_123 = arith.constant 0 : index
    %c512_124 = arith.constant 512 : index
    %379 = vector.load %arg7[%c0_123, %c512_124] : memref<16x1024xf32, #tpu.memory_space<vmem>>, vector<8x512xf32>
    %380 = vector.extract_strided_slice %375 {offsets = [8, 512], sizes = [8, 512], strides = [1, 1]} : vector<16x1024xf32> to vector<8x512xf32>
    %381 = arith.addf %379, %380 : vector<8x512xf32>
    %382 = vector.extract_strided_slice %378 {offsets = [0, 0], sizes = [8, 128], strides = [1, 1]} : vector<8x512xf32> to vector<8x128xf32>
    %383 = arith.negf %382 : vector<8x128xf32>
    %384 = math.exp %383 : vector<8x128xf32>
    %cst_125 = arith.constant 1.000000e+00 : f32
    %385 = vector.broadcast %cst_125 : f32 to vector<8x128xf32>
    %386 = arith.addf %385, %384 : vector<8x128xf32>
    %387 = arith.divf %385, %386 : vector<8x128xf32>
    %388 = vector.extract_strided_slice %378 {offsets = [0, 128], sizes = [8, 128], strides = [1, 1]} : vector<8x512xf32> to vector<8x128xf32>
    %389 = arith.negf %388 : vector<8x128xf32>
    %390 = math.exp %389 : vector<8x128xf32>
    %cst_126 = arith.constant 1.000000e+00 : f32
    %391 = vector.broadcast %cst_126 : f32 to vector<8x128xf32>
    %392 = arith.addf %391, %390 : vector<8x128xf32>
    %393 = arith.divf %391, %392 : vector<8x128xf32>
    %394 = vector.extract_strided_slice %378 {offsets = [0, 256], sizes = [8, 128], strides = [1, 1]} : vector<8x512xf32> to vector<8x128xf32>
    %395 = math.tanh %394 : vector<8x128xf32>
    %396 = vector.extract_strided_slice %378 {offsets = [0, 384], sizes = [8, 128], strides = [1, 1]} : vector<8x512xf32> to vector<8x128xf32>
    %397 = arith.negf %396 : vector<8x128xf32>
    %398 = math.exp %397 : vector<8x128xf32>
    %cst_127 = arith.constant 1.000000e+00 : f32
    %399 = vector.broadcast %cst_127 : f32 to vector<8x128xf32>
    %400 = arith.addf %399, %398 : vector<8x128xf32>
    %401 = arith.divf %399, %400 : vector<8x128xf32>
    %402 = arith.mulf %393, %342 : vector<8x128xf32>
    %403 = arith.mulf %387, %395 : vector<8x128xf32>
    %404 = arith.addf %402, %403 : vector<8x128xf32>
    %405 = math.tanh %404 : vector<8x128xf32>
    %406 = arith.mulf %401, %405 : vector<8x128xf32>
    %407 = vector.extract_strided_slice %381 {offsets = [0, 0], sizes = [8, 128], strides = [1, 1]} : vector<8x512xf32> to vector<8x128xf32>
    %408 = arith.negf %407 : vector<8x128xf32>
    %409 = math.exp %408 : vector<8x128xf32>
    %cst_128 = arith.constant 1.000000e+00 : f32
    %410 = vector.broadcast %cst_128 : f32 to vector<8x128xf32>
    %411 = arith.addf %410, %409 : vector<8x128xf32>
    %412 = arith.divf %410, %411 : vector<8x128xf32>
    %413 = vector.extract_strided_slice %381 {offsets = [0, 128], sizes = [8, 128], strides = [1, 1]} : vector<8x512xf32> to vector<8x128xf32>
    %414 = arith.negf %413 : vector<8x128xf32>
    %415 = math.exp %414 : vector<8x128xf32>
    %cst_129 = arith.constant 1.000000e+00 : f32
    %416 = vector.broadcast %cst_129 : f32 to vector<8x128xf32>
    %417 = arith.addf %416, %415 : vector<8x128xf32>
    %418 = arith.divf %416, %417 : vector<8x128xf32>
    %419 = vector.extract_strided_slice %381 {offsets = [0, 256], sizes = [8, 128], strides = [1, 1]} : vector<8x512xf32> to vector<8x128xf32>
    %420 = math.tanh %419 : vector<8x128xf32>
    %421 = vector.extract_strided_slice %381 {offsets = [0, 384], sizes = [8, 128], strides = [1, 1]} : vector<8x512xf32> to vector<8x128xf32>
    %422 = arith.negf %421 : vector<8x128xf32>
    %423 = math.exp %422 : vector<8x128xf32>
    %cst_130 = arith.constant 1.000000e+00 : f32
    %424 = vector.broadcast %cst_130 : f32 to vector<8x128xf32>
    %425 = arith.addf %424, %423 : vector<8x128xf32>
    %426 = arith.divf %424, %425 : vector<8x128xf32>
    %427 = arith.mulf %418, %367 : vector<8x128xf32>
    %428 = arith.mulf %412, %420 : vector<8x128xf32>
    %429 = arith.addf %427, %428 : vector<8x128xf32>
    %430 = math.tanh %429 : vector<8x128xf32>
    %431 = arith.mulf %426, %430 : vector<8x128xf32>
    %c8_131 = arith.constant 8 : index
    %c0_132 = arith.constant 0 : index
    %432 = vector.load %arg8[%c8_131, %c0_132] : memref<16x256xf32, #tpu.memory_space<vmem>>, vector<8x128xf32>
    tpu.vector_store %arg8[%c8_131, %c0_132], %406 {strides = array<i32>} : memref<16x256xf32, #tpu.memory_space<vmem>>, vector<8x128xf32>,
    %c0_133 = arith.constant 0 : index
    %c128_134 = arith.constant 128 : index
    %433 = vector.load %arg8[%c0_133, %c128_134] : memref<16x256xf32, #tpu.memory_space<vmem>>, vector<8x128xf32>
    tpu.vector_store %arg8[%c0_133, %c128_134], %431 {strides = array<i32>} : memref<16x256xf32, #tpu.memory_space<vmem>>, vector<8x128xf32>,
    %c0_135 = arith.constant 0 : index
    %c0_136 = arith.constant 0 : index
    %434 = vector.load %arg8[%c0_135, %c0_136] : memref<16x256xf32, #tpu.memory_space<vmem>>, vector<16x256xf32>
    %435 = arith.truncf %434 : vector<16x256xf32> to vector<16x256xbf16>
    %c1280 = arith.constant 1280 : index
    %c0_137 = arith.constant 0 : index
    %436 = vector.load %arg2[%c1280, %c0_137] : memref<1536x128xbf16, #tpu.memory_space<vmem>>, vector<256x128xbf16>
    %cst_138 = arith.constant dense<0.000000e+00> : vector<16x128xf32>
    %437 = tpu.matmul %435, %436, %cst_138 {dimension_numbers = #tpu.dot_dimension_numbers<[1], [0], [0], [1], [0, 0, 1, 1], [], []>} : vector<16x256xbf16>, vector<256x128xbf16>, vector<16x128xf32> -> vector<16x128xf32>
    %c19 = arith.constant 19 : index
    %c0_139 = arith.constant 0 : index
    %438 = vector.load %arg1[%c19, %c0_139] : memref<24x1024xf32, #tpu.memory_space<vmem>>, vector<1x128xf32>
    %439 = vector.broadcast %438 : vector<1x128xf32> to vector<16x128xf32>
    %440 = arith.addf %437, %439 : vector<16x128xf32>
    %c0_140 = arith.constant 0 : index
    %c0_141 = arith.constant 0 : index
    %441 = vector.load %arg6[%c0_140, %c0_141] : memref<16x128xf32, #tpu.memory_space<vmem>>, vector<16x128xf32>
    tpu.vector_store %arg6[%c0_140, %c0_141], %440 {strides = array<i32>} : memref<16x128xf32, #tpu.memory_space<vmem>>, vector<16x128xf32>,
    return
  }
}

</mosaic_0001>

<llo_original>
// kernel: bert_ner_bilstm.1
$region0: #{bert_ner_bilstm.1}
  #allocation0 [shape = 'u32[]', space=smem, size = 0x4, offset = 0x4, fixed_abs, tag = 'smem constant byte address 0x4 - core index']
  #allocation1 [shape = 'u32[144,128]{1,0:T(1,128)}', space=vmem, size = 0x12000, scoped, tag = 'internal scratch']
  #allocation2 [shape = 'f32[16,1024]{1,0:T(8,128)}', space=vmem, size = 0x10000, scoped, tag = 'scratch operand']
  #allocation3 [shape = 'f32[16,256]{1,0:T(8,128)}', space=vmem, size = 0x4000, scoped, tag = 'scratch operand']
  %s0 = inlined_call_operand.vmem [shape: f32[16,128], index: 0, kind: input, shape index: {}]
  %s1 = inlined_call_operand.vmem [shape: f32[24,1024], index: 1, kind: input, shape index: {}]
  %s2 = inlined_call_operand.hbm [shape: bf16[1536,128], index: 2, kind: input, shape index: {}]
  %s3 = inlined_call_operand.hbm [shape: bf16[256,384], index: 3, kind: input, shape index: {}]
  %s4 = inlined_call_operand.hbm [shape: bf16[256,512], index: 4, kind: input, shape index: {}]
  %s5 = inlined_call_operand.hbm [shape: bf16[256,1024], index: 5, kind: input, shape index: {}]
  %s6 = inlined_call_operand.vmem [shape: f32[16,128], index: 6, kind: output, shape index: {}]
  %s7 = sld [smem:[#allocation0]]
  $region50: #{bert_ner_bilstm.1} parent=0
    _
  %s9 = ssub.s32 1, %s7
  %s10 = scalar_select 0, %s9, %s7
  $region1: #{bert_ner_bilstm.1} parent=0
    #allocation4 [shape = 'u8[393216]{0}', space=vmem, size = 0x60000, scoped, tag = 'input window, operand 2, single buffered']
    #allocation5 [shape = 's32[1]{0}', space=sflag, size = 0x4, scoped, tag = 'scoped memory for bert_ner_bilstm.1']
    #allocation6 [shape = 'u8[196608]{0}', space=vmem, size = 0x30000, scoped, tag = 'input window, operand 3, single buffered']
    #allocation7 [shape = 's32[1]{0}', space=sflag, size = 0x4, scoped, tag = 'scoped memory for bert_ner_bilstm.1']
    #allocation8 [shape = 'u8[262144]{0}', space=vmem, size = 0x40000, scoped, tag = 'input window, operand 4, single buffered']
    #allocation9 [shape = 'u8[524288]{0}', space=vmem, size = 0x80000, scoped, tag = 'input window, operand 5, single buffered']
    #allocation10 [shape = 's32[1]{0}', space=sflag, size = 0x4, scoped, tag = 'scoped memory for bert_ner_bilstm.1']
    %11 = vsyncpa [#allocation5], 0
    %12 = vsyncpa [#allocation7], 0
    %13 = vsyncpa [#allocation10], 0
    // Predicated region
    $region2: #{bert_ner_bilstm.1} parent=1 // pred_check
      _
    $region3: #{bert_ner_bilstm.1} parent=1 // pred_check_branch
      %15 = sbr.rel (0) target = $region5
    $region4: #{bert_ner_bilstm.1} parent=1 // pred_region
      _
    $region5: #{bert_ner_bilstm.1} parent=1 // pred_fallthru
      _
    // Predicated region
    $region6: #{bert_ner_bilstm.1} parent=1 // pred_check
      _
    $region7: #{bert_ner_bilstm.1} parent=1 // pred_check_branch
      %17 = sbr.rel (0) target = $region9
    $region8: #{bert_ner_bilstm.1} parent=1 // pred_region
      _
    $region9: #{bert_ner_bilstm.1} parent=1 // pred_fallthru
      _
    // Predicated region
    $region10: #{bert_ner_bilstm.1} parent=1 // pred_check
      _
    $region11: #{bert_ner_bilstm.1} parent=1 // pred_check_branch
      %19 = sbr.rel (0) target = $region13
    $region12: #{bert_ner_bilstm.1} parent=1 // pred_region
      %s21 = ssub.s32 12288, 12288
      %22 = vsyncadd [#allocation5], %s21
      %s23 = sshll.u32 [#allocation4], 4
      %s24 = int_to_ptr.vmem [resolvable:$true] %s23
      %29 = dma.hbm_to_vmem [thread:$0]  %s2, 12288, %s24, [#allocation5], 64, 64, 4
    $region13: #{bert_ner_bilstm.1} parent=1 // pred_fallthru
      _
    // Predicated region
    $region14: #{bert_ner_bilstm.1} parent=1 // pred_check
      _
    $region15: #{bert_ner_bilstm.1} parent=1 // pred_check_branch
      %31 = sbr.rel (0) target = $region17
    $region16: #{bert_ner_bilstm.1} parent=1 // pred_region
      %s33 = ssub.s32 6144, 6144
      %34 = vsyncadd [#allocation7], %s33
      %s35 = sshll.u32 [#allocation6], 4
      %s36 = int_to_ptr.vmem [resolvable:$true] %s35
      %41 = dma.hbm_to_vmem [thread:$0]  %s3, 6144, %s36, [#allocation7], 192, 192, 12
    $region17: #{bert_ner_bilstm.1} parent=1 // pred_fallthru
      _
    // Predicated region
    $region18: #{bert_ner_bilstm.1} parent=1 // pred_check
      _
    $region19: #{bert_ner_bilstm.1} parent=1 // pred_check_branch
      %43 = sbr.rel (0) target = $region21
    $region20: #{bert_ner_bilstm.1} parent=1 // pred_region
      %s45 = ssub.s32 8192, 8192
      %46 = vsyncadd [#allocation7], %s45
      %s47 = sshll.u32 [#allocation8], 4
      %s48 = int_to_ptr.vmem [resolvable:$true] %s47
      %53 = dma.hbm_to_vmem [thread:$0]  %s4, 8192, %s48, [#allocation7], 256, 256, 16
    $region21: #{bert_ner_bilstm.1} parent=1 // pred_fallthru
      _
    // Predicated region
    $region22: #{bert_ner_bilstm.1} parent=1 // pred_check
      _
    $region23: #{bert_ner_bilstm.1} parent=1 // pred_check_branch
      %55 = sbr.rel (0) target = $region25
    $region24: #{bert_ner_bilstm.1} parent=1 // pred_region
      %s57 = ssub.s32 16384, 16384
      %58 = vsyncadd [#allocation10], %s57
      %s59 = sshll.u32 [#allocation9], 4
      %s60 = int_to_ptr.vmem [resolvable:$true] %s59
      %65 = dma.hbm_to_vmem [thread:$0]  %s5, 16384, %s60, [#allocation10], 512, 512, 32
    $region25: #{bert_ner_bilstm.1} parent=1 // pred_fallthru
      _
    // Predicated region
    $region26: #{bert_ner_bilstm.1} parent=1 // pred_check
      _
    $region27: #{bert_ner_bilstm.1} parent=1 // pred_check_branch
      %67 = sbr.rel (0) target = $region29
    $region28: #{bert_ner_bilstm.1} parent=1 // pred_region
      %68 = dma.done [#allocation5], 12288
    $region29: #{bert_ner_bilstm.1} parent=1 // pred_fallthru
      _
    // Predicated region
    $region30: #{bert_ner_bilstm.1} parent=1 // pred_check
      _
    $region31: #{bert_ner_bilstm.1} parent=1 // pred_check_branch
      %70 = sbr.rel (0) target = $region33
    $region32: #{bert_ner_bilstm.1} parent=1 // pred_region
      %71 = dma.done [#allocation7], 6144
    $region33: #{bert_ner_bilstm.1} parent=1 // pred_fallthru
      _
    // Predicated region
    $region34: #{bert_ner_bilstm.1} parent=1 // pred_check
      _
    $region35: #{bert_ner_bilstm.1} parent=1 // pred_check_branch
      %73 = sbr.rel (0) target = $region37
    $region36: #{bert_ner_bilstm.1} parent=1 // pred_region
      %74 = dma.done [#allocation7], 8192
    $region37: #{bert_ner_bilstm.1} parent=1 // pred_fallthru
      _
    // Predicated region
    $region38: #{bert_ner_bilstm.1} parent=1 // pred_check
      _
    $region39: #{bert_ner_bilstm.1} parent=1 // pred_check_branch
      %76 = sbr.rel (0) target = $region41
    $region40: #{bert_ner_bilstm.1} parent=1 // pred_region
      %77 = dma.done [#allocation10], 16384
    $region41: #{bert_ner_bilstm.1} parent=1 // pred_fallthru
      _
    %v79 = vld [vmem:[%s0] sm:$0xff]
    %v80 = vld [vmem:[%s0 + $0x8] sm:$0xff]
    %v81 = vld [vmem:[%s1] ss:$0 sm:$0xff]
    %v82 = vld [vmem:[%s1 + $0x1] ss:$0 sm:$0xff]
    %83 = vadd.xlane.f32.xlu0 %v79
    %v84 = vpop.xlane.xlu0 %83
    %85 = vadd.xlane.f32.xlu0 %v80
    %v86 = vpop.xlane.xlu0 %85
    %v87 = vrcp.pop 128.0
    %v88 = vmul.f32 %v84, %v87
    %v89 = vmul.f32 %v86, %v87
    %v90 = vsub.f32 %v79, %v88
    %v91 = vsub.f32 %v80, %v89
    %v92 = vmul.f32 %v90, %v90
    %v93 = vmul.f32 %v91, %v91
    %94 = vadd.xlane.f32.xlu0 %v92
    %v95 = vpop.xlane.xlu0 %94
    %96 = vadd.xlane.f32.xlu0 %v93
    %v97 = vpop.xlane.xlu0 %96
    %v98 = vmul.f32 %v95, %v87
    %v99 = vmul.f32 %v97, %v87
    %v100 = vadd.f32 %v98, 1e-12
    %v101 = vadd.f32 %v99, 1e-12
    %v102 = vrsqrt.pop %v100
    %v103 = vrsqrt.pop %v101
    %v104 = vmul.f32 %v90, %v102
    %v105 = vmul.f32 %v91, %v103
    %v106 = vmul.f32 %v104, %v81
    %v107 = vmul.f32 %v105, %v81
    %v108 = vadd.f32 %v106, %v82
    %v109 = vadd.f32 %v107, %v82
    %v110 = vpack.c.bf16 %v109, %v108
    %v111 = vld [vmem:[#allocation6] sm:$0xff]
    %v112 = vld [vmem:[#allocation6 + $0x8] sm:$0xf]
    %v113 = vld [vmem:[#allocation6 + $0xc] sm:$0xff]
    %v114 = vld [vmem:[#allocation6 + $0x14] sm:$0xf]
    %v115 = vld [vmem:[#allocation6 + $0x18] sm:$0xff]
    %v116 = vld [vmem:[#allocation6 + $0x20] sm:$0xf]
    %v117 = vld [vmem:[#allocation6 + $0x24] sm:$0xff]
    %v118 = vld [vmem:[#allocation6 + $0x2c] sm:$0xf]
    %v119 = vld [vmem:[#allocation6 + $0x30] sm:$0xff]
    %v120 = vld [vmem:[#allocation6 + $0x38] sm:$0xf]
    %v121 = vld [vmem:[#allocation6 + $0x3c] sm:$0xff]
    %v122 = vld [vmem:[#allocation6 + $0x44] sm:$0xf]
    %v123 = vld [vmem:[#allocation6 + $0x48] sm:$0xff]
    %v124 = vld [vmem:[#allocation6 + $0x50] sm:$0xf]
    %v125 = vld [vmem:[#allocation6 + $0x54] sm:$0xff]
    %v126 = vld [vmem:[#allocation6 + $0x5c] sm:$0xf]
    %v127 = vld [vmem:[#allocation6 + $0x60] sm:$0xff]
    %v128 = vld [vmem:[#allocation6 + $0x68] sm:$0xf]
    %v129 = vld [vmem:[#allocation6 + $0x6c] sm:$0xff]
    %v130 = vld [vmem:[#allocation6 + $0x74] sm:$0xf]
    %v131 = vld [vmem:[#allocation6 + $0x78] sm:$0xff]
    %v132 = vld [vmem:[#allocation6 + $0x80] sm:$0xf]
    %v133 = vld [vmem:[#allocation6 + $0x84] sm:$0xff]
    %v134 = vld [vmem:[#allocation6 + $0x8c] sm:$0xf]
    %v135 = vld [vmem:[#allocation6 + $0x90] sm:$0xff]
    %v136 = vld [vmem:[#allocation6 + $0x98] sm:$0xf]
    %v137 = vld [vmem:[#allocation6 + $0x9c] sm:$0xff]
    %v138 = vld [vmem:[#allocation6 + $0xa4] sm:$0xf]
    %v139 = vld [vmem:[#allocation6 + $0xa8] sm:$0xff]
    %v140 = vld [vmem:[#allocation6 + $0xb0] sm:$0xf]
    %v141 = vld [vmem:[#allocation6 + $0xb4] sm:$0xff]
    %v142 = vld [vmem:[#allocation6 + $0xbc] sm:$0xf]
    %s143 = scalar_lea.vmem %s1, 2
    %v144 = vld [vmem:[%s143] ss:$8 sm:$0x7]
    %v146 = vlaneseq
    %v147 = vshrl.u32 %v146, 7
    %v148 = vsub.s32 0, %v147
    %v149 = vrot.slane %v144, %v148
    %v150 = vlaneseq
    %v151 = vshrl.u32 %v150, 7
    %v152 = vsub.s32 1, %v151
    %v153 = vrot.slane %v144, %v152
    %v154 = vlaneseq
    %v155 = vshrl.u32 %v154, 7
    %v156 = vsub.s32 2, %v155
    %v157 = vrot.slane %v144, %v156
    %v193 = vunpack.c.l.b16 %v111
    %v194 = vunpack.c.h.b16 %v111
    %v195 = vunpack.c.l.b16 %v112
    %v196 = vunpack.c.l.b16 %v113
    %v197 = vunpack.c.h.b16 %v113
    %v198 = vunpack.c.l.b16 %v114
    %v199 = vunpack.c.l.b16 %v115
    %v200 = vunpack.c.h.b16 %v115
    %v201 = vunpack.c.l.b16 %v116
    %v202 = vunpack.c.l.b16 %v117
    %v203 = vunpack.c.h.b16 %v117
    %v204 = vunpack.c.l.b16 %v118
    %v205 = vunpack.c.l.b16 %v119
    %v206 = vunpack.c.h.b16 %v119
    %v207 = vunpack.c.l.b16 %v120
    %v208 = vunpack.c.l.b16 %v121
    %v209 = vunpack.c.h.b16 %v121
    %v210 = vunpack.c.l.b16 %v122
    %v211 = vunpack.c.l.b16 %v123
    %v212 = vunpack.c.h.b16 %v123
    %v213 = vunpack.c.l.b16 %v124
    %v214 = vunpack.c.l.b16 %v125
    %v215 = vunpack.c.h.b16 %v125
    %v216 = vunpack.c.l.b16 %v126
    %v217 = vunpack.c.l.b16 %v127
    %v218 = vunpack.c.h.b16 %v127
    %v219 = vunpack.c.l.b16 %v128
    %v220 = vunpack.c.l.b16 %v129
    %v221 = vunpack.c.h.b16 %v129
    %v222 = vunpack.c.l.b16 %v130
    %v223 = vunpack.c.l.b16 %v131
    %v224 = vunpack.c.h.b16 %v131
    %v225 = vunpack.c.l.b16 %v132
    %v226 = vunpack.c.l.b16 %v133
    %v227 = vunpack.c.h.b16 %v133
    %v228 = vunpack.c.l.b16 %v134
    %v229 = vunpack.c.l.b16 %v135
    %v230 = vunpack.c.h.b16 %v135
    %v231 = vunpack.c.l.b16 %v136
    %v232 = vunpack.c.l.b16 %v137
    %v233 = vunpack.c.h.b16 %v137
    %v234 = vunpack.c.l.b16 %v138
    %v235 = vunpack.c.l.b16 %v139
    %v236 = vunpack.c.h.b16 %v139
    %v237 = vunpack.c.l.b16 %v140
    %v238 = vunpack.c.l.b16 %v141
    %v239 = vunpack.c.h.b16 %v141
    %v240 = vunpack.c.l.b16 %v142
    %v241 = vpack.c.b16 %v196, %v193
    %v242 = vpack.c.b16 %v197, %v194
    %v243 = vpack.c.b16 %v198, %v195
    %v244 = vpack.c.b16 %v202, %v199
    %v245 = vpack.c.b16 %v203, %v200
    %v246 = vpack.c.b16 %v204, %v201
    %v247 = vpack.c.b16 %v208, %v205
    %v248 = vpack.c.b16 %v209, %v206
    %v249 = vpack.c.b16 %v210, %v207
    %v250 = vpack.c.b16 %v214, %v211
    %v251 = vpack.c.b16 %v215, %v212
    %v252 = vpack.c.b16 %v216, %v213
    %v253 = vpack.c.b16 %v220, %v217
    %v254 = vpack.c.b16 %v221, %v218
    %v255 = vpack.c.b16 %v222, %v219
    %v256 = vpack.c.b16 %v226, %v223
    %v257 = vpack.c.b16 %v227, %v224
    %v258 = vpack.c.b16 %v228, %v225
    %v259 = vpack.c.b16 %v232, %v229
    %v260 = vpack.c.b16 %v233, %v230
    %v261 = vpack.c.b16 %v234, %v231
    %v262 = vpack.c.b16 %v238, %v235
    %v263 = vpack.c.b16 %v239, %v236
    %v264 = vpack.c.b16 %v240, %v237
    %289 = vmatprep.subr.bf16.mxu0 %v242
    %290 = vmatpush1.bf16.msra.mxu0 %v241
    %291 = vmatprep.subr.bf16.mxu0 %v245
    %292 = vmatpush1.bf16.msra.mxu0 %v244
    %293 = vmatprep.subr.bf16.mxu0 %v248
    %294 = vmatpush1.bf16.msra.mxu0 %v247
    %295 = vmatprep.subr.bf16.mxu0 %v251
    %296 = vmatpush1.bf16.msra.mxu0 %v250
    %297 = vmatprep.subr.bf16.mxu0 %v254
    %298 = vmatpush1.bf16.msra.mxu0 %v253
    %299 = vmatprep.subr.bf16.mxu0 %v257
    %300 = vmatpush1.bf16.msra.mxu0 %v256
    %301 = vmatprep.subr.bf16.mxu0 %v260
    %302 = vmatpush1.bf16.msra.mxu0 %v259
    %303 = vmatprep.subr.bf16.mxu0 %v263
    %304 = vmatpush1.bf16.msra.mxu0 %v262
    %305 = vmatprep.subr.bf16.mxu0 0
    %306 = vmatpush1.bf16.msra.mxu0 0
    %307 = vmatprep.subr.bf16.mxu0 0
    %308 = vmatpush1.bf16.msra.mxu0 0
    %309 = vmatprep.subr.bf16.mxu0 0
    %310 = vmatpush1.bf16.msra.mxu0 0
    %311 = vmatprep.subr.bf16.mxu0 0
    %312 = vmatpush1.bf16.msra.mxu0 0
    %313 = vmatprep.subr.bf16.mxu0 0
    %314 = vmatpush1.bf16.msra.mxu0 0
    %315 = vmatprep.subr.bf16.mxu0 0
    %316 = vmatpush1.bf16.msra.mxu0 0
    %317 = vmatprep.subr.bf16.mxu0 0
    %318 = vmatpush1.bf16.msra.mxu0 0
    %319 = vmatprep.subr.bf16.mxu0 0
    %320 = vmatpush1.bf16.msra.mxu0 0
    %321 = vmatprep.mubr.bf16.mxu0 0
    %322 = vmatmul.mubr.bf16.gmra.mrb[0].mxu0 %v110
    %v323 = vpop.f32.mrb[0].mxu0
    %v324 = vadd.f32 %v149, %v323
    %v325 = vpop.f32.mrb[0].mxu0
    %v326 = vadd.f32 %v153, %v325
    %v327 = vpop.f32.mrb[0].mxu0
    %v328 = vadd.f32 %v149, %v327
    %v329 = vpop.f32.mrb[0].mxu0
    %v330 = vadd.f32 %v153, %v329
    %331 = vdwg.mxu0
    %332 = vmatprep.subr.bf16.mxu0 0
    %333 = vmatpush1.bf16.msra.mxu0 %v243
    %334 = vmatprep.subr.bf16.mxu0 0
    %335 = vmatpush1.bf16.msra.mxu0 %v246
    %336 = vmatprep.subr.bf16.mxu0 0
    %337 = vmatpush1.bf16.msra.mxu0 %v249
    %338 = vmatprep.subr.bf16.mxu0 0
    %339 = vmatpush1.bf16.msra.mxu0 %v252
    %340 = vmatprep.subr.bf16.mxu0 0
    %341 = vmatpush1.bf16.msra.mxu0 %v255
    %342 = vmatprep.subr.bf16.mxu0 0
    %343 = vmatpush1.bf16.msra.mxu0 %v258
    %344 = vmatprep.subr.bf16.mxu0 0
    %345 = vmatpush1.bf16.msra.mxu0 %v261
    %346 = vmatprep.subr.bf16.mxu0 0
    %347 = vmatpush1.bf16.msra.mxu0 %v264
    %348 = vmatprep.subr.bf16.mxu0 0
    %349 = vmatpush1.bf16.msra.mxu0 0
    %350 = vmatprep.subr.bf16.mxu0 0
    %351 = vmatpush1.bf16.msra.mxu0 0
    %352 = vmatprep.subr.bf16.mxu0 0
    %353 = vmatpush1.bf16.msra.mxu0 0
    %354 = vmatprep.subr.bf16.mxu0 0
    %355 = vmatpush1.bf16.msra.mxu0 0
    %356 = vmatprep.subr.bf16.mxu0 0
    %357 = vmatpush1.bf16.msra.mxu0 0
    %358 = vmatprep.subr.bf16.mxu0 0
    %359 = vmatpush1.bf16.msra.mxu0 0
    %360 = vmatprep.subr.bf16.mxu0 0
    %361 = vmatpush1.bf16.msra.mxu0 0
    %362 = vmatprep.subr.bf16.mxu0 0
    %363 = vmatpush1.bf16.msra.mxu0 0
    %364 = vmatprep.mubr.bf16.mxu0 0
    %365 = vmatmul.mubr.bf16.gmra.mrb[0].mxu0 %v110
    %v366 = vpop.f32.mrb[0].mxu0
    %v367 = vadd.f32 %v157, %v366
    %v368 = vpop.f32.mrb[0].mxu0
    %v369 = vpop.f32.mrb[0].mxu0
    %v370 = vadd.f32 %v157, %v369
    %v371 = vpop.f32.mrb[0].mxu0
    %372 = vdwg.mxu0
    %v373 = vpack.c.bf16 %v324, %v324
    %v374 = vpack.c.bf16 %v328, %v328
    %v375 = vpack.c.bf16 %v326, %v326
    %v376 = vpack.c.bf16 %v330, %v330
    %v377 = vpack.c.bf16 %v367, %v367
    %v378 = vpack.c.bf16 %v370, %v370
    %vm379 = vcmask 523264
    %v381 = vsel %vm379, %v373, 0
    %v384 = vsel %vm379, %v375, 0
    %386 = vmatprep.subr.bf16.mxu0 0
    %387 = vmatpush1.bf16.xpose.msra.mxu0 %v384
    %388 = vmatprep.subr.bf16.mxu0 0
    %389 = vmatpush1.bf16.xpose.msra.mxu0 0
    %390 = vmatprep.subr.bf16.mxu0 0
    %391 = vmatpush1.bf16.xpose.msra.mxu0 0
    %392 = vmatprep.subr.bf16.mxu0 0
    %393 = vmatpush1.bf16.xpose.msra.mxu0 0
    %394 = vmatprep.subr.bf16.mxu0 0
    %395 = vmatpush1.bf16.xpose.msra.mxu0 0
    %396 = vmatprep.subr.bf16.mxu0 0
    %397 = vmatpush1.bf16.xpose.msra.mxu0 0
    %398 = vmatprep.subr.bf16.mxu0 0
    %399 = vmatpush1.bf16.xpose.msra.mxu0 0
    %400 = vmatprep.subr.bf16.mxu0 0
    %401 = vmatpush1.bf16.xpose.msra.mxu0 0
    %402 = vmatprep.subr.bf16.mxu0 0
    %403 = vmatpush1.bf16.xpose.msra.mxu0 0
    %404 = vmatprep.subr.bf16.mxu0 0
    %405 = vmatpush1.bf16.xpose.msra.mxu0 0
    %406 = vmatprep.subr.bf16.mxu0 0
    %407 = vmatpush1.bf16.xpose.msra.mxu0 0
    %408 = vmatprep.subr.bf16.mxu0 0
    %409 = vmatpush1.bf16.xpose.msra.mxu0 0
    %410 = vmatprep.subr.bf16.mxu0 0
    %411 = vmatpush1.bf16.xpose.msra.mxu0 0
    %412 = vmatprep.subr.bf16.mxu0 0
    %413 = vmatpush1.bf16.xpose.msra.mxu0 0
    %414 = vmatprep.subr.bf16.mxu0 0
    %415 = vmatpush1.bf16.xpose.msra.mxu0 0
    %416 = vmatprep.subr.bf16.mxu0 0
    %417 = vmatpush1.bf16.xpose.msra.mxu0 0
    %418 = vmatprep.mubr.bf16.mxu0 0
    %419 = vmatmul.mubr.bf16.gmra.mrb[0].mxu0 %v381
    %v420 = vpop.f32.mrb[0].mxu0
    %v421 = vadd.f32 0.0, %v420
    %v422 = vpop.f32.mrb[0].mxu0
    %v423 = vpop.f32.mrb[0].mxu0
    %v424 = vpop.f32.mrb[0].mxu0
    %425 = vdwg.mxu0
    %v427 = vsel %vm379, %v374, 0
    %v430 = vsel %vm379, %v376, 0
    %432 = vmatprep.subr.bf16.mxu0 0
    %433 = vmatpush1.bf16.xpose.msra.mxu0 %v430
    %434 = vmatprep.subr.bf16.mxu0 0
    %435 = vmatpush1.bf16.xpose.msra.mxu0 0
    %436 = vmatprep.subr.bf16.mxu0 0
    %437 = vmatpush1.bf16.xpose.msra.mxu0 0
    %438 = vmatprep.subr.bf16.mxu0 0
    %439 = vmatpush1.bf16.xpose.msra.mxu0 0
    %440 = vmatprep.subr.bf16.mxu0 0
    %441 = vmatpush1.bf16.xpose.msra.mxu0 0
    %442 = vmatprep.subr.bf16.mxu0 0
    %443 = vmatpush1.bf16.xpose.msra.mxu0 0
    %444 = vmatprep.subr.bf16.mxu0 0
    %445 = vmatpush1.bf16.xpose.msra.mxu0 0
    %446 = vmatprep.subr.bf16.mxu0 0
    %447 = vmatpush1.bf16.xpose.msra.mxu0 0
    %448 = vmatprep.subr.bf16.mxu0 0
    %449 = vmatpush1.bf16.xpose.msra.mxu0 0
    %450 = vmatprep.subr.bf16.mxu0 0
    %451 = vmatpush1.bf16.xpose.msra.mxu0 0
    %452 = vmatprep.subr.bf16.mxu0 0
    %453 = vmatpush1.bf16.xpose.msra.mxu0 0
    %454 = vmatprep.subr.bf16.mxu0 0
    %455 = vmatpush1.bf16.xpose.msra.mxu0 0
    %456 = vmatprep.subr.bf16.mxu0 0
    %457 = vmatpush1.bf16.xpose.msra.mxu0 0
    %458 = vmatprep.subr.bf16.mxu0 0
    %459 = vmatpush1.bf16.xpose.msra.mxu0 0
    %460 = vmatprep.subr.bf16.mxu0 0
    %461 = vmatpush1.bf16.xpose.msra.mxu0 0
    %462 = vmatprep.subr.bf16.mxu0 0
    %463 = vmatpush1.bf16.xpose.msra.mxu0 0
    %464 = vmatprep.mubr.bf16.mxu0 0
    %465 = vmatmul.mubr.bf16.gmra.mrb[0].mxu0 %v427
    %v466 = vpop.f32.mrb[0].mxu0
    %v467 = vadd.f32 0.0, %v466
    %v468 = vpop.f32.mrb[0].mxu0
    %v469 = vpop.f32.mrb[0].mxu0
    %v470 = vpop.f32.mrb[0].mxu0
    %471 = vdwg.mxu0
    %v472 = vmul.f32 %v421, 0.125
    %v473 = vmul.f32 %v467, 0.125
    %vm474 = vcmask 64512
    %v475 = vsel %vm474, %v472, -inf
    %476 = vmax.xlane.f32.xlu0 %v475
    %v477 = vpop.xlane.xlu0 %476
    %v478 = vsel %vm474, %v473, -inf
    %479 = vmax.xlane.f32.xlu0 %v478
    %v480 = vpop.xlane.xlu0 %479
    %v481 = vsub.f32 %v472, %v477
    %v482 = vsub.f32 %v473, %v480
    %v483 = vmul.f32 %v481, 1.442695
    %v484 = vpow.pop %v483
    %v485 = vmul.f32 %v482, 1.442695
    %v486 = vpow.pop %v485
    %v487 = vsel %vm474, %v484, 0.0
    %488 = vadd.xlane.f32.xlu0 %v487
    %v489 = vpop.xlane.xlu0 %488
    %v490 = vsel %vm474, %v486, 0.0
    %491 = vadd.xlane.f32.xlu0 %v490
    %v492 = vpop.xlane.xlu0 %491
    %v493 = vrcp.pop %v489
    %v494 = vrcp.pop %v492
    %v495 = vmul.f32 %v484, %v493
    %v496 = vmul.f32 %v486, %v494
    %v497 = vpack.c.bf16 %v495, %v495
    %v498 = vpack.c.bf16 %v496, %v496
    %v500 = vsel %vm474, %v497, 0
    %vm502 = vcmask 1043456
    %v504 = vsel %vm502, %v377, 0
    %506 = vmatprep.subr.bf16.mxu0 0
    %507 = vmatpush1.bf16.msra.mxu0 %v504
    %508 = vmatprep.subr.bf16.mxu0 0
    %509 = vmatpush1.bf16.msra.mxu0 0
    %510 = vmatprep.subr.bf16.mxu0 0
    %511 = vmatpush1.bf16.msra.mxu0 0
    %512 = vmatprep.subr.bf16.mxu0 0
    %513 = vmatpush1.bf16.msra.mxu0 0
    %514 = vmatprep.subr.bf16.mxu0 0
    %515 = vmatpush1.bf16.msra.mxu0 0
    %516 = vmatprep.subr.bf16.mxu0 0
    %517 = vmatpush1.bf16.msra.mxu0 0
    %518 = vmatprep.subr.bf16.mxu0 0
    %519 = vmatpush1.bf16.msra.mxu0 0
    %520 = vmatprep.subr.bf16.mxu0 0
    %521 = vmatpush1.bf16.msra.mxu0 0
    %522 = vmatprep.subr.bf16.mxu0 0
    %523 = vmatpush1.bf16.msra.mxu0 0
    %524 = vmatprep.subr.bf16.mxu0 0
    %525 = vmatpush1.bf16.msra.mxu0 0
    %526 = vmatprep.subr.bf16.mxu0 0
    %527 = vmatpush1.bf16.msra.mxu0 0
    %528 = vmatprep.subr.bf16.mxu0 0
    %529 = vmatpush1.bf16.msra.mxu0 0
    %530 = vmatprep.subr.bf16.mxu0 0
    %531 = vmatpush1.bf16.msra.mxu0 0
    %532 = vmatprep.subr.bf16.mxu0 0
    %533 = vmatpush1.bf16.msra.mxu0 0
    %534 = vmatprep.subr.bf16.mxu0 0
    %535 = vmatpush1.bf16.msra.mxu0 0
    %536 = vmatprep.subr.bf16.mxu0 0
    %537 = vmatpush1.bf16.msra.mxu0 0
    %538 = vmatprep.mubr.bf16.mxu0 0
    %539 = vmatmul.mubr.bf16.gmra.mrb[0].mxu0 %v500
    %v540 = vpop.f32.mrb[0].mxu0
    %v541 = vadd.f32 0.0, %v540
    %v542 = vpop.f32.mrb[0].mxu0
    %v543 = vpop.f32.mrb[0].mxu0
    %v544 = vpop.f32.mrb[0].mxu0
    %545 = vdwg.mxu0
    %v547 = vsel %vm474, %v498, 0
    %v550 = vsel %vm502, %v378, 0
    %552 = vmatprep.subr.bf16.mxu0 0
    %553 = vmatpush1.bf16.msra.mxu0 %v550
    %554 = vmatprep.subr.bf16.mxu0 0
    %555 = vmatpush1.bf16.msra.mxu0 0
    %556 = vmatprep.subr.bf16.mxu0 0
    %557 = vmatpush1.bf16.msra.mxu0 0
    %558 = vmatprep.subr.bf16.mxu0 0
    %559 = vmatpush1.bf16.msra.mxu0 0
    %560 = vmatprep.subr.bf16.mxu0 0
    %561 = vmatpush1.bf16.msra.mxu0 0
    %562 = vmatprep.subr.bf16.mxu0 0
    %563 = vmatpush1.bf16.msra.mxu0 0
    %564 = vmatprep.subr.bf16.mxu0 0
    %565 = vmatpush1.bf16.msra.mxu0 0
    %566 = vmatprep.subr.bf16.mxu0 0
    %567 = vmatpush1.bf16.msra.mxu0 0
    %568 = vmatprep.subr.bf16.mxu0 0
    %569 = vmatpush1.bf16.msra.mxu0 0
    %570 = vmatprep.subr.bf16.mxu0 0
    %571 = vmatpush1.bf16.msra.mxu0 0
    %572 = vmatprep.subr.bf16.mxu0 0
    %573 = vmatpush1.bf16.msra.mxu0 0
    %574 = vmatprep.subr.bf16.mxu0 0
    %575 = vmatpush1.bf16.msra.mxu0 0
    %576 = vmatprep.subr.bf16.mxu0 0
    %577 = vmatpush1.bf16.msra.mxu0 0
    %578 = vmatprep.subr.bf16.mxu0 0
    %579 = vmatpush1.bf16.msra.mxu0 0
    %580 = vmatprep.subr.bf16.mxu0 0
    %581 = vmatpush1.bf16.msra.mxu0 0
    %582 = vmatprep.subr.bf16.mxu0 0
    %583 = vmatpush1.bf16.msra.mxu0 0
    %584 = vmatprep.mubr.bf16.mxu0 0
    %585 = vmatmul.mubr.bf16.gmra.mrb[0].mxu0 %v547
    %v586 = vpop.f32.mrb[0].mxu0
    %v587 = vadd.f32 0.0, %v586
    %v588 = vpop.f32.mrb[0].mxu0
    %v589 = vpop.f32.mrb[0].mxu0
    %v590 = vpop.f32.mrb[0].mxu0
    %591 = vdwg.mxu0
    %593 = vrot.lane.b32.xlu0 %v373, 64
    %v594 = vpop.permute.xlu0 %593
    %596 = vrot.lane.b32.xlu0 %v375, 64
    %v597 = vpop.permute.xlu0 %596
    %v599 = vsel %vm379, %v594, 0
    %v602 = vsel %vm379, %v597, 0
    %604 = vmatprep.subr.bf16.mxu0 0
    %605 = vmatpush1.bf16.xpose.msra.mxu0 %v602
    %606 = vmatprep.subr.bf16.mxu0 0
    %607 = vmatpush1.bf16.xpose.msra.mxu0 0
    %608 = vmatprep.subr.bf16.mxu0 0
    %609 = vmatpush1.bf16.xpose.msra.mxu0 0
    %610 = vmatprep.subr.bf16.mxu0 0
    %611 = vmatpush1.bf16.xpose.msra.mxu0 0
    %612 = vmatprep.subr.bf16.mxu0 0
    %613 = vmatpush1.bf16.xpose.msra.mxu0 0
    %614 = vmatprep.subr.bf16.mxu0 0
    %615 = vmatpush1.bf16.xpose.msra.mxu0 0
    %616 = vmatprep.subr.bf16.mxu0 0
    %617 = vmatpush1.bf16.xpose.msra.mxu0 0
    %618 = vmatprep.subr.bf16.mxu0 0
    %619 = vmatpush1.bf16.xpose.msra.mxu0 0
    %620 = vmatprep.subr.bf16.mxu0 0
    %621 = vmatpush1.bf16.xpose.msra.mxu0 0
    %622 = vmatprep.subr.bf16.mxu0 0
    %623 = vmatpush1.bf16.xpose.msra.mxu0 0
    %624 = vmatprep.subr.bf16.mxu0 0
    %625 = vmatpush1.bf16.xpose.msra.mxu0 0
    %626 = vmatprep.subr.bf16.mxu0 0
    %627 = vmatpush1.bf16.xpose.msra.mxu0 0
    %628 = vmatprep.subr.bf16.mxu0 0
    %629 = vmatpush1.bf16.xpose.msra.mxu0 0
    %630 = vmatprep.subr.bf16.mxu0 0
    %631 = vmatpush1.bf16.xpose.msra.mxu0 0
    %632 = vmatprep.subr.bf16.mxu0 0
    %633 = vmatpush1.bf16.xpose.msra.mxu0 0
    %634 = vmatprep.subr.bf16.mxu0 0
    %635 = vmatpush1.bf16.xpose.msra.mxu0 0
    %636 = vmatprep.mubr.bf16.mxu0 0
    %637 = vmatmul.mubr.bf16.gmra.mrb[0].mxu0 %v599
    %v638 = vpop.f32.mrb[0].mxu0
    %v639 = vadd.f32 0.0, %v638
    %v640 = vpop.f32.mrb[0].mxu0
    %v641 = vpop.f32.mrb[0].mxu0
    %v642 = vpop.f32.mrb[0].mxu0
    %643 = vdwg.mxu0
    %645 = vrot.lane.b32.xlu0 %v374, 64
    %v646 = vpop.permute.xlu0 %645
    %648 = vrot.lane.b32.xlu0 %v376, 64
    %v649 = vpop.permute.xlu0 %648
    %v651 = vsel %vm379, %v646, 0
    %v654 = vsel %vm379, %v649, 0
    %656 = vmatprep.subr.bf16.mxu0 0
    %657 = vmatpush1.bf16.xpose.msra.mxu0 %v654
    %658 = vmatprep.subr.bf16.mxu0 0
    %659 = vmatpush1.bf16.xpose.msra.mxu0 0
    %660 = vmatprep.subr.bf16.mxu0 0
    %661 = vmatpush1.bf16.xpose.msra.mxu0 0
    %662 = vmatprep.subr.bf16.mxu0 0
    %663 = vmatpush1.bf16.xpose.msra.mxu0 0
    %664 = vmatprep.subr.bf16.mxu0 0
    %665 = vmatpush1.bf16.xpose.msra.mxu0 0
    %666 = vmatprep.subr.bf16.mxu0 0
    %667 = vmatpush1.bf16.xpose.msra.mxu0 0
    %668 = vmatprep.subr.bf16.mxu0 0
    %669 = vmatpush1.bf16.xpose.msra.mxu0 0
    %670 = vmatprep.subr.bf16.mxu0 0
    %671 = vmatpush1.bf16.xpose.msra.mxu0 0
    %672 = vmatprep.subr.bf16.mxu0 0
    %673 = vmatpush1.bf16.xpose.msra.mxu0 0
    %674 = vmatprep.subr.bf16.mxu0 0
    %675 = vmatpush1.bf16.xpose.msra.mxu0 0
    %676 = vmatprep.subr.bf16.mxu0 0
    %677 = vmatpush1.bf16.xpose.msra.mxu0 0
    %678 = vmatprep.subr.bf16.mxu0 0
    %679 = vmatpush1.bf16.xpose.msra.mxu0 0
    %680 = vmatprep.subr.bf16.mxu0 0
    %681 = vmatpush1.bf16.xpose.msra.mxu0 0
    %682 = vmatprep.subr.bf16.mxu0 0
    %683 = vmatpush1.bf16.xpose.msra.mxu0 0
    %684 = vmatprep.subr.bf16.mxu0 0
    %685 = vmatpush1.bf16.xpose.msra.mxu0 0
    %686 = vmatprep.subr.bf16.mxu0 0
    %687 = vmatpush1.bf16.xpose.msra.mxu0 0
    %688 = vmatprep.mubr.bf16.mxu0 0
    %689 = vmatmul.mubr.bf16.gmra.mrb[0].mxu0 %v651
    %v690 = vpop.f32.mrb[0].mxu0
    %v691 = vadd.f32 0.0, %v690
    %v692 = vpop.f32.mrb[0].mxu0
    %v693 = vpop.f32.mrb[0].mxu0
    %v694 = vpop.f32.mrb[0].mxu0
    %695 = vdwg.mxu0
    %v696 = vmul.f32 %v639, 0.125
    %v697 = vmul.f32 %v691, 0.125
    %v698 = vsel %vm474, %v696, -inf
    %699 = vmax.xlane.f32.xlu0 %v698
    %v700 = vpop.xlane.xlu0 %699
    %v701 = vsel %vm474, %v697, -inf
    %702 = vmax.xlane.f32.xlu0 %v701
    %v703 = vpop.xlane.xlu0 %702
    %v704 = vsub.f32 %v696, %v700
    %v705 = vsub.f32 %v697, %v703
    %v706 = vmul.f32 %v704, 1.442695
    %v707 = vpow.pop %v706
    %v708 = vmul.f32 %v705, 1.442695
    %v709 = vpow.pop %v708
    %v710 = vsel %vm474, %v707, 0.0
    %711 = vadd.xlane.f32.xlu0 %v710
    %v712 = vpop.xlane.xlu0 %711
    %v713 = vsel %vm474, %v709, 0.0
    %714 = vadd.xlane.f32.xlu0 %v713
    %v715 = vpop.xlane.xlu0 %714
    %v716 = vrcp.pop %v712
    %v717 = vrcp.pop %v715
    %v718 = vmul.f32 %v707, %v716
    %v719 = vmul.f32 %v709, %v717
    %v720 = vpack.c.bf16 %v718, %v718
    %v721 = vpack.c.bf16 %v719, %v719
    %723 = vrot.lane.b32.xlu0 %v377, 64
    %v724 = vpop.permute.xlu0 %723
    %v726 = vsel %vm474, %v720, 0
    %v729 = vsel %vm502, %v724, 0
    %731 = vmatprep.subr.bf16.mxu0 0
    %732 = vmatpush1.bf16.msra.mxu0 %v729
    %733 = vmatprep.subr.bf16.mxu0 0
    %734 = vmatpush1.bf16.msra.mxu0 0
    %735 = vmatprep.subr.bf16.mxu0 0
    %736 = vmatpush1.bf16.msra.mxu0 0
    %737 = vmatprep.subr.bf16.mxu0 0
    %738 = vmatpush1.bf16.msra.mxu0 0
    %739 = vmatprep.subr.bf16.mxu0 0
    %740 = vmatpush1.bf16.msra.mxu0 0
    %741 = vmatprep.subr.bf16.mxu0 0
    %742 = vmatpush1.bf16.msra.mxu0 0
    %743 = vmatprep.subr.bf16.mxu0 0
    %744 = vmatpush1.bf16.msra.mxu0 0
    %745 = vmatprep.subr.bf16.mxu0 0
    %746 = vmatpush1.bf16.msra.mxu0 0
    %747 = vmatprep.subr.bf16.mxu0 0
    %748 = vmatpush1.bf16.msra.mxu0 0
    %749 = vmatprep.subr.bf16.mxu0 0
    %750 = vmatpush1.bf16.msra.mxu0 0
    %751 = vmatprep.subr.bf16.mxu0 0
    %752 = vmatpush1.bf16.msra.mxu0 0
    %753 = vmatprep.subr.bf16.mxu0 0
    %754 = vmatpush1.bf16.msra.mxu0 0
    %755 = vmatprep.subr.bf16.mxu0 0
    %756 = vmatpush1.bf16.msra.mxu0 0
    %757 = vmatprep.subr.bf16.mxu0 0
    %758 = vmatpush1.bf16.msra.mxu0 0
    %759 = vmatprep.subr.bf16.mxu0 0
    %760 = vmatpush1.bf16.msra.mxu0 0
    %761 = vmatprep.subr.bf16.mxu0 0
    %762 = vmatpush1.bf16.msra.mxu0 0
    %763 = vmatprep.mubr.bf16.mxu0 0
    %764 = vmatmul.mubr.bf16.gmra.mrb[0].mxu0 %v726
    %v765 = vpop.f32.mrb[0].mxu0
    %v766 = vadd.f32 0.0, %v765
    %v767 = vpop.f32.mrb[0].mxu0
    %v768 = vpop.f32.mrb[0].mxu0
    %v769 = vpop.f32.mrb[0].mxu0
    %770 = vdwg.mxu0
    %772 = vrot.lane.b32.xlu0 %v378, 64
    %v773 = vpop.permute.xlu0 %772
    %v775 = vsel %vm474, %v721, 0
    %v778 = vsel %vm502, %v773, 0
    %780 = vmatprep.subr.bf16.mxu0 0
    %781 = vmatpush1.bf16.msra.mxu0 %v778
    %782 = vmatprep.subr.bf16.mxu0 0
    %783 = vmatpush1.bf16.msra.mxu0 0
    %784 = vmatprep.subr.bf16.mxu0 0
    %785 = vmatpush1.bf16.msra.mxu0 0
    %786 = vmatprep.subr.bf16.mxu0 0
    %787 = vmatpush1.bf16.msra.mxu0 0
    %788 = vmatprep.subr.bf16.mxu0 0
    %789 = vmatpush1.bf16.msra.mxu0 0
    %790 = vmatprep.subr.bf16.mxu0 0
    %791 = vmatpush1.bf16.msra.mxu0 0
    %792 = vmatprep.subr.bf16.mxu0 0
    %793 = vmatpush1.bf16.msra.mxu0 0
    %794 = vmatprep.subr.bf16.mxu0 0
    %795 = vmatpush1.bf16.msra.mxu0 0
    %796 = vmatprep.subr.bf16.mxu0 0
    %797 = vmatpush1.bf16.msra.mxu0 0
    %798 = vmatprep.subr.bf16.mxu0 0
    %799 = vmatpush1.bf16.msra.mxu0 0
    %800 = vmatprep.subr.bf16.mxu0 0
    %801 = vmatpush1.bf16.msra.mxu0 0
    %802 = vmatprep.subr.bf16.mxu0 0
    %803 = vmatpush1.bf16.msra.mxu0 0
    %804 = vmatprep.subr.bf16.mxu0 0
    %805 = vmatpush1.bf16.msra.mxu0 0
    %806 = vmatprep.subr.bf16.mxu0 0
    %807 = vmatpush1.bf16.msra.mxu0 0
    %808 = vmatprep.subr.bf16.mxu0 0
    %809 = vmatpush1.bf16.msra.mxu0 0
    %810 = vmatprep.subr.bf16.mxu0 0
    %811 = vmatpush1.bf16.msra.mxu0 0
    %812 = vmatprep.mubr.bf16.mxu0 0
    %813 = vmatmul.mubr.bf16.gmra.mrb[0].mxu0 %v775
    %v814 = vpop.f32.mrb[0].mxu0
    %v815 = vadd.f32 0.0, %v814
    %v816 = vpop.f32.mrb[0].mxu0
    %v817 = vpop.f32.mrb[0].mxu0
    %v818 = vpop.f32.mrb[0].mxu0
    %819 = vdwg.mxu0
    %822 = vrot.lane.b32.xlu0 %v766, 64
    %v823 = vpop.permute.xlu0 %822
    %824 = vrot.lane.b32.xlu0 %v815, 64
    %v825 = vpop.permute.xlu0 %824
    %v828 = vsel %vm379, %v541, %v823
    %v829 = vsel %vm379, %v587, %v825
    %v830 = vpack.c.bf16 %v829, %v828
    %v831 = vld [vmem:[#allocation4] sm:$0xf]
    %v832 = vld [vmem:[#allocation4 + $0x4] sm:$0xf]
    %v833 = vld [vmem:[#allocation4 + $0x8] sm:$0xf]
    %v834 = vld [vmem:[#allocation4 + $0xc] sm:$0xf]
    %v835 = vld [vmem:[#allocation4 + $0x10] sm:$0xf]
    %v836 = vld [vmem:[#allocation4 + $0x14] sm:$0xf]
    %v837 = vld [vmem:[#allocation4 + $0x18] sm:$0xf]
    %v838 = vld [vmem:[#allocation4 + $0x1c] sm:$0xf]
    %v839 = vld [vmem:[#allocation4 + $0x20] sm:$0xf]
    %v840 = vld [vmem:[#allocation4 + $0x24] sm:$0xf]
    %v841 = vld [vmem:[#allocation4 + $0x28] sm:$0xf]
    %v842 = vld [vmem:[#allocation4 + $0x2c] sm:$0xf]
    %v843 = vld [vmem:[#allocation4 + $0x30] sm:$0xf]
    %v844 = vld [vmem:[#allocation4 + $0x34] sm:$0xf]
    %v845 = vld [vmem:[#allocation4 + $0x38] sm:$0xf]
    %v846 = vld [vmem:[#allocation4 + $0x3c] sm:$0xf]
    %v847 = vld [vmem:[%s1 + $0x3] ss:$0 sm:$0xff]
    %v864 = vunpack.c.l.b16 %v831
    %v865 = vunpack.c.l.b16 %v832
    %v866 = vunpack.c.l.b16 %v833
    %v867 = vunpack.c.l.b16 %v834
    %v868 = vunpack.c.l.b16 %v835
    %v869 = vunpack.c.l.b16 %v836
    %v870 = vunpack.c.l.b16 %v837
    %v871 = vunpack.c.l.b16 %v838
    %v872 = vunpack.c.l.b16 %v839
    %v873 = vunpack.c.l.b16 %v840
    %v874 = vunpack.c.l.b16 %v841
    %v875 = vunpack.c.l.b16 %v842
    %v876 = vunpack.c.l.b16 %v843
    %v877 = vunpack.c.l.b16 %v844
    %v878 = vunpack.c.l.b16 %v845
    %v879 = vunpack.c.l.b16 %v846
    %v880 = vpack.c.b16 %v865, %v864
    %v881 = vpack.c.b16 %v867, %v866
    %v882 = vpack.c.b16 %v869, %v868
    %v883 = vpack.c.b16 %v871, %v870
    %v884 = vpack.c.b16 %v873, %v872
    %v885 = vpack.c.b16 %v875, %v874
    %v886 = vpack.c.b16 %v877, %v876
    %v887 = vpack.c.b16 %v879, %v878
    %896 = vmatprep.subr.bf16.mxu0 0
    %897 = vmatpush1.bf16.msra.mxu0 %v880
    %898 = vmatprep.subr.bf16.mxu0 0
    %899 = vmatpush1.bf16.msra.mxu0 %v881
    %900 = vmatprep.subr.bf16.mxu0 0
    %901 = vmatpush1.bf16.msra.mxu0 %v882
    %902 = vmatprep.subr.bf16.mxu0 0
    %903 = vmatpush1.bf16.msra.mxu0 %v883
    %904 = vmatprep.subr.bf16.mxu0 0
    %905 = vmatpush1.bf16.msra.mxu0 %v884
    %906 = vmatprep.subr.bf16.mxu0 0
    %907 = vmatpush1.bf16.msra.mxu0 %v885
    %908 = vmatprep.subr.bf16.mxu0 0
    %909 = vmatpush1.bf16.msra.mxu0 %v886
    %910 = vmatprep.subr.bf16.mxu0 0
    %911 = vmatpush1.bf16.msra.mxu0 %v887
    %912 = vmatprep.subr.bf16.mxu0 0
    %913 = vmatpush1.bf16.msra.mxu0 0
    %914 = vmatprep.subr.bf16.mxu0 0
    %915 = vmatpush1.bf16.msra.mxu0 0
    %916 = vmatprep.subr.bf16.mxu0 0
    %917 = vmatpush1.bf16.msra.mxu0 0
    %918 = vmatprep.subr.bf16.mxu0 0
    %919 = vmatpush1.bf16.msra.mxu0 0
    %920 = vmatprep.subr.bf16.mxu0 0
    %921 = vmatpush1.bf16.msra.mxu0 0
    %922 = vmatprep.subr.bf16.mxu0 0
    %923 = vmatpush1.bf16.msra.mxu0 0
    %924 = vmatprep.subr.bf16.mxu0 0
    %925 = vmatpush1.bf16.msra.mxu0 0
    %926 = vmatprep.subr.bf16.mxu0 0
    %927 = vmatpush1.bf16.msra.mxu0 0
    %928 = vmatprep.mubr.bf16.mxu0 0
    %929 = vmatmul.mubr.bf16.gmra.mrb[0].mxu0 %v830
    %v930 = vpop.f32.mrb[0].mxu0
    %v931 = vadd.f32 %v847, %v930
    %v932 = vpop.f32.mrb[0].mxu0
    %v933 = vpop.f32.mrb[0].mxu0
    %v934 = vadd.f32 %v847, %v933
    %v935 = vpop.f32.mrb[0].mxu0
    %936 = vdwg.mxu0
    %v937 = vadd.f32 %v108, %v931
    %v938 = vadd.f32 %v109, %v934
    %v939 = vld [vmem:[%s1 + $0x4] ss:$0 sm:$0xff]
    %v940 = vld [vmem:[%s1 + $0x5] ss:$0 sm:$0xff]
    %941 = vadd.xlane.f32.xlu0 %v937
    %v942 = vpop.xlane.xlu0 %941
    %943 = vadd.xlane.f32.xlu0 %v938
    %v944 = vpop.xlane.xlu0 %943
    %v945 = vmul.f32 %v942, %v87
    %v946 = vmul.f32 %v944, %v87
    %v947 = vsub.f32 %v937, %v945
    %v948 = vsub.f32 %v938, %v946
    %v949 = vmul.f32 %v947, %v947
    %v950 = vmul.f32 %v948, %v948
    %951 = vadd.xlane.f32.xlu0 %v949
    %v952 = vpop.xlane.xlu0 %951
    %953 = vadd.xlane.f32.xlu0 %v950
    %v954 = vpop.xlane.xlu0 %953
    %v955 = vmul.f32 %v952, %v87
    %v956 = vmul.f32 %v954, %v87
    %v957 = vadd.f32 %v955, 1e-12
    %v958 = vadd.f32 %v956, 1e-12
    %v959 = vrsqrt.pop %v957
    %v960 = vrsqrt.pop %v958
    %v961 = vmul.f32 %v947, %v959
    %v962 = vmul.f32 %v948, %v960
    %v963 = vmul.f32 %v961, %v939
    %v964 = vmul.f32 %v962, %v939
    %v965 = vadd.f32 %v963, %v940
    %v966 = vadd.f32 %v964, %v940
    %v967 = vpack.c.bf16 %v966, %v965
    %v968 = vld [vmem:[#allocation8] sm:$0xff]
    %v969 = vld [vmem:[#allocation8 + $0x8] sm:$0xff]
    %v970 = vld [vmem:[#allocation8 + $0x10] sm:$0xff]
    %v971 = vld [vmem:[#allocation8 + $0x18] sm:$0xff]
    %v972 = vld [vmem:[#allocation8 + $0x20] sm:$0xff]
    %v973 = vld [vmem:[#allocation8 + $0x28] sm:$0xff]
    %v974 = vld [vmem:[#allocation8 + $0x30] sm:$0xff]
    %v975 = vld [vmem:[#allocation8 + $0x38] sm:$0xff]
    %v976 = vld [vmem:[#allocation8 + $0x40] sm:$0xff]
    %v977 = vld [vmem:[#allocation8 + $0x48] sm:$0xff]
    %v978 = vld [vmem:[#allocation8 + $0x50] sm:$0xff]
    %v979 = vld [vmem:[#allocation8 + $0x58] sm:$0xff]
    %v980 = vld [vmem:[#allocation8 + $0x60] sm:$0xff]
    %v981 = vld [vmem:[#allocation8 + $0x68] sm:$0xff]
    %v982 = vld [vmem:[#allocation8 + $0x70] sm:$0xff]
    %v983 = vld [vmem:[#allocation8 + $0x78] sm:$0xff]
    %v984 = vld [vmem:[#allocation8 + $0x80] sm:$0xff]
    %v985 = vld [vmem:[#allocation8 + $0x88] sm:$0xff]
    %v986 = vld [vmem:[#allocation8 + $0x90] sm:$0xff]
    %v987 = vld [vmem:[#allocation8 + $0x98] sm:$0xff]
    %v988 = vld [vmem:[#allocation8 + $0xa0] sm:$0xff]
    %v989 = vld [vmem:[#allocation8 + $0xa8] sm:$0xff]
    %v990 = vld [vmem:[#allocation8 + $0xb0] sm:$0xff]
    %v991 = vld [vmem:[#allocation8 + $0xb8] sm:$0xff]
    %v992 = vld [vmem:[#allocation8 + $0xc0] sm:$0xff]
    %v993 = vld [vmem:[#allocation8 + $0xc8] sm:$0xff]
    %v994 = vld [vmem:[#allocation8 + $0xd0] sm:$0xff]
    %v995 = vld [vmem:[#allocation8 + $0xd8] sm:$0xff]
    %v996 = vld [vmem:[#allocation8 + $0xe0] sm:$0xff]
    %v997 = vld [vmem:[#allocation8 + $0xe8] sm:$0xff]
    %v998 = vld [vmem:[#allocation8 + $0xf0] sm:$0xff]
    %v999 = vld [vmem:[#allocation8 + $0xf8] sm:$0xff]
    %s1000 = scalar_lea.vmem %s1, 6
    %v1001 = vld [vmem:[%s1000] ss:$8 sm:$0xf]
    %v1003 = vlaneseq
    %v1004 = vshrl.u32 %v1003, 7
    %v1005 = vsub.s32 0, %v1004
    %v1006 = vrot.slane %v1001, %v1005
    %v1007 = vlaneseq
    %v1008 = vshrl.u32 %v1007, 7
    %v1009 = vsub.s32 1, %v1008
    %v1010 = vrot.slane %v1001, %v1009
    %v1011 = vlaneseq
    %v1012 = vshrl.u32 %v1011, 7
    %v1013 = vsub.s32 2, %v1012
    %v1014 = vrot.slane %v1001, %v1013
    %v1015 = vlaneseq
    %v1016 = vshrl.u32 %v1015, 7
    %v1017 = vsub.s32 3, %v1016
    %v1018 = vrot.slane %v1001, %v1017
    %v1055 = vunpack.c.l.b16 %v968
    %v1056 = vunpack.c.h.b16 %v968
    %v1057 = vunpack.c.l.b16 %v969
    %v1058 = vunpack.c.h.b16 %v969
    %v1059 = vunpack.c.l.b16 %v970
    %v1060 = vunpack.c.h.b16 %v970
    %v1061 = vunpack.c.l.b16 %v971
    %v1062 = vunpack.c.h.b16 %v971
    %v1063 = vunpack.c.l.b16 %v972
    %v1064 = vunpack.c.h.b16 %v972
    %v1065 = vunpack.c.l.b16 %v973
    %v1066 = vunpack.c.h.b16 %v973
    %v1067 = vunpack.c.l.b16 %v974
    %v1068 = vunpack.c.h.b16 %v974
    %v1069 = vunpack.c.l.b16 %v975
    %v1070 = vunpack.c.h.b16 %v975
    %v1071 = vunpack.c.l.b16 %v976
    %v1072 = vunpack.c.h.b16 %v976
    %v1073 = vunpack.c.l.b16 %v977
    %v1074 = vunpack.c.h.b16 %v977
    %v1075 = vunpack.c.l.b16 %v978
    %v1076 = vunpack.c.h.b16 %v978
    %v1077 = vunpack.c.l.b16 %v979
    %v1078 = vunpack.c.h.b16 %v979
    %v1079 = vunpack.c.l.b16 %v980
    %v1080 = vunpack.c.h.b16 %v980
    %v1081 = vunpack.c.l.b16 %v981
    %v1082 = vunpack.c.h.b16 %v981
    %v1083 = vunpack.c.l.b16 %v982
    %v1084 = vunpack.c.h.b16 %v982
    %v1085 = vunpack.c.l.b16 %v983
    %v1086 = vunpack.c.h.b16 %v983
    %v1087 = vunpack.c.l.b16 %v984
    %v1088 = vunpack.c.h.b16 %v984
    %v1089 = vunpack.c.l.b16 %v985
    %v1090 = vunpack.c.h.b16 %v985
    %v1091 = vunpack.c.l.b16 %v986
    %v1092 = vunpack.c.h.b16 %v986
    %v1093 = vunpack.c.l.b16 %v987
    %v1094 = vunpack.c.h.b16 %v987
    %v1095 = vunpack.c.l.b16 %v988
    %v1096 = vunpack.c.h.b16 %v988
    %v1097 = vunpack.c.l.b16 %v989
    %v1098 = vunpack.c.h.b16 %v989
    %v1099 = vunpack.c.l.b16 %v990
    %v1100 = vunpack.c.h.b16 %v990
    %v1101 = vunpack.c.l.b16 %v991
    %v1102 = vunpack.c.h.b16 %v991
    %v1103 = vunpack.c.l.b16 %v992
    %v1104 = vunpack.c.h.b16 %v992
    %v1105 = vunpack.c.l.b16 %v993
    %v1106 = vunpack.c.h.b16 %v993
    %v1107 = vunpack.c.l.b16 %v994
    %v1108 = vunpack.c.h.b16 %v994
    %v1109 = vunpack.c.l.b16 %v995
    %v1110 = vunpack.c.h.b16 %v995
    %v1111 = vunpack.c.l.b16 %v996
    %v1112 = vunpack.c.h.b16 %v996
    %v1113 = vunpack.c.l.b16 %v997
    %v1114 = vunpack.c.h.b16 %v997
    %v1115 = vunpack.c.l.b16 %v998
    %v1116 = vunpack.c.h.b16 %v998
    %v1117 = vunpack.c.l.b16 %v999
    %v1118 = vunpack.c.h.b16 %v999
    %v1119 = vpack.c.b16 %v1059, %v1055
    %v1120 = vpack.c.b16 %v1060, %v1056
    %v1121 = vpack.c.b16 %v1061, %v1057
    %v1122 = vpack.c.b16 %v1062, %v1058
    %v1123 = vpack.c.b16 %v1067, %v1063
    %v1124 = vpack.c.b16 %v1068, %v1064
    %v1125 = vpack.c.b16 %v1069, %v1065
    %v1126 = vpack.c.b16 %v1070, %v1066
    %v1127 = vpack.c.b16 %v1075, %v1071
    %v1128 = vpack.c.b16 %v1076, %v1072
    %v1129 = vpack.c.b16 %v1077, %v1073
    %v1130 = vpack.c.b16 %v1078, %v1074
    %v1131 = vpack.c.b16 %v1083, %v1079
    %v1132 = vpack.c.b16 %v1084, %v1080
    %v1133 = vpack.c.b16 %v1085, %v1081
    %v1134 = vpack.c.b16 %v1086, %v1082
    %v1135 = vpack.c.b16 %v1091, %v1087
    %v1136 = vpack.c.b16 %v1092, %v1088
    %v1137 = vpack.c.b16 %v1093, %v1089
    %v1138 = vpack.c.b16 %v1094, %v1090
    %v1139 = vpack.c.b16 %v1099, %v1095
    %v1140 = vpack.c.b16 %v1100, %v1096
    %v1141 = vpack.c.b16 %v1101, %v1097
    %v1142 = vpack.c.b16 %v1102, %v1098
    %v1143 = vpack.c.b16 %v1107, %v1103
    %v1144 = vpack.c.b16 %v1108, %v1104
    %v1145 = vpack.c.b16 %v1109, %v1105
    %v1146 = vpack.c.b16 %v1110, %v1106
    %v1147 = vpack.c.b16 %v1115, %v1111
    %v1148 = vpack.c.b16 %v1116, %v1112
    %v1149 = vpack.c.b16 %v1117, %v1113
    %v1150 = vpack.c.b16 %v1118, %v1114
    %1183 = vmatprep.subr.bf16.mxu0 %v1120
    %1184 = vmatpush1.bf16.msra.mxu0 %v1119
    %1185 = vmatprep.subr.bf16.mxu0 %v1124
    %1186 = vmatpush1.bf16.msra.mxu0 %v1123
    %1187 = vmatprep.subr.bf16.mxu0 %v1128
    %1188 = vmatpush1.bf16.msra.mxu0 %v1127
    %1189 = vmatprep.subr.bf16.mxu0 %v1132
    %1190 = vmatpush1.bf16.msra.mxu0 %v1131
    %1191 = vmatprep.subr.bf16.mxu0 %v1136
    %1192 = vmatpush1.bf16.msra.mxu0 %v1135
    %1193 = vmatprep.subr.bf16.mxu0 %v1140
    %1194 = vmatpush1.bf16.msra.mxu0 %v1139
    %1195 = vmatprep.subr.bf16.mxu0 %v1144
    %1196 = vmatpush1.bf16.msra.mxu0 %v1143
    %1197 = vmatprep.subr.bf16.mxu0 %v1148
    %1198 = vmatpush1.bf16.msra.mxu0 %v1147
    %1199 = vmatprep.subr.bf16.mxu0 0
    %1200 = vmatpush1.bf16.msra.mxu0 0
    %1201 = vmatprep.subr.bf16.mxu0 0
    %1202 = vmatpush1.bf16.msra.mxu0 0
    %1203 = vmatprep.subr.bf16.mxu0 0
    %1204 = vmatpush1.bf16.msra.mxu0 0
    %1205 = vmatprep.subr.bf16.mxu0 0
    %1206 = vmatpush1.bf16.msra.mxu0 0
    %1207 = vmatprep.subr.bf16.mxu0 0
    %1208 = vmatpush1.bf16.msra.mxu0 0
    %1209 = vmatprep.subr.bf16.mxu0 0
    %1210 = vmatpush1.bf16.msra.mxu0 0
    %1211 = vmatprep.subr.bf16.mxu0 0
    %1212 = vmatpush1.bf16.msra.mxu0 0
    %1213 = vmatprep.subr.bf16.mxu0 0
    %1214 = vmatpush1.bf16.msra.mxu0 0
    %1215 = vmatprep.mubr.bf16.mxu0 0
    %1216 = vmatmul.mubr.bf16.gmra.mrb[0].mxu0 %v967
    %v1217 = vpop.f32.mrb[0].mxu0
    %v1218 = vadd.f32 %v1006, %v1217
    %v1219 = vpop.f32.mrb[0].mxu0
    %v1220 = vadd.f32 %v1010, %v1219
    %v1221 = vpop.f32.mrb[0].mxu0
    %v1222 = vadd.f32 %v1006, %v1221
    %v1223 = vpop.f32.mrb[0].mxu0
    %v1224 = vadd.f32 %v1010, %v1223
    %1225 = vdwg.mxu0
    %1226 = vmatprep.subr.bf16.mxu0 %v1122
    %1227 = vmatpush1.bf16.msra.mxu0 %v1121
    %1228 = vmatprep.subr.bf16.mxu0 %v1126
    %1229 = vmatpush1.bf16.msra.mxu0 %v1125
    %1230 = vmatprep.subr.bf16.mxu0 %v1130
    %1231 = vmatpush1.bf16.msra.mxu0 %v1129
    %1232 = vmatprep.subr.bf16.mxu0 %v1134
    %1233 = vmatpush1.bf16.msra.mxu0 %v1133
    %1234 = vmatprep.subr.bf16.mxu0 %v1138
    %1235 = vmatpush1.bf16.msra.mxu0 %v1137
    %1236 = vmatprep.subr.bf16.mxu0 %v1142
    %1237 = vmatpush1.bf16.msra.mxu0 %v1141
    %1238 = vmatprep.subr.bf16.mxu0 %v1146
    %1239 = vmatpush1.bf16.msra.mxu0 %v1145
    %1240 = vmatprep.subr.bf16.mxu0 %v1150
    %1241 = vmatpush1.bf16.msra.mxu0 %v1149
    %1242 = vmatprep.subr.bf16.mxu0 0
    %1243 = vmatpush1.bf16.msra.mxu0 0
    %1244 = vmatprep.subr.bf16.mxu0 0
    %1245 = vmatpush1.bf16.msra.mxu0 0
    %1246 = vmatprep.subr.bf16.mxu0 0
    %1247 = vmatpush1.bf16.msra.mxu0 0
    %1248 = vmatprep.subr.bf16.mxu0 0
    %1249 = vmatpush1.bf16.msra.mxu0 0
    %1250 = vmatprep.subr.bf16.mxu0 0
    %1251 = vmatpush1.bf16.msra.mxu0 0
    %1252 = vmatprep.subr.bf16.mxu0 0
    %1253 = vmatpush1.bf16.msra.mxu0 0
    %1254 = vmatprep.subr.bf16.mxu0 0
    %1255 = vmatpush1.bf16.msra.mxu0 0
    %1256 = vmatprep.subr.bf16.mxu0 0
    %1257 = vmatpush1.bf16.msra.mxu0 0
    %1258 = vmatprep.mubr.bf16.mxu0 0
    %1259 = vmatmul.mubr.bf16.gmra.mrb[0].mxu0 %v967
    %v1260 = vpop.f32.mrb[0].mxu0
    %v1261 = vadd.f32 %v1014, %v1260
    %v1262 = vpop.f32.mrb[0].mxu0
    %v1263 = vadd.f32 %v1018, %v1262
    %v1264 = vpop.f32.mrb[0].mxu0
    %v1265 = vadd.f32 %v1014, %v1264
    %v1266 = vpop.f32.mrb[0].mxu0
    %v1267 = vadd.f32 %v1018, %v1266
    %1268 = vdwg.mxu0
    %v1269 = vmul.f32 %v1218, %v1218
    %v1270 = vmul.f32 %v1220, %v1220
    %v1271 = vmul.f32 %v1261, %v1261
    %v1272 = vmul.f32 %v1263, %v1263
    %v1273 = vmul.f32 %v1222, %v1222
    %v1274 = vmul.f32 %v1224, %v1224
    %v1275 = vmul.f32 %v1265, %v1265
    %v1276 = vmul.f32 %v1267, %v1267
    %v1277 = vmul.f32 %v1218, %v1269
    %v1278 = vmul.f32 %v1220, %v1270
    %v1279 = vmul.f32 %v1261, %v1271
    %v1280 = vmul.f32 %v1263, %v1272
    %v1281 = vmul.f32 %v1222, %v1273
    %v1282 = vmul.f32 %v1224, %v1274
    %v1283 = vmul.f32 %v1265, %v1275
    %v1284 = vmul.f32 %v1267, %v1276
    %v1285 = vmul.f32 %v1277, 0.044715
    %v1286 = vmul.f32 %v1278, 0.044715
    %v1287 = vmul.f32 %v1279, 0.044715
    %v1288 = vmul.f32 %v1280, 0.044715
    %v1289 = vmul.f32 %v1281, 0.044715
    %v1290 = vmul.f32 %v1282, 0.044715
    %v1291 = vmul.f32 %v1283, 0.044715
    %v1292 = vmul.f32 %v1284, 0.044715
    %v1293 = vadd.f32 %v1218, %v1285
    %v1294 = vadd.f32 %v1220, %v1286
    %v1295 = vadd.f32 %v1261, %v1287
    %v1296 = vadd.f32 %v1263, %v1288
    %v1297 = vadd.f32 %v1222, %v1289
    %v1298 = vadd.f32 %v1224, %v1290
    %v1299 = vadd.f32 %v1265, %v1291
    %v1300 = vadd.f32 %v1267, %v1292
    %v1301 = vmul.f32 %v1293, 0.7978846
    %v1302 = vmul.f32 %v1294, 0.7978846
    %v1303 = vmul.f32 %v1295, 0.7978846
    %v1304 = vmul.f32 %v1296, 0.7978846
    %v1305 = vmul.f32 %v1297, 0.7978846
    %v1306 = vmul.f32 %v1298, 0.7978846
    %v1307 = vmul.f32 %v1299, 0.7978846
    %v1308 = vmul.f32 %v1300, 0.7978846
    %v1309 = vtanh.pop %v1301
    %v1310 = vtanh.pop %v1302
    %v1311 = vtanh.pop %v1303
    %v1312 = vtanh.pop %v1304
    %v1313 = vtanh.pop %v1305
    %v1314 = vtanh.pop %v1306
    %v1315 = vtanh.pop %v1307
    %v1316 = vtanh.pop %v1308
    %v1317 = vadd.f32 %v1309, 1.0
    %v1318 = vadd.f32 %v1310, 1.0
    %v1319 = vadd.f32 %v1311, 1.0
    %v1320 = vadd.f32 %v1312, 1.0
    %v1321 = vadd.f32 %v1313, 1.0
    %v1322 = vadd.f32 %v1314, 1.0
    %v1323 = vadd.f32 %v1315, 1.0
    %v1324 = vadd.f32 %v1316, 1.0
    %v1325 = vmul.f32 %v1317, 0.5
    %v1326 = vmul.f32 %v1318, 0.5
    %v1327 = vmul.f32 %v1319, 0.5
    %v1328 = vmul.f32 %v1320, 0.5
    %v1329 = vmul.f32 %v1321, 0.5
    %v1330 = vmul.f32 %v1322, 0.5
    %v1331 = vmul.f32 %v1323, 0.5
    %v1332 = vmul.f32 %v1324, 0.5
    %v1333 = vmul.f32 %v1218, %v1325
    %v1334 = vmul.f32 %v1220, %v1326
    %v1335 = vmul.f32 %v1261, %v1327
    %v1336 = vmul.f32 %v1263, %v1328
    %v1337 = vmul.f32 %v1222, %v1329
    %v1338 = vmul.f32 %v1224, %v1330
    %v1339 = vmul.f32 %v1265, %v1331
    %v1340 = vmul.f32 %v1267, %v1332
    %v1341 = vpack.c.bf16 %v1337, %v1333
    %v1342 = vpack.c.bf16 %v1338, %v1334
    %v1343 = vpack.c.bf16 %v1339, %v1335
    %v1344 = vpack.c.bf16 %v1340, %v1336
    %v1345 = vld [vmem:[#allocation4 + $0x80] sm:$0xf]
    %v1346 = vld [vmem:[#allocation4 + $0x84] sm:$0xf]
    %v1347 = vld [vmem:[#allocation4 + $0x88] sm:$0xf]
    %v1348 = vld [vmem:[#allocation4 + $0x8c] sm:$0xf]
    %v1349 = vld [vmem:[#allocation4 + $0x90] sm:$0xf]
    %v1350 = vld [vmem:[#allocation4 + $0x94] sm:$0xf]
    %v1351 = vld [vmem:[#allocation4 + $0x98] sm:$0xf]
    %v1352 = vld [vmem:[#allocation4 + $0x9c] sm:$0xf]
    %v1353 = vld [vmem:[#allocation4 + $0xa0] sm:$0xf]
    %v1354 = vld [vmem:[#allocation4 + $0xa4] sm:$0xf]
    %v1355 = vld [vmem:[#allocation4 + $0xa8] sm:$0xf]
    %v1356 = vld [vmem:[#allocation4 + $0xac] sm:$0xf]
    %v1357 = vld [vmem:[#allocation4 + $0xb0] sm:$0xf]
    %v1358 = vld [vmem:[#allocation4 + $0xb4] sm:$0xf]
    %v1359 = vld [vmem:[#allocation4 + $0xb8] sm:$0xf]
    %v1360 = vld [vmem:[#allocation4 + $0xbc] sm:$0xf]
    %v1361 = vld [vmem:[#allocation4 + $0xc0] sm:$0xf]
    %v1362 = vld [vmem:[#allocation4 + $0xc4] sm:$0xf]
    %v1363 = vld [vmem:[#allocation4 + $0xc8] sm:$0xf]
    %v1364 = vld [vmem:[#allocation4 + $0xcc] sm:$0xf]
    %v1365 = vld [vmem:[#allocation4 + $0xd0] sm:$0xf]
    %v1366 = vld [vmem:[#allocation4 + $0xd4] sm:$0xf]
    %v1367 = vld [vmem:[#allocation4 + $0xd8] sm:$0xf]
    %v1368 = vld [vmem:[#allocation4 + $0xdc] sm:$0xf]
    %v1369 = vld [vmem:[#allocation4 + $0xe0] sm:$0xf]
    %v1370 = vld [vmem:[#allocation4 + $0xe4] sm:$0xf]
    %v1371 = vld [vmem:[#allocation4 + $0xe8] sm:$0xf]
    %v1372 = vld [vmem:[#allocation4 + $0xec] sm:$0xf]
    %v1373 = vld [vmem:[#allocation4 + $0xf0] sm:$0xf]
    %v1374 = vld [vmem:[#allocation4 + $0xf4] sm:$0xf]
    %v1375 = vld [vmem:[#allocation4 + $0xf8] sm:$0xf]
    %v1376 = vld [vmem:[#allocation4 + $0xfc] sm:$0xf]
    %v1377 = vld [vmem:[#allocation4 + $0x100] sm:$0xf]
    %v1378 = vld [vmem:[#allocation4 + $0x104] sm:$0xf]
    %v1379 = vld [vmem:[#allocation4 + $0x108] sm:$0xf]
    %v1380 = vld [vmem:[#allocation4 + $0x10c] sm:$0xf]
    %v1381 = vld [vmem:[#allocation4 + $0x110] sm:$0xf]
    %v1382 = vld [vmem:[#allocation4 + $0x114] sm:$0xf]
    %v1383 = vld [vmem:[#allocation4 + $0x118] sm:$0xf]
    %v1384 = vld [vmem:[#allocation4 + $0x11c] sm:$0xf]
    %v1385 = vld [vmem:[#allocation4 + $0x120] sm:$0xf]
    %v1386 = vld [vmem:[#allocation4 + $0x124] sm:$0xf]
    %v1387 = vld [vmem:[#allocation4 + $0x128] sm:$0xf]
    %v1388 = vld [vmem:[#allocation4 + $0x12c] sm:$0xf]
    %v1389 = vld [vmem:[#allocation4 + $0x130] sm:$0xf]
    %v1390 = vld [vmem:[#allocation4 + $0x134] sm:$0xf]
    %v1391 = vld [vmem:[#allocation4 + $0x138] sm:$0xf]
    %v1392 = vld [vmem:[#allocation4 + $0x13c] sm:$0xf]
    %v1393 = vld [vmem:[#allocation4 + $0x140] sm:$0xf]
    %v1394 = vld [vmem:[#allocation4 + $0x144] sm:$0xf]
    %v1395 = vld [vmem:[#allocation4 + $0x148] sm:$0xf]
    %v1396 = vld [vmem:[#allocation4 + $0x14c] sm:$0xf]
    %v1397 = vld [vmem:[#allocation4 + $0x150] sm:$0xf]
    %v1398 = vld [vmem:[#allocation4 + $0x154] sm:$0xf]
    %v1399 = vld [vmem:[#allocation4 + $0x158] sm:$0xf]
    %v1400 = vld [vmem:[#allocation4 + $0x15c] sm:$0xf]
    %v1401 = vld [vmem:[#allocation4 + $0x160] sm:$0xf]
    %v1402 = vld [vmem:[#allocation4 + $0x164] sm:$0xf]
    %v1403 = vld [vmem:[#allocation4 + $0x168] sm:$0xf]
    %v1404 = vld [vmem:[#allocation4 + $0x16c] sm:$0xf]
    %v1405 = vld [vmem:[#allocation4 + $0x170] sm:$0xf]
    %v1406 = vld [vmem:[#allocation4 + $0x174] sm:$0xf]
    %v1407 = vld [vmem:[#allocation4 + $0x178] sm:$0xf]
    %v1408 = vld [vmem:[#allocation4 + $0x17c] sm:$0xf]
    %v1409 = vld [vmem:[%s1 + $0x7] ss:$0 sm:$0xff]
    %v1474 = vunpack.c.l.b16 %v1345
    %v1475 = vunpack.c.l.b16 %v1346
    %v1476 = vunpack.c.l.b16 %v1347
    %v1477 = vunpack.c.l.b16 %v1348
    %v1478 = vunpack.c.l.b16 %v1349
    %v1479 = vunpack.c.l.b16 %v1350
    %v1480 = vunpack.c.l.b16 %v1351
    %v1481 = vunpack.c.l.b16 %v1352
    %v1482 = vunpack.c.l.b16 %v1353
    %v1483 = vunpack.c.l.b16 %v1354
    %v1484 = vunpack.c.l.b16 %v1355
    %v1485 = vunpack.c.l.b16 %v1356
    %v1486 = vunpack.c.l.b16 %v1357
    %v1487 = vunpack.c.l.b16 %v1358
    %v1488 = vunpack.c.l.b16 %v1359
    %v1489 = vunpack.c.l.b16 %v1360
    %v1490 = vunpack.c.l.b16 %v1361
    %v1491 = vunpack.c.l.b16 %v1362
    %v1492 = vunpack.c.l.b16 %v1363
    %v1493 = vunpack.c.l.b16 %v1364
    %v1494 = vunpack.c.l.b16 %v1365
    %v1495 = vunpack.c.l.b16 %v1366
    %v1496 = vunpack.c.l.b16 %v1367
    %v1497 = vunpack.c.l.b16 %v1368
    %v1498 = vunpack.c.l.b16 %v1369
    %v1499 = vunpack.c.l.b16 %v1370
    %v1500 = vunpack.c.l.b16 %v1371
    %v1501 = vunpack.c.l.b16 %v1372
    %v1502 = vunpack.c.l.b16 %v1373
    %v1503 = vunpack.c.l.b16 %v1374
    %v1504 = vunpack.c.l.b16 %v1375
    %v1505 = vunpack.c.l.b16 %v1376
    %v1506 = vunpack.c.l.b16 %v1377
    %v1507 = vunpack.c.l.b16 %v1378
    %v1508 = vunpack.c.l.b16 %v1379
    %v1509 = vunpack.c.l.b16 %v1380
    %v1510 = vunpack.c.l.b16 %v1381
    %v1511 = vunpack.c.l.b16 %v1382
    %v1512 = vunpack.c.l.b16 %v1383
    %v1513 = vunpack.c.l.b16 %v1384
    %v1514 = vunpack.c.l.b16 %v1385
    %v1515 = vunpack.c.l.b16 %v1386
    %v1516 = vunpack.c.l.b16 %v1387
    %v1517 = vunpack.c.l.b16 %v1388
    %v1518 = vunpack.c.l.b16 %v1389
    %v1519 = vunpack.c.l.b16 %v1390
    %v1520 = vunpack.c.l.b16 %v1391
    %v1521 = vunpack.c.l.b16 %v1392
    %v1522 = vunpack.c.l.b16 %v1393
    %v1523 = vunpack.c.l.b16 %v1394
    %v1524 = vunpack.c.l.b16 %v1395
    %v1525 = vunpack.c.l.b16 %v1396
    %v1526 = vunpack.c.l.b16 %v1397
    %v1527 = vunpack.c.l.b16 %v1398
    %v1528 = vunpack.c.l.b16 %v1399
    %v1529 = vunpack.c.l.b16 %v1400
    %v1530 = vunpack.c.l.b16 %v1401
    %v1531 = vunpack.c.l.b16 %v1402
    %v1532 = vunpack.c.l.b16 %v1403
    %v1533 = vunpack.c.l.b16 %v1404
    %v1534 = vunpack.c.l.b16 %v1405
    %v1535 = vunpack.c.l.b16 %v1406
    %v1536 = vunpack.c.l.b16 %v1407
    %v1537 = vunpack.c.l.b16 %v1408
    %v1538 = vpack.c.b16 %v1475, %v1474
    %v1539 = vpack.c.b16 %v1477, %v1476
    %v1540 = vpack.c.b16 %v1479, %v1478
    %v1541 = vpack.c.b16 %v1481, %v1480
    %v1542 = vpack.c.b16 %v1483, %v1482
    %v1543 = vpack.c.b16 %v1485, %v1484
    %v1544 = vpack.c.b16 %v1487, %v1486
    %v1545 = vpack.c.b16 %v1489, %v1488
    %v1546 = vpack.c.b16 %v1491, %v1490
    %v1547 = vpack.c.b16 %v1493, %v1492
    %v1548 = vpack.c.b16 %v1495, %v1494
    %v1549 = vpack.c.b16 %v1497, %v1496
    %v1550 = vpack.c.b16 %v1499, %v1498
    %v1551 = vpack.c.b16 %v1501, %v1500
    %v1552 = vpack.c.b16 %v1503, %v1502
    %v1553 = vpack.c.b16 %v1505, %v1504
    %v1554 = vpack.c.b16 %v1507, %v1506
    %v1555 = vpack.c.b16 %v1509, %v1508
    %v1556 = vpack.c.b16 %v1511, %v1510
    %v1557 = vpack.c.b16 %v1513, %v1512
    %v1558 = vpack.c.b16 %v1515, %v1514
    %v1559 = vpack.c.b16 %v1517, %v1516
    %v1560 = vpack.c.b16 %v1519, %v1518
    %v1561 = vpack.c.b16 %v1521, %v1520
    %v1562 = vpack.c.b16 %v1523, %v1522
    %v1563 = vpack.c.b16 %v1525, %v1524
    %v1564 = vpack.c.b16 %v1527, %v1526
    %v1565 = vpack.c.b16 %v1529, %v1528
    %v1566 = vpack.c.b16 %v1531, %v1530
    %v1567 = vpack.c.b16 %v1533, %v1532
    %v1568 = vpack.c.b16 %v1535, %v1534
    %v1569 = vpack.c.b16 %v1537, %v1536
    %1602 = vmatprep.subr.bf16.mxu0 0
    %1603 = vmatpush1.bf16.msra.mxu0 %v1538
    %1604 = vmatprep.subr.bf16.mxu0 0
    %1605 = vmatpush1.bf16.msra.mxu0 %v1539
    %1606 = vmatprep.subr.bf16.mxu0 0
    %1607 = vmatpush1.bf16.msra.mxu0 %v1540
    %1608 = vmatprep.subr.bf16.mxu0 0
    %1609 = vmatpush1.bf16.msra.mxu0 %v1541
    %1610 = vmatprep.subr.bf16.mxu0 0
    %1611 = vmatpush1.bf16.msra.mxu0 %v1542
    %1612 = vmatprep.subr.bf16.mxu0 0
    %1613 = vmatpush1.bf16.msra.mxu0 %v1543
    %1614 = vmatprep.subr.bf16.mxu0 0
    %1615 = vmatpush1.bf16.msra.mxu0 %v1544
    %1616 = vmatprep.subr.bf16.mxu0 0
    %1617 = vmatpush1.bf16.msra.mxu0 %v1545
    %1618 = vmatprep.subr.bf16.mxu0 0
    %1619 = vmatpush1.bf16.msra.mxu0 %v1546
    %1620 = vmatprep.subr.bf16.mxu0 0
    %1621 = vmatpush1.bf16.msra.mxu0 %v1547
    %1622 = vmatprep.subr.bf16.mxu0 0
    %1623 = vmatpush1.bf16.msra.mxu0 %v1548
    %1624 = vmatprep.subr.bf16.mxu0 0
    %1625 = vmatpush1.bf16.msra.mxu0 %v1549
    %1626 = vmatprep.subr.bf16.mxu0 0
    %1627 = vmatpush1.bf16.msra.mxu0 %v1550
    %1628 = vmatprep.subr.bf16.mxu0 0
    %1629 = vmatpush1.bf16.msra.mxu0 %v1551
    %1630 = vmatprep.subr.bf16.mxu0 0
    %1631 = vmatpush1.bf16.msra.mxu0 %v1552
    %1632 = vmatprep.subr.bf16.mxu0 0
    %1633 = vmatpush1.bf16.msra.mxu0 %v1553
    %1634 = vmatprep.mubr.bf16.mxu0 %v1342
    %1635 = vmatmul.mubr.bf16.gmra.mrb[0].mxu0 %v1341
    %v1636 = vpop.f32.mrb[0].mxu0
    %v1637 = vadd.f32 %v1409, %v1636
    %v1638 = vpop.f32.mrb[0].mxu0
    %v1639 = vpop.f32.mrb[0].mxu0
    %v1640 = vadd.f32 %v1409, %v1639
    %v1641 = vpop.f32.mrb[0].mxu0
    %1642 = vdwg.mxu0
    %1643 = vmatprep.subr.bf16.mxu0 0
    %1644 = vmatpush1.bf16.msra.mxu0 %v1554
    %1645 = vmatprep.subr.bf16.mxu0 0
    %1646 = vmatpush1.bf16.msra.mxu0 %v1555
    %1647 = vmatprep.subr.bf16.mxu0 0
    %1648 = vmatpush1.bf16.msra.mxu0 %v1556
    %1649 = vmatprep.subr.bf16.mxu0 0
    %1650 = vmatpush1.bf16.msra.mxu0 %v1557
    %1651 = vmatprep.subr.bf16.mxu0 0
    %1652 = vmatpush1.bf16.msra.mxu0 %v1558
    %1653 = vmatprep.subr.bf16.mxu0 0
    %1654 = vmatpush1.bf16.msra.mxu0 %v1559
    %1655 = vmatprep.subr.bf16.mxu0 0
    %1656 = vmatpush1.bf16.msra.mxu0 %v1560
    %1657 = vmatprep.subr.bf16.mxu0 0
    %1658 = vmatpush1.bf16.msra.mxu0 %v1561
    %1659 = vmatprep.subr.bf16.mxu0 0
    %1660 = vmatpush1.bf16.msra.mxu0 %v1562
    %1661 = vmatprep.subr.bf16.mxu0 0
    %1662 = vmatpush1.bf16.msra.mxu0 %v1563
    %1663 = vmatprep.subr.bf16.mxu0 0
    %1664 = vmatpush1.bf16.msra.mxu0 %v1564
    %1665 = vmatprep.subr.bf16.mxu0 0
    %1666 = vmatpush1.bf16.msra.mxu0 %v1565
    %1667 = vmatprep.subr.bf16.mxu0 0
    %1668 = vmatpush1.bf16.msra.mxu0 %v1566
    %1669 = vmatprep.subr.bf16.mxu0 0
    %1670 = vmatpush1.bf16.msra.mxu0 %v1567
    %1671 = vmatprep.subr.bf16.mxu0 0
    %1672 = vmatpush1.bf16.msra.mxu0 %v1568
    %1673 = vmatprep.subr.bf16.mxu0 0
    %1674 = vmatpush1.bf16.msra.mxu0 %v1569
    %1675 = vmatprep.mubr.bf16.mxu0 %v1344
    %1676 = vmatmul.mubr.bf16.gmra.mrb[0].mxu0 %v1343
    %v1677 = vpop.f32.mrb[0].mxu0
    %v1678 = vadd.f32 %v1637, %v1677
    %v1679 = vpop.f32.mrb[0].mxu0
    %v1680 = vpop.f32.mrb[0].mxu0
    %v1681 = vadd.f32 %v1640, %v1680
    %v1682 = vpop.f32.mrb[0].mxu0
    %1683 = vdwg.mxu0
    %v1684 = vadd.f32 %v965, %v1678
    %v1685 = vadd.f32 %v966, %v1681
    %v1686 = vld [vmem:[%s1 + $0x40] ss:$0 sm:$0xff]
    %v1687 = vld [vmem:[%s1 + $0x41] ss:$0 sm:$0xff]
    %1688 = vadd.xlane.f32.xlu0 %v1684
    %v1689 = vpop.xlane.xlu0 %1688
    %1690 = vadd.xlane.f32.xlu0 %v1685
    %v1691 = vpop.xlane.xlu0 %1690
    %v1692 = vmul.f32 %v1689, %v87
    %v1693 = vmul.f32 %v1691, %v87
    %v1694 = vsub.f32 %v1684, %v1692
    %v1695 = vsub.f32 %v1685, %v1693
    %v1696 = vmul.f32 %v1694, %v1694
    %v1697 = vmul.f32 %v1695, %v1695
    %1698 = vadd.xlane.f32.xlu0 %v1696
    %v1699 = vpop.xlane.xlu0 %1698
    %1700 = vadd.xlane.f32.xlu0 %v1697
    %v1701 = vpop.xlane.xlu0 %1700
    %v1702 = vmul.f32 %v1699, %v87
    %v1703 = vmul.f32 %v1701, %v87
    %v1704 = vadd.f32 %v1702, 1e-12
    %v1705 = vadd.f32 %v1703, 1e-12
    %v1706 = vrsqrt.pop %v1704
    %v1707 = vrsqrt.pop %v1705
    %v1708 = vmul.f32 %v1694, %v1706
    %v1709 = vmul.f32 %v1695, %v1707
    %v1710 = vmul.f32 %v1708, %v1686
    %v1711 = vmul.f32 %v1709, %v1686
    %v1712 = vadd.f32 %v1710, %v1687
    %v1713 = vadd.f32 %v1711, %v1687
    %v1714 = vpack.c.bf16 %v1713, %v1712
    %v1715 = vld [vmem:[#allocation6 + $0xc0] sm:$0xff]
    %v1716 = vld [vmem:[#allocation6 + $0xc8] sm:$0xf]
    %v1717 = vld [vmem:[#allocation6 + $0xcc] sm:$0xff]
    %v1718 = vld [vmem:[#allocation6 + $0xd4] sm:$0xf]
    %v1719 = vld [vmem:[#allocation6 + $0xd8] sm:$0xff]
    %v1720 = vld [vmem:[#allocation6 + $0xe0] sm:$0xf]
    %v1721 = vld [vmem:[#allocation6 + $0xe4] sm:$0xff]
    %v1722 = vld [vmem:[#allocation6 + $0xec] sm:$0xf]
    %v1723 = vld [vmem:[#allocation6 + $0xf0] sm:$0xff]
    %v1724 = vld [vmem:[#allocation6 + $0xf8] sm:$0xf]
    %v1725 = vld [vmem:[#allocation6 + $0xfc] sm:$0xff]
    %v1726 = vld [vmem:[#allocation6 + $0x104] sm:$0xf]
    %v1727 = vld [vmem:[#allocation6 + $0x108] sm:$0xff]
    %v1728 = vld [vmem:[#allocation6 + $0x110] sm:$0xf]
    %v1729 = vld [vmem:[#allocation6 + $0x114] sm:$0xff]
    %v1730 = vld [vmem:[#allocation6 + $0x11c] sm:$0xf]
    %v1731 = vld [vmem:[#allocation6 + $0x120] sm:$0xff]
    %v1732 = vld [vmem:[#allocation6 + $0x128] sm:$0xf]
    %v1733 = vld [vmem:[#allocation6 + $0x12c] sm:$0xff]
    %v1734 = vld [vmem:[#allocation6 + $0x134] sm:$0xf]
    %v1735 = vld [vmem:[#allocation6 + $0x138] sm:$0xff]
    %v1736 = vld [vmem:[#allocation6 + $0x140] sm:$0xf]
    %v1737 = vld [vmem:[#allocation6 + $0x144] sm:$0xff]
    %v1738 = vld [vmem:[#allocation6 + $0x14c] sm:$0xf]
    %v1739 = vld [vmem:[#allocation6 + $0x150] sm:$0xff]
    %v1740 = vld [vmem:[#allocation6 + $0x158] sm:$0xf]
    %v1741 = vld [vmem:[#allocation6 + $0x15c] sm:$0xff]
    %v1742 = vld [vmem:[#allocation6 + $0x164] sm:$0xf]
    %v1743 = vld [vmem:[#allocation6 + $0x168] sm:$0xff]
    %v1744 = vld [vmem:[#allocation6 + $0x170] sm:$0xf]
    %v1745 = vld [vmem:[#allocation6 + $0x174] sm:$0xff]
    %v1746 = vld [vmem:[#allocation6 + $0x17c] sm:$0xf]
    %s1747 = scalar_lea.vmem %s1, 66
    %v1748 = vld [vmem:[%s1747] ss:$8 sm:$0x7]
    %v1750 = vlaneseq
    %v1751 = vshrl.u32 %v1750, 7
    %v1752 = vsub.s32 0, %v1751
    %v1753 = vrot.slane %v1748, %v1752
    %v1754 = vlaneseq
    %v1755 = vshrl.u32 %v1754, 7
    %v1756 = vsub.s32 1, %v1755
    %v1757 = vrot.slane %v1748, %v1756
    %v1758 = vlaneseq
    %v1759 = vshrl.u32 %v1758, 7
    %v1760 = vsub.s32 2, %v1759
    %v1761 = vrot.slane %v1748, %v1760
    %v1797 = vunpack.c.l.b16 %v1715
    %v1798 = vunpack.c.h.b16 %v1715
    %v1799 = vunpack.c.l.b16 %v1716
    %v1800 = vunpack.c.l.b16 %v1717
    %v1801 = vunpack.c.h.b16 %v1717
    %v1802 = vunpack.c.l.b16 %v1718
    %v1803 = vunpack.c.l.b16 %v1719
    %v1804 = vunpack.c.h.b16 %v1719
    %v1805 = vunpack.c.l.b16 %v1720
    %v1806 = vunpack.c.l.b16 %v1721
    %v1807 = vunpack.c.h.b16 %v1721
    %v1808 = vunpack.c.l.b16 %v1722
    %v1809 = vunpack.c.l.b16 %v1723
    %v1810 = vunpack.c.h.b16 %v1723
    %v1811 = vunpack.c.l.b16 %v1724
    %v1812 = vunpack.c.l.b16 %v1725
    %v1813 = vunpack.c.h.b16 %v1725
    %v1814 = vunpack.c.l.b16 %v1726
    %v1815 = vunpack.c.l.b16 %v1727
    %v1816 = vunpack.c.h.b16 %v1727
    %v1817 = vunpack.c.l.b16 %v1728
    %v1818 = vunpack.c.l.b16 %v1729
    %v1819 = vunpack.c.h.b16 %v1729
    %v1820 = vunpack.c.l.b16 %v1730
    %v1821 = vunpack.c.l.b16 %v1731
    %v1822 = vunpack.c.h.b16 %v1731
    %v1823 = vunpack.c.l.b16 %v1732
    %v1824 = vunpack.c.l.b16 %v1733
    %v1825 = vunpack.c.h.b16 %v1733
    %v1826 = vunpack.c.l.b16 %v1734
    %v1827 = vunpack.c.l.b16 %v1735
    %v1828 = vunpack.c.h.b16 %v1735
    %v1829 = vunpack.c.l.b16 %v1736
    %v1830 = vunpack.c.l.b16 %v1737
    %v1831 = vunpack.c.h.b16 %v1737
    %v1832 = vunpack.c.l.b16 %v1738
    %v1833 = vunpack.c.l.b16 %v1739
    %v1834 = vunpack.c.h.b16 %v1739
    %v1835 = vunpack.c.l.b16 %v1740
    %v1836 = vunpack.c.l.b16 %v1741
    %v1837 = vunpack.c.h.b16 %v1741
    %v1838 = vunpack.c.l.b16 %v1742
    %v1839 = vunpack.c.l.b16 %v1743
    %v1840 = vunpack.c.h.b16 %v1743
    %v1841 = vunpack.c.l.b16 %v1744
    %v1842 = vunpack.c.l.b16 %v1745
    %v1843 = vunpack.c.h.b16 %v1745
    %v1844 = vunpack.c.l.b16 %v1746
    %v1845 = vpack.c.b16 %v1800, %v1797
    %v1846 = vpack.c.b16 %v1801, %v1798
    %v1847 = vpack.c.b16 %v1802, %v1799
    %v1848 = vpack.c.b16 %v1806, %v1803
    %v1849 = vpack.c.b16 %v1807, %v1804
    %v1850 = vpack.c.b16 %v1808, %v1805
    %v1851 = vpack.c.b16 %v1812, %v1809
    %v1852 = vpack.c.b16 %v1813, %v1810
    %v1853 = vpack.c.b16 %v1814, %v1811
    %v1854 = vpack.c.b16 %v1818, %v1815
    %v1855 = vpack.c.b16 %v1819, %v1816
    %v1856 = vpack.c.b16 %v1820, %v1817
    %v1857 = vpack.c.b16 %v1824, %v1821
    %v1858 = vpack.c.b16 %v1825, %v1822
    %v1859 = vpack.c.b16 %v1826, %v1823
    %v1860 = vpack.c.b16 %v1830, %v1827
    %v1861 = vpack.c.b16 %v1831, %v1828
    %v1862 = vpack.c.b16 %v1832, %v1829
    %v1863 = vpack.c.b16 %v1836, %v1833
    %v1864 = vpack.c.b16 %v1837, %v1834
    %v1865 = vpack.c.b16 %v1838, %v1835
    %v1866 = vpack.c.b16 %v1842, %v1839
    %v1867 = vpack.c.b16 %v1843, %v1840
    %v1868 = vpack.c.b16 %v1844, %v1841
    %1893 = vmatprep.subr.bf16.mxu0 %v1846
    %1894 = vmatpush1.bf16.msra.mxu0 %v1845
    %1895 = vmatprep.subr.bf16.mxu0 %v1849
    %1896 = vmatpush1.bf16.msra.mxu0 %v1848
    %1897 = vmatprep.subr.bf16.mxu0 %v1852
    %1898 = vmatpush1.bf16.msra.mxu0 %v1851
    %1899 = vmatprep.subr.bf16.mxu0 %v1855
    %1900 = vmatpush1.bf16.msra.mxu0 %v1854
    %1901 = vmatprep.subr.bf16.mxu0 %v1858
    %1902 = vmatpush1.bf16.msra.mxu0 %v1857
    %1903 = vmatprep.subr.bf16.mxu0 %v1861
    %1904 = vmatpush1.bf16.msra.mxu0 %v1860
    %1905 = vmatprep.subr.bf16.mxu0 %v1864
    %1906 = vmatpush1.bf16.msra.mxu0 %v1863
    %1907 = vmatprep.subr.bf16.mxu0 %v1867
    %1908 = vmatpush1.bf16.msra.mxu0 %v1866
    %1909 = vmatprep.subr.bf16.mxu0 0
    %1910 = vmatpush1.bf16.msra.mxu0 0
    %1911 = vmatprep.subr.bf16.mxu0 0
    %1912 = vmatpush1.bf16.msra.mxu0 0
    %1913 = vmatprep.subr.bf16.mxu0 0
    %1914 = vmatpush1.bf16.msra.mxu0 0
    %1915 = vmatprep.subr.bf16.mxu0 0
    %1916 = vmatpush1.bf16.msra.mxu0 0
    %1917 = vmatprep.subr.bf16.mxu0 0
    %1918 = vmatpush1.bf16.msra.mxu0 0
    %1919 = vmatprep.subr.bf16.mxu0 0
    %1920 = vmatpush1.bf16.msra.mxu0 0
    %1921 = vmatprep.subr.bf16.mxu0 0
    %1922 = vmatpush1.bf16.msra.mxu0 0
    %1923 = vmatprep.subr.bf16.mxu0 0
    %1924 = vmatpush1.bf16.msra.mxu0 0
    %1925 = vmatprep.mubr.bf16.mxu0 0
    %1926 = vmatmul.mubr.bf16.gmra.mrb[0].mxu0 %v1714
    %v1927 = vpop.f32.mrb[0].mxu0
    %v1928 = vadd.f32 %v1753, %v1927
    %v1929 = vpop.f32.mrb[0].mxu0
    %v1930 = vadd.f32 %v1757, %v1929
    %v1931 = vpop.f32.mrb[0].mxu0
    %v1932 = vadd.f32 %v1753, %v1931
    %v1933 = vpop.f32.mrb[0].mxu0
    %v1934 = vadd.f32 %v1757, %v1933
    %1935 = vdwg.mxu0
    %1936 = vmatprep.subr.bf16.mxu0 0
    %1937 = vmatpush1.bf16.msra.mxu0 %v1847
    %1938 = vmatprep.subr.bf16.mxu0 0
    %1939 = vmatpush1.bf16.msra.mxu0 %v1850
    %1940 = vmatprep.subr.bf16.mxu0 0
    %1941 = vmatpush1.bf16.msra.mxu0 %v1853
    %1942 = vmatprep.subr.bf16.mxu0 0
    %1943 = vmatpush1.bf16.msra.mxu0 %v1856
    %1944 = vmatprep.subr.bf16.mxu0 0
    %1945 = vmatpush1.bf16.msra.mxu0 %v1859
    %1946 = vmatprep.subr.bf16.mxu0 0
    %1947 = vmatpush1.bf16.msra.mxu0 %v1862
    %1948 = vmatprep.subr.bf16.mxu0 0
    %1949 = vmatpush1.bf16.msra.mxu0 %v1865
    %1950 = vmatprep.subr.bf16.mxu0 0
    %1951 = vmatpush1.bf16.msra.mxu0 %v1868
    %1952 = vmatprep.subr.bf16.mxu0 0
    %1953 = vmatpush1.bf16.msra.mxu0 0
    %1954 = vmatprep.subr.bf16.mxu0 0
    %1955 = vmatpush1.bf16.msra.mxu0 0
    %1956 = vmatprep.subr.bf16.mxu0 0
    %1957 = vmatpush1.bf16.msra.mxu0 0
    %1958 = vmatprep.subr.bf16.mxu0 0
    %1959 = vmatpush1.bf16.msra.mxu0 0
    %1960 = vmatprep.subr.bf16.mxu0 0
    %1961 = vmatpush1.bf16.msra.mxu0 0
    %1962 = vmatprep.subr.bf16.mxu0 0
    %1963 = vmatpush1.bf16.msra.mxu0 0
    %1964 = vmatprep.subr.bf16.mxu0 0
    %1965 = vmatpush1.bf16.msra.mxu0 0
    %1966 = vmatprep.subr.bf16.mxu0 0
    %1967 = vmatpush1.bf16.msra.mxu0 0
    %1968 = vmatprep.mubr.bf16.mxu0 0
    %1969 = vmatmul.mubr.bf16.gmra.mrb[0].mxu0 %v1714
    %v1970 = vpop.f32.mrb[0].mxu0
    %v1971 = vadd.f32 %v1761, %v1970
    %v1972 = vpop.f32.mrb[0].mxu0
    %v1973 = vpop.f32.mrb[0].mxu0
    %v1974 = vadd.f32 %v1761, %v1973
    %v1975 = vpop.f32.mrb[0].mxu0
    %1976 = vdwg.mxu0
    %v1977 = vpack.c.bf16 %v1928, %v1928
    %v1978 = vpack.c.bf16 %v1932, %v1932
    %v1979 = vpack.c.bf16 %v1930, %v1930
    %v1980 = vpack.c.bf16 %v1934, %v1934
    %v1981 = vpack.c.bf16 %v1971, %v1971
    %v1982 = vpack.c.bf16 %v1974, %v1974
    %v1984 = vsel %vm379, %v1977, 0
    %v1987 = vsel %vm379, %v1979, 0
    %1989 = vmatprep.subr.bf16.mxu0 0
    %1990 = vmatpush1.bf16.xpose.msra.mxu0 %v1987
    %1991 = vmatprep.subr.bf16.mxu0 0
    %1992 = vmatpush1.bf16.xpose.msra.mxu0 0
    %1993 = vmatprep.subr.bf16.mxu0 0
    %1994 = vmatpush1.bf16.xpose.msra.mxu0 0
    %1995 = vmatprep.subr.bf16.mxu0 0
    %1996 = vmatpush1.bf16.xpose.msra.mxu0 0
    %1997 = vmatprep.subr.bf16.mxu0 0
    %1998 = vmatpush1.bf16.xpose.msra.mxu0 0
    %1999 = vmatprep.subr.bf16.mxu0 0
    %2000 = vmatpush1.bf16.xpose.msra.mxu0 0
    %2001 = vmatprep.subr.bf16.mxu0 0
    %2002 = vmatpush1.bf16.xpose.msra.mxu0 0
    %2003 = vmatprep.subr.bf16.mxu0 0
    %2004 = vmatpush1.bf16.xpose.msra.mxu0 0
    %2005 = vmatprep.subr.bf16.mxu0 0
    %2006 = vmatpush1.bf16.xpose.msra.mxu0 0
    %2007 = vmatprep.subr.bf16.mxu0 0
    %2008 = vmatpush1.bf16.xpose.msra.mxu0 0
    %2009 = vmatprep.subr.bf16.mxu0 0
    %2010 = vmatpush1.bf16.xpose.msra.mxu0 0
    %2011 = vmatprep.subr.bf16.mxu0 0
    %2012 = vmatpush1.bf16.xpose.msra.mxu0 0
    %2013 = vmatprep.subr.bf16.mxu0 0
    %2014 = vmatpush1.bf16.xpose.msra.mxu0 0
    %2015 = vmatprep.subr.bf16.mxu0 0
    %2016 = vmatpush1.bf16.xpose.msra.mxu0 0
    %2017 = vmatprep.subr.bf16.mxu0 0
    %2018 = vmatpush1.bf16.xpose.msra.mxu0 0
    %2019 = vmatprep.subr.bf16.mxu0 0
    %2020 = vmatpush1.bf16.xpose.msra.mxu0 0
    %2021 = vmatprep.mubr.bf16.mxu0 0
    %2022 = vmatmul.mubr.bf16.gmra.mrb[0].mxu0 %v1984
    %v2023 = vpop.f32.mrb[0].mxu0
    %v2024 = vadd.f32 0.0, %v2023
    %v2025 = vpop.f32.mrb[0].mxu0
    %v2026 = vpop.f32.mrb[0].mxu0
    %v2027 = vpop.f32.mrb[0].mxu0
    %2028 = vdwg.mxu0
    %v2030 = vsel %vm379, %v1978, 0
    %v2033 = vsel %vm379, %v1980, 0
    %2035 = vmatprep.subr.bf16.mxu0 0
    %2036 = vmatpush1.bf16.xpose.msra.mxu0 %v2033
    %2037 = vmatprep.subr.bf16.mxu0 0
    %2038 = vmatpush1.bf16.xpose.msra.mxu0 0
    %2039 = vmatprep.subr.bf16.mxu0 0
    %2040 = vmatpush1.bf16.xpose.msra.mxu0 0
    %2041 = vmatprep.subr.bf16.mxu0 0
    %2042 = vmatpush1.bf16.xpose.msra.mxu0 0
    %2043 = vmatprep.subr.bf16.mxu0 0
    %2044 = vmatpush1.bf16.xpose.msra.mxu0 0
    %2045 = vmatprep.subr.bf16.mxu0 0
    %2046 = vmatpush1.bf16.xpose.msra.mxu0 0
    %2047 = vmatprep.subr.bf16.mxu0 0
    %2048 = vmatpush1.bf16.xpose.msra.mxu0 0
    %2049 = vmatprep.subr.bf16.mxu0 0
    %2050 = vmatpush1.bf16.xpose.msra.mxu0 0
    %2051 = vmatprep.subr.bf16.mxu0 0
    %2052 = vmatpush1.bf16.xpose.msra.mxu0 0
    %2053 = vmatprep.subr.bf16.mxu0 0
    %2054 = vmatpush1.bf16.xpose.msra.mxu0 0
    %2055 = vmatprep.subr.bf16.mxu0 0
    %2056 = vmatpush1.bf16.xpose.msra.mxu0 0
    %2057 = vmatprep.subr.bf16.mxu0 0
    %2058 = vmatpush1.bf16.xpose.msra.mxu0 0
    %2059 = vmatprep.subr.bf16.mxu0 0
    %2060 = vmatpush1.bf16.xpose.msra.mxu0 0
    %2061 = vmatprep.subr.bf16.mxu0 0
    %2062 = vmatpush1.bf16.xpose.msra.mxu0 0
    %2063 = vmatprep.subr.bf16.mxu0 0
    %2064 = vmatpush1.bf16.xpose.msra.mxu0 0
    %2065 = vmatprep.subr.bf16.mxu0 0
    %2066 = vmatpush1.bf16.xpose.msra.mxu0 0
    %2067 = vmatprep.mubr.bf16.mxu0 0
    %2068 = vmatmul.mubr.bf16.gmra.mrb[0].mxu0 %v2030
    %v2069 = vpop.f32.mrb[0].mxu0
    %v2070 = vadd.f32 0.0, %v2069
    %v2071 = vpop.f32.mrb[0].mxu0
    %v2072 = vpop.f32.mrb[0].mxu0
    %v2073 = vpop.f32.mrb[0].mxu0
    %2074 = vdwg.mxu0
    %v2075 = vmul.f32 %v2024, 0.125
    %v2076 = vmul.f32 %v2070, 0.125
    %v2077 = vsel %vm474, %v2075, -inf
    %2078 = vmax.xlane.f32.xlu0 %v2077
    %v2079 = vpop.xlane.xlu0 %2078
    %v2080 = vsel %vm474, %v2076, -inf
    %2081 = vmax.xlane.f32.xlu0 %v2080
    %v2082 = vpop.xlane.xlu0 %2081
    %v2083 = vsub.f32 %v2075, %v2079
    %v2084 = vsub.f32 %v2076, %v2082
    %v2085 = vmul.f32 %v2083, 1.442695
    %v2086 = vpow.pop %v2085
    %v2087 = vmul.f32 %v2084, 1.442695
    %v2088 = vpow.pop %v2087
    %v2089 = vsel %vm474, %v2086, 0.0
    %2090 = vadd.xlane.f32.xlu0 %v2089
    %v2091 = vpop.xlane.xlu0 %2090
    %v2092 = vsel %vm474, %v2088, 0.0
    %2093 = vadd.xlane.f32.xlu0 %v2092
    %v2094 = vpop.xlane.xlu0 %2093
    %v2095 = vrcp.pop %v2091
    %v2096 = vrcp.pop %v2094
    %v2097 = vmul.f32 %v2086, %v2095
    %v2098 = vmul.f32 %v2088, %v2096
    %v2099 = vpack.c.bf16 %v2097, %v2097
    %v2100 = vpack.c.bf16 %v2098, %v2098
    %v2102 = vsel %vm474, %v2099, 0
    %v2105 = vsel %vm502, %v1981, 0
    %2107 = vmatprep.subr.bf16.mxu0 0
    %2108 = vmatpush1.bf16.msra.mxu0 %v2105
    %2109 = vmatprep.subr.bf16.mxu0 0
    %2110 = vmatpush1.bf16.msra.mxu0 0
    %2111 = vmatprep.subr.bf16.mxu0 0
    %2112 = vmatpush1.bf16.msra.mxu0 0
    %2113 = vmatprep.subr.bf16.mxu0 0
    %2114 = vmatpush1.bf16.msra.mxu0 0
    %2115 = vmatprep.subr.bf16.mxu0 0
    %2116 = vmatpush1.bf16.msra.mxu0 0
    %2117 = vmatprep.subr.bf16.mxu0 0
    %2118 = vmatpush1.bf16.msra.mxu0 0
    %2119 = vmatprep.subr.bf16.mxu0 0
    %2120 = vmatpush1.bf16.msra.mxu0 0
    %2121 = vmatprep.subr.bf16.mxu0 0
    %2122 = vmatpush1.bf16.msra.mxu0 0
    %2123 = vmatprep.subr.bf16.mxu0 0
    %2124 = vmatpush1.bf16.msra.mxu0 0
    %2125 = vmatprep.subr.bf16.mxu0 0
    %2126 = vmatpush1.bf16.msra.mxu0 0
    %2127 = vmatprep.subr.bf16.mxu0 0
    %2128 = vmatpush1.bf16.msra.mxu0 0
    %2129 = vmatprep.subr.bf16.mxu0 0
    %2130 = vmatpush1.bf16.msra.mxu0 0
    %2131 = vmatprep.subr.bf16.mxu0 0
    %2132 = vmatpush1.bf16.msra.mxu0 0
    %2133 = vmatprep.subr.bf16.mxu0 0
    %2134 = vmatpush1.bf16.msra.mxu0 0
    %2135 = vmatprep.subr.bf16.mxu0 0
    %2136 = vmatpush1.bf16.msra.mxu0 0
    %2137 = vmatprep.subr.bf16.mxu0 0
    %2138 = vmatpush1.bf16.msra.mxu0 0
    %2139 = vmatprep.mubr.bf16.mxu0 0
    %2140 = vmatmul.mubr.bf16.gmra.mrb[0].mxu0 %v2102
    %v2141 = vpop.f32.mrb[0].mxu0
    %v2142 = vadd.f32 0.0, %v2141
    %v2143 = vpop.f32.mrb[0].mxu0
    %v2144 = vpop.f32.mrb[0].mxu0
    %v2145 = vpop.f32.mrb[0].mxu0
    %2146 = vdwg.mxu0
    %v2148 = vsel %vm474, %v2100, 0
    %v2151 = vsel %vm502, %v1982, 0
    %2153 = vmatprep.subr.bf16.mxu0 0
    %2154 = vmatpush1.bf16.msra.mxu0 %v2151
    %2155 = vmatprep.subr.bf16.mxu0 0
    %2156 = vmatpush1.bf16.msra.mxu0 0
    %2157 = vmatprep.subr.bf16.mxu0 0
    %2158 = vmatpush1.bf16.msra.mxu0 0
    %2159 = vmatprep.subr.bf16.mxu0 0
    %2160 = vmatpush1.bf16.msra.mxu0 0
    %2161 = vmatprep.subr.bf16.mxu0 0
    %2162 = vmatpush1.bf16.msra.mxu0 0
    %2163 = vmatprep.subr.bf16.mxu0 0
    %2164 = vmatpush1.bf16.msra.mxu0 0
    %2165 = vmatprep.subr.bf16.mxu0 0
    %2166 = vmatpush1.bf16.msra.mxu0 0
    %2167 = vmatprep.subr.bf16.mxu0 0
    %2168 = vmatpush1.bf16.msra.mxu0 0
    %2169 = vmatprep.subr.bf16.mxu0 0
    %2170 = vmatpush1.bf16.msra.mxu0 0
    %2171 = vmatprep.subr.bf16.mxu0 0
    %2172 = vmatpush1.bf16.msra.mxu0 0
    %2173 = vmatprep.subr.bf16.mxu0 0
    %2174 = vmatpush1.bf16.msra.mxu0 0
    %2175 = vmatprep.subr.bf16.mxu0 0
    %2176 = vmatpush1.bf16.msra.mxu0 0
    %2177 = vmatprep.subr.bf16.mxu0 0
    %2178 = vmatpush1.bf16.msra.mxu0 0
    %2179 = vmatprep.subr.bf16.mxu0 0
    %2180 = vmatpush1.bf16.msra.mxu0 0
    %2181 = vmatprep.subr.bf16.mxu0 0
    %2182 = vmatpush1.bf16.msra.mxu0 0
    %2183 = vmatprep.subr.bf16.mxu0 0
    %2184 = vmatpush1.bf16.msra.mxu0 0
    %2185 = vmatprep.mubr.bf16.mxu0 0
    %2186 = vmatmul.mubr.bf16.gmra.mrb[0].mxu0 %v2148
    %v2187 = vpop.f32.mrb[0].mxu0
    %v2188 = vadd.f32 0.0, %v2187
    %v2189 = vpop.f32.mrb[0].mxu0
    %v2190 = vpop.f32.mrb[0].mxu0
    %v2191 = vpop.f32.mrb[0].mxu0
    %2192 = vdwg.mxu0
    %2194 = vrot.lane.b32.xlu0 %v1977, 64
    %v2195 = vpop.permute.xlu0 %2194
    %2197 = vrot.lane.b32.xlu0 %v1979, 64
    %v2198 = vpop.permute.xlu0 %2197
    %v2200 = vsel %vm379, %v2195, 0
    %v2203 = vsel %vm379, %v2198, 0
    %2205 = vmatprep.subr.bf16.mxu0 0
    %2206 = vmatpush1.bf16.xpose.msra.mxu0 %v2203
    %2207 = vmatprep.subr.bf16.mxu0 0
    %2208 = vmatpush1.bf16.xpose.msra.mxu0 0
    %2209 = vmatprep.subr.bf16.mxu0 0
    %2210 = vmatpush1.bf16.xpose.msra.mxu0 0
    %2211 = vmatprep.subr.bf16.mxu0 0
    %2212 = vmatpush1.bf16.xpose.msra.mxu0 0
    %2213 = vmatprep.subr.bf16.mxu0 0
    %2214 = vmatpush1.bf16.xpose.msra.mxu0 0
    %2215 = vmatprep.subr.bf16.mxu0 0
    %2216 = vmatpush1.bf16.xpose.msra.mxu0 0
    %2217 = vmatprep.subr.bf16.mxu0 0
    %2218 = vmatpush1.bf16.xpose.msra.mxu0 0
    %2219 = vmatprep.subr.bf16.mxu0 0
    %2220 = vmatpush1.bf16.xpose.msra.mxu0 0
    %2221 = vmatprep.subr.bf16.mxu0 0
    %2222 = vmatpush1.bf16.xpose.msra.mxu0 0
    %2223 = vmatprep.subr.bf16.mxu0 0
    %2224 = vmatpush1.bf16.xpose.msra.mxu0 0
    %2225 = vmatprep.subr.bf16.mxu0 0
    %2226 = vmatpush1.bf16.xpose.msra.mxu0 0
    %2227 = vmatprep.subr.bf16.mxu0 0
    %2228 = vmatpush1.bf16.xpose.msra.mxu0 0
    %2229 = vmatprep.subr.bf16.mxu0 0
    %2230 = vmatpush1.bf16.xpose.msra.mxu0 0
    %2231 = vmatprep.subr.bf16.mxu0 0
    %2232 = vmatpush1.bf16.xpose.msra.mxu0 0
    %2233 = vmatprep.subr.bf16.mxu0 0
    %2234 = vmatpush1.bf16.xpose.msra.mxu0 0
    %2235 = vmatprep.subr.bf16.mxu0 0
    %2236 = vmatpush1.bf16.xpose.msra.mxu0 0
    %2237 = vmatprep.mubr.bf16.mxu0 0
    %2238 = vmatmul.mubr.bf16.gmra.mrb[0].mxu0 %v2200
    %v2239 = vpop.f32.mrb[0].mxu0
    %v2240 = vadd.f32 0.0, %v2239
    %v2241 = vpop.f32.mrb[0].mxu0
    %v2242 = vpop.f32.mrb[0].mxu0
    %v2243 = vpop.f32.mrb[0].mxu0
    %2244 = vdwg.mxu0
    %2246 = vrot.lane.b32.xlu0 %v1978, 64
    %v2247 = vpop.permute.xlu0 %2246
    %2249 = vrot.lane.b32.xlu0 %v1980, 64
    %v2250 = vpop.permute.xlu0 %2249
    %v2252 = vsel %vm379, %v2247, 0
    %v2255 = vsel %vm379, %v2250, 0
    %2257 = vmatprep.subr.bf16.mxu0 0
    %2258 = vmatpush1.bf16.xpose.msra.mxu0 %v2255
    %2259 = vmatprep.subr.bf16.mxu0 0
    %2260 = vmatpush1.bf16.xpose.msra.mxu0 0
    %2261 = vmatprep.subr.bf16.mxu0 0
    %2262 = vmatpush1.bf16.xpose.msra.mxu0 0
    %2263 = vmatprep.subr.bf16.mxu0 0
    %2264 = vmatpush1.bf16.xpose.msra.mxu0 0
    %2265 = vmatprep.subr.bf16.mxu0 0
    %2266 = vmatpush1.bf16.xpose.msra.mxu0 0
    %2267 = vmatprep.subr.bf16.mxu0 0
    %2268 = vmatpush1.bf16.xpose.msra.mxu0 0
    %2269 = vmatprep.subr.bf16.mxu0 0
    %2270 = vmatpush1.bf16.xpose.msra.mxu0 0
    %2271 = vmatprep.subr.bf16.mxu0 0
    %2272 = vmatpush1.bf16.xpose.msra.mxu0 0
    %2273 = vmatprep.subr.bf16.mxu0 0
    %2274 = vmatpush1.bf16.xpose.msra.mxu0 0
    %2275 = vmatprep.subr.bf16.mxu0 0
    %2276 = vmatpush1.bf16.xpose.msra.mxu0 0
    %2277 = vmatprep.subr.bf16.mxu0 0
    %2278 = vmatpush1.bf16.xpose.msra.mxu0 0
    %2279 = vmatprep.subr.bf16.mxu0 0
    %2280 = vmatpush1.bf16.xpose.msra.mxu0 0
    %2281 = vmatprep.subr.bf16.mxu0 0
    %2282 = vmatpush1.bf16.xpose.msra.mxu0 0
    %2283 = vmatprep.subr.bf16.mxu0 0
    %2284 = vmatpush1.bf16.xpose.msra.mxu0 0
    %2285 = vmatprep.subr.bf16.mxu0 0
    %2286 = vmatpush1.bf16.xpose.msra.mxu0 0
    %2287 = vmatprep.subr.bf16.mxu0 0
    %2288 = vmatpush1.bf16.xpose.msra.mxu0 0
    %2289 = vmatprep.mubr.bf16.mxu0 0
    %2290 = vmatmul.mubr.bf16.gmra.mrb[0].mxu0 %v2252
    %v2291 = vpop.f32.mrb[0].mxu0
    %v2292 = vadd.f32 0.0, %v2291
    %v2293 = vpop.f32.mrb[0].mxu0
    %v2294 = vpop.f32.mrb[0].mxu0
    %v2295 = vpop.f32.mrb[0].mxu0
    %2296 = vdwg.mxu0
    %v2297 = vmul.f32 %v2240, 0.125
    %v2298 = vmul.f32 %v2292, 0.125
    %v2299 = vsel %vm474, %v2297, -inf
    %2300 = vmax.xlane.f32.xlu0 %v2299
    %v2301 = vpop.xlane.xlu0 %2300
    %v2302 = vsel %vm474, %v2298, -inf
    %2303 = vmax.xlane.f32.xlu0 %v2302
    %v2304 = vpop.xlane.xlu0 %2303
    %v2305 = vsub.f32 %v2297, %v2301
    %v2306 = vsub.f32 %v2298, %v2304
    %v2307 = vmul.f32 %v2305, 1.442695
    %v2308 = vpow.pop %v2307
    %v2309 = vmul.f32 %v2306, 1.442695
    %v2310 = vpow.pop %v2309
    %v2311 = vsel %vm474, %v2308, 0.0
    %2312 = vadd.xlane.f32.xlu0 %v2311
    %v2313 = vpop.xlane.xlu0 %2312
    %v2314 = vsel %vm474, %v2310, 0.0
    %2315 = vadd.xlane.f32.xlu0 %v2314
    %v2316 = vpop.xlane.xlu0 %2315
    %v2317 = vrcp.pop %v2313
    %v2318 = vrcp.pop %v2316
    %v2319 = vmul.f32 %v2308, %v2317
    %v2320 = vmul.f32 %v2310, %v2318
    %v2321 = vpack.c.bf16 %v2319, %v2319
    %v2322 = vpack.c.bf16 %v2320, %v2320
    %2324 = vrot.lane.b32.xlu0 %v1981, 64
    %v2325 = vpop.permute.xlu0 %2324
    %v2327 = vsel %vm474, %v2321, 0
    %v2330 = vsel %vm502, %v2325, 0
    %2332 = vmatprep.subr.bf16.mxu0 0
    %2333 = vmatpush1.bf16.msra.mxu0 %v2330
    %2334 = vmatprep.subr.bf16.mxu0 0
    %2335 = vmatpush1.bf16.msra.mxu0 0
    %2336 = vmatprep.subr.bf16.mxu0 0
    %2337 = vmatpush1.bf16.msra.mxu0 0
    %2338 = vmatprep.subr.bf16.mxu0 0
    %2339 = vmatpush1.bf16.msra.mxu0 0
    %2340 = vmatprep.subr.bf16.mxu0 0
    %2341 = vmatpush1.bf16.msra.mxu0 0
    %2342 = vmatprep.subr.bf16.mxu0 0
    %2343 = vmatpush1.bf16.msra.mxu0 0
    %2344 = vmatprep.subr.bf16.mxu0 0
    %2345 = vmatpush1.bf16.msra.mxu0 0
    %2346 = vmatprep.subr.bf16.mxu0 0
    %2347 = vmatpush1.bf16.msra.mxu0 0
    %2348 = vmatprep.subr.bf16.mxu0 0
    %2349 = vmatpush1.bf16.msra.mxu0 0
    %2350 = vmatprep.subr.bf16.mxu0 0
    %2351 = vmatpush1.bf16.msra.mxu0 0
    %2352 = vmatprep.subr.bf16.mxu0 0
    %2353 = vmatpush1.bf16.msra.mxu0 0
    %2354 = vmatprep.subr.bf16.mxu0 0
    %2355 = vmatpush1.bf16.msra.mxu0 0
    %2356 = vmatprep.subr.bf16.mxu0 0
    %2357 = vmatpush1.bf16.msra.mxu0 0
    %2358 = vmatprep.subr.bf16.mxu0 0
    %2359 = vmatpush1.bf16.msra.mxu0 0
    %2360 = vmatprep.subr.bf16.mxu0 0
    %2361 = vmatpush1.bf16.msra.mxu0 0
    %2362 = vmatprep.subr.bf16.mxu0 0
    %2363 = vmatpush1.bf16.msra.mxu0 0
    %2364 = vmatprep.mubr.bf16.mxu0 0
    %2365 = vmatmul.mubr.bf16.gmra.mrb[0].mxu0 %v2327
    %v2366 = vpop.f32.mrb[0].mxu0
    %v2367 = vadd.f32 0.0, %v2366
    %v2368 = vpop.f32.mrb[0].mxu0
    %v2369 = vpop.f32.mrb[0].mxu0
    %v2370 = vpop.f32.mrb[0].mxu0
    %2371 = vdwg.mxu0
    %2373 = vrot.lane.b32.xlu0 %v1982, 64
    %v2374 = vpop.permute.xlu0 %2373
    %v2376 = vsel %vm474, %v2322, 0
    %v2379 = vsel %vm502, %v2374, 0
    %2381 = vmatprep.subr.bf16.mxu0 0
    %2382 = vmatpush1.bf16.msra.mxu0 %v2379
    %2383 = vmatprep.subr.bf16.mxu0 0
    %2384 = vmatpush1.bf16.msra.mxu0 0
    %2385 = vmatprep.subr.bf16.mxu0 0
    %2386 = vmatpush1.bf16.msra.mxu0 0
    %2387 = vmatprep.subr.bf16.mxu0 0
    %2388 = vmatpush1.bf16.msra.mxu0 0
    %2389 = vmatprep.subr.bf16.mxu0 0
    %2390 = vmatpush1.bf16.msra.mxu0 0
    %2391 = vmatprep.subr.bf16.mxu0 0
    %2392 = vmatpush1.bf16.msra.mxu0 0
    %2393 = vmatprep.subr.bf16.mxu0 0
    %2394 = vmatpush1.bf16.msra.mxu0 0
    %2395 = vmatprep.subr.bf16.mxu0 0
    %2396 = vmatpush1.bf16.msra.mxu0 0
    %2397 = vmatprep.subr.bf16.mxu0 0
    %2398 = vmatpush1.bf16.msra.mxu0 0
    %2399 = vmatprep.subr.bf16.mxu0 0
    %2400 = vmatpush1.bf16.msra.mxu0 0
    %2401 = vmatprep.subr.bf16.mxu0 0
    %2402 = vmatpush1.bf16.msra.mxu0 0
    %2403 = vmatprep.subr.bf16.mxu0 0
    %2404 = vmatpush1.bf16.msra.mxu0 0
    %2405 = vmatprep.subr.bf16.mxu0 0
    %2406 = vmatpush1.bf16.msra.mxu0 0
    %2407 = vmatprep.subr.bf16.mxu0 0
    %2408 = vmatpush1.bf16.msra.mxu0 0
    %2409 = vmatprep.subr.bf16.mxu0 0
    %2410 = vmatpush1.bf16.msra.mxu0 0
    %2411 = vmatprep.subr.bf16.mxu0 0
    %2412 = vmatpush1.bf16.msra.mxu0 0
    %2413 = vmatprep.mubr.bf16.mxu0 0
    %2414 = vmatmul.mubr.bf16.gmra.mrb[0].mxu0 %v2376
    %v2415 = vpop.f32.mrb[0].mxu0
    %v2416 = vadd.f32 0.0, %v2415
    %v2417 = vpop.f32.mrb[0].mxu0
    %v2418 = vpop.f32.mrb[0].mxu0
    %v2419 = vpop.f32.mrb[0].mxu0
    %2420 = vdwg.mxu0
    %2423 = vrot.lane.b32.xlu0 %v2367, 64
    %v2424 = vpop.permute.xlu0 %2423
    %2425 = vrot.lane.b32.xlu0 %v2416, 64
    %v2426 = vpop.permute.xlu0 %2425
    %v2429 = vsel %vm379, %v2142, %v2424
    %v2430 = vsel %vm379, %v2188, %v2426
    %v2431 = vpack.c.bf16 %v2430, %v2429
    %v2432 = vld [vmem:[#allocation4 + $0x40] sm:$0xf]
    %v2433 = vld [vmem:[#allocation4 + $0x44] sm:$0xf]
    %v2434 = vld [vmem:[#allocation4 + $0x48] sm:$0xf]
    %v2435 = vld [vmem:[#allocation4 + $0x4c] sm:$0xf]
    %v2436 = vld [vmem:[#allocation4 + $0x50] sm:$0xf]
    %v2437 = vld [vmem:[#allocation4 + $0x54] sm:$0xf]
    %v2438 = vld [vmem:[#allocation4 + $0x58] sm:$0xf]
    %v2439 = vld [vmem:[#allocation4 + $0x5c] sm:$0xf]
    %v2440 = vld [vmem:[#allocation4 + $0x60] sm:$0xf]
    %v2441 = vld [vmem:[#allocation4 + $0x64] sm:$0xf]
    %v2442 = vld [vmem:[#allocation4 + $0x68] sm:$0xf]
    %v2443 = vld [vmem:[#allocation4 + $0x6c] sm:$0xf]
    %v2444 = vld [vmem:[#allocation4 + $0x70] sm:$0xf]
    %v2445 = vld [vmem:[#allocation4 + $0x74] sm:$0xf]
    %v2446 = vld [vmem:[#allocation4 + $0x78] sm:$0xf]
    %v2447 = vld [vmem:[#allocation4 + $0x7c] sm:$0xf]
    %v2448 = vld [vmem:[%s1 + $0x43] ss:$0 sm:$0xff]
    %v2465 = vunpack.c.l.b16 %v2432
    %v2466 = vunpack.c.l.b16 %v2433
    %v2467 = vunpack.c.l.b16 %v2434
    %v2468 = vunpack.c.l.b16 %v2435
    %v2469 = vunpack.c.l.b16 %v2436
    %v2470 = vunpack.c.l.b16 %v2437
    %v2471 = vunpack.c.l.b16 %v2438
    %v2472 = vunpack.c.l.b16 %v2439
    %v2473 = vunpack.c.l.b16 %v2440
    %v2474 = vunpack.c.l.b16 %v2441
    %v2475 = vunpack.c.l.b16 %v2442
    %v2476 = vunpack.c.l.b16 %v2443
    %v2477 = vunpack.c.l.b16 %v2444
    %v2478 = vunpack.c.l.b16 %v2445
    %v2479 = vunpack.c.l.b16 %v2446
    %v2480 = vunpack.c.l.b16 %v2447
    %v2481 = vpack.c.b16 %v2466, %v2465
    %v2482 = vpack.c.b16 %v2468, %v2467
    %v2483 = vpack.c.b16 %v2470, %v2469
    %v2484 = vpack.c.b16 %v2472, %v2471
    %v2485 = vpack.c.b16 %v2474, %v2473
    %v2486 = vpack.c.b16 %v2476, %v2475
    %v2487 = vpack.c.b16 %v2478, %v2477
    %v2488 = vpack.c.b16 %v2480, %v2479
    %2497 = vmatprep.subr.bf16.mxu0 0
    %2498 = vmatpush1.bf16.msra.mxu0 %v2481
    %2499 = vmatprep.subr.bf16.mxu0 0
    %2500 = vmatpush1.bf16.msra.mxu0 %v2482
    %2501 = vmatprep.subr.bf16.mxu0 0
    %2502 = vmatpush1.bf16.msra.mxu0 %v2483
    %2503 = vmatprep.subr.bf16.mxu0 0
    %2504 = vmatpush1.bf16.msra.mxu0 %v2484
    %2505 = vmatprep.subr.bf16.mxu0 0
    %2506 = vmatpush1.bf16.msra.mxu0 %v2485
    %2507 = vmatprep.subr.bf16.mxu0 0
    %2508 = vmatpush1.bf16.msra.mxu0 %v2486
    %2509 = vmatprep.subr.bf16.mxu0 0
    %2510 = vmatpush1.bf16.msra.mxu0 %v2487
    %2511 = vmatprep.subr.bf16.mxu0 0
    %2512 = vmatpush1.bf16.msra.mxu0 %v2488
    %2513 = vmatprep.subr.bf16.mxu0 0
    %2514 = vmatpush1.bf16.msra.mxu0 0
    %2515 = vmatprep.subr.bf16.mxu0 0
    %2516 = vmatpush1.bf16.msra.mxu0 0
    %2517 = vmatprep.subr.bf16.mxu0 0
    %2518 = vmatpush1.bf16.msra.mxu0 0
    %2519 = vmatprep.subr.bf16.mxu0 0
    %2520 = vmatpush1.bf16.msra.mxu0 0
    %2521 = vmatprep.subr.bf16.mxu0 0
    %2522 = vmatpush1.bf16.msra.mxu0 0
    %2523 = vmatprep.subr.bf16.mxu0 0
    %2524 = vmatpush1.bf16.msra.mxu0 0
    %2525 = vmatprep.subr.bf16.mxu0 0
    %2526 = vmatpush1.bf16.msra.mxu0 0
    %2527 = vmatprep.subr.bf16.mxu0 0
    %2528 = vmatpush1.bf16.msra.mxu0 0
    %2529 = vmatprep.mubr.bf16.mxu0 0
    %2530 = vmatmul.mubr.bf16.gmra.mrb[0].mxu0 %v2431
    %v2531 = vpop.f32.mrb[0].mxu0
    %v2532 = vadd.f32 %v2448, %v2531
    %v2533 = vpop.f32.mrb[0].mxu0
    %v2534 = vpop.f32.mrb[0].mxu0
    %v2535 = vadd.f32 %v2448, %v2534
    %v2536 = vpop.f32.mrb[0].mxu0
    %2537 = vdwg.mxu0
    %v2538 = vadd.f32 %v1712, %v2532
    %v2539 = vadd.f32 %v1713, %v2535
    %v2540 = vld [vmem:[%s1 + $0x44] ss:$0 sm:$0xff]
    %v2541 = vld [vmem:[%s1 + $0x45] ss:$0 sm:$0xff]
    %2542 = vadd.xlane.f32.xlu0 %v2538
    %v2543 = vpop.xlane.xlu0 %2542
    %2544 = vadd.xlane.f32.xlu0 %v2539
    %v2545 = vpop.xlane.xlu0 %2544
    %v2546 = vmul.f32 %v2543, %v87
    %v2547 = vmul.f32 %v2545, %v87
    %v2548 = vsub.f32 %v2538, %v2546
    %v2549 = vsub.f32 %v2539, %v2547
    %v2550 = vmul.f32 %v2548, %v2548
    %v2551 = vmul.f32 %v2549, %v2549
    %2552 = vadd.xlane.f32.xlu0 %v2550
    %v2553 = vpop.xlane.xlu0 %2552
    %2554 = vadd.xlane.f32.xlu0 %v2551
    %v2555 = vpop.xlane.xlu0 %2554
    %v2556 = vmul.f32 %v2553, %v87
    %v2557 = vmul.f32 %v2555, %v87
    %v2558 = vadd.f32 %v2556, 1e-12
    %v2559 = vadd.f32 %v2557, 1e-12
    %v2560 = vrsqrt.pop %v2558
    %v2561 = vrsqrt.pop %v2559
    %v2562 = vmul.f32 %v2548, %v2560
    %v2563 = vmul.f32 %v2549, %v2561
    %v2564 = vmul.f32 %v2562, %v2540
    %v2565 = vmul.f32 %v2563, %v2540
    %v2566 = vadd.f32 %v2564, %v2541
    %v2567 = vadd.f32 %v2565, %v2541
    %v2568 = vpack.c.bf16 %v2567, %v2566
    %v2569 = vld [vmem:[#allocation8 + $0x100] sm:$0xff]
    %v2570 = vld [vmem:[#allocation8 + $0x108] sm:$0xff]
    %v2571 = vld [vmem:[#allocation8 + $0x110] sm:$0xff]
    %v2572 = vld [vmem:[#allocation8 + $0x118] sm:$0xff]
    %v2573 = vld [vmem:[#allocation8 + $0x120] sm:$0xff]
    %v2574 = vld [vmem:[#allocation8 + $0x128] sm:$0xff]
    %v2575 = vld [vmem:[#allocation8 + $0x130] sm:$0xff]
    %v2576 = vld [vmem:[#allocation8 + $0x138] sm:$0xff]
    %v2577 = vld [vmem:[#allocation8 + $0x140] sm:$0xff]
    %v2578 = vld [vmem:[#allocation8 + $0x148] sm:$0xff]
    %v2579 = vld [vmem:[#allocation8 + $0x150] sm:$0xff]
    %v2580 = vld [vmem:[#allocation8 + $0x158] sm:$0xff]
    %v2581 = vld [vmem:[#allocation8 + $0x160] sm:$0xff]
    %v2582 = vld [vmem:[#allocation8 + $0x168] sm:$0xff]
    %v2583 = vld [vmem:[#allocation8 + $0x170] sm:$0xff]
    %v2584 = vld [vmem:[#allocation8 + $0x178] sm:$0xff]
    %v2585 = vld [vmem:[#allocation8 + $0x180] sm:$0xff]
    %v2586 = vld [vmem:[#allocation8 + $0x188] sm:$0xff]
    %v2587 = vld [vmem:[#allocation8 + $0x190] sm:$0xff]
    %v2588 = vld [vmem:[#allocation8 + $0x198] sm:$0xff]
    %v2589 = vld [vmem:[#allocation8 + $0x1a0] sm:$0xff]
    %v2590 = vld [vmem:[#allocation8 + $0x1a8] sm:$0xff]
    %v2591 = vld [vmem:[#allocation8 + $0x1b0] sm:$0xff]
    %v2592 = vld [vmem:[#allocation8 + $0x1b8] sm:$0xff]
    %v2593 = vld [vmem:[#allocation8 + $0x1c0] sm:$0xff]
    %v2594 = vld [vmem:[#allocation8 + $0x1c8] sm:$0xff]
    %v2595 = vld [vmem:[#allocation8 + $0x1d0] sm:$0xff]
    %v2596 = vld [vmem:[#allocation8 + $0x1d8] sm:$0xff]
    %v2597 = vld [vmem:[#allocation8 + $0x1e0] sm:$0xff]
    %v2598 = vld [vmem:[#allocation8 + $0x1e8] sm:$0xff]
    %v2599 = vld [vmem:[#allocation8 + $0x1f0] sm:$0xff]
    %v2600 = vld [vmem:[#allocation8 + $0x1f8] sm:$0xff]
    %s2601 = scalar_lea.vmem %s1, 70
    %v2602 = vld [vmem:[%s2601] ss:$8 sm:$0xf]
    %v2604 = vlaneseq
    %v2605 = vshrl.u32 %v2604, 7
    %v2606 = vsub.s32 0, %v2605
    %v2607 = vrot.slane %v2602, %v2606
    %v2608 = vlaneseq
    %v2609 = vshrl.u32 %v2608, 7
    %v2610 = vsub.s32 1, %v2609
    %v2611 = vrot.slane %v2602, %v2610
    %v2612 = vlaneseq
    %v2613 = vshrl.u32 %v2612, 7
    %v2614 = vsub.s32 2, %v2613
    %v2615 = vrot.slane %v2602, %v2614
    %v2616 = vlaneseq
    %v2617 = vshrl.u32 %v2616, 7
    %v2618 = vsub.s32 3, %v2617
    %v2619 = vrot.slane %v2602, %v2618
    %v2656 = vunpack.c.l.b16 %v2569
    %v2657 = vunpack.c.h.b16 %v2569
    %v2658 = vunpack.c.l.b16 %v2570
    %v2659 = vunpack.c.h.b16 %v2570
    %v2660 = vunpack.c.l.b16 %v2571
    %v2661 = vunpack.c.h.b16 %v2571
    %v2662 = vunpack.c.l.b16 %v2572
    %v2663 = vunpack.c.h.b16 %v2572
    %v2664 = vunpack.c.l.b16 %v2573
    %v2665 = vunpack.c.h.b16 %v2573
    %v2666 = vunpack.c.l.b16 %v2574
    %v2667 = vunpack.c.h.b16 %v2574
    %v2668 = vunpack.c.l.b16 %v2575
    %v2669 = vunpack.c.h.b16 %v2575
    %v2670 = vunpack.c.l.b16 %v2576
    %v2671 = vunpack.c.h.b16 %v2576
    %v2672 = vunpack.c.l.b16 %v2577
    %v2673 = vunpack.c.h.b16 %v2577
    %v2674 = vunpack.c.l.b16 %v2578
    %v2675 = vunpack.c.h.b16 %v2578
    %v2676 = vunpack.c.l.b16 %v2579
    %v2677 = vunpack.c.h.b16 %v2579
    %v2678 = vunpack.c.l.b16 %v2580
    %v2679 = vunpack.c.h.b16 %v2580
    %v2680 = vunpack.c.l.b16 %v2581
    %v2681 = vunpack.c.h.b16 %v2581
    %v2682 = vunpack.c.l.b16 %v2582
    %v2683 = vunpack.c.h.b16 %v2582
    %v2684 = vunpack.c.l.b16 %v2583
    %v2685 = vunpack.c.h.b16 %v2583
    %v2686 = vunpack.c.l.b16 %v2584
    %v2687 = vunpack.c.h.b16 %v2584
    %v2688 = vunpack.c.l.b16 %v2585
    %v2689 = vunpack.c.h.b16 %v2585
    %v2690 = vunpack.c.l.b16 %v2586
    %v2691 = vunpack.c.h.b16 %v2586
    %v2692 = vunpack.c.l.b16 %v2587
    %v2693 = vunpack.c.h.b16 %v2587
    %v2694 = vunpack.c.l.b16 %v2588
    %v2695 = vunpack.c.h.b16 %v2588
    %v2696 = vunpack.c.l.b16 %v2589
    %v2697 = vunpack.c.h.b16 %v2589
    %v2698 = vunpack.c.l.b16 %v2590
    %v2699 = vunpack.c.h.b16 %v2590
    %v2700 = vunpack.c.l.b16 %v2591
    %v2701 = vunpack.c.h.b16 %v2591
    %v2702 = vunpack.c.l.b16 %v2592
    %v2703 = vunpack.c.h.b16 %v2592
    %v2704 = vunpack.c.l.b16 %v2593
    %v2705 = vunpack.c.h.b16 %v2593
    %v2706 = vunpack.c.l.b16 %v2594
    %v2707 = vunpack.c.h.b16 %v2594
    %v2708 = vunpack.c.l.b16 %v2595
    %v2709 = vunpack.c.h.b16 %v2595
    %v2710 = vunpack.c.l.b16 %v2596
    %v2711 = vunpack.c.h.b16 %v2596
    %v2712 = vunpack.c.l.b16 %v2597
    %v2713 = vunpack.c.h.b16 %v2597
    %v2714 = vunpack.c.l.b16 %v2598
    %v2715 = vunpack.c.h.b16 %v2598
    %v2716 = vunpack.c.l.b16 %v2599
    %v2717 = vunpack.c.h.b16 %v2599
    %v2718 = vunpack.c.l.b16 %v2600
    %v2719 = vunpack.c.h.b16 %v2600
    %v2720 = vpack.c.b16 %v2660, %v2656
    %v2721 = vpack.c.b16 %v2661, %v2657
    %v2722 = vpack.c.b16 %v2662, %v2658
    %v2723 = vpack.c.b16 %v2663, %v2659
    %v2724 = vpack.c.b16 %v2668, %v2664
    %v2725 = vpack.c.b16 %v2669, %v2665
    %v2726 = vpack.c.b16 %v2670, %v2666
    %v2727 = vpack.c.b16 %v2671, %v2667
    %v2728 = vpack.c.b16 %v2676, %v2672
    %v2729 = vpack.c.b16 %v2677, %v2673
    %v2730 = vpack.c.b16 %v2678, %v2674
    %v2731 = vpack.c.b16 %v2679, %v2675
    %v2732 = vpack.c.b16 %v2684, %v2680
    %v2733 = vpack.c.b16 %v2685, %v2681
    %v2734 = vpack.c.b16 %v2686, %v2682
    %v2735 = vpack.c.b16 %v2687, %v2683
    %v2736 = vpack.c.b16 %v2692, %v2688
    %v2737 = vpack.c.b16 %v2693, %v2689
    %v2738 = vpack.c.b16 %v2694, %v2690
    %v2739 = vpack.c.b16 %v2695, %v2691
    %v2740 = vpack.c.b16 %v2700, %v2696
    %v2741 = vpack.c.b16 %v2701, %v2697
    %v2742 = vpack.c.b16 %v2702, %v2698
    %v2743 = vpack.c.b16 %v2703, %v2699
    %v2744 = vpack.c.b16 %v2708, %v2704
    %v2745 = vpack.c.b16 %v2709, %v2705
    %v2746 = vpack.c.b16 %v2710, %v2706
    %v2747 = vpack.c.b16 %v2711, %v2707
    %v2748 = vpack.c.b16 %v2716, %v2712
    %v2749 = vpack.c.b16 %v2717, %v2713
    %v2750 = vpack.c.b16 %v2718, %v2714
    %v2751 = vpack.c.b16 %v2719, %v2715
    %2784 = vmatprep.subr.bf16.mxu0 %v2721
    %2785 = vmatpush1.bf16.msra.mxu0 %v2720
    %2786 = vmatprep.subr.bf16.mxu0 %v2725
    %2787 = vmatpush1.bf16.msra.mxu0 %v2724
    %2788 = vmatprep.subr.bf16.mxu0 %v2729
    %2789 = vmatpush1.bf16.msra.mxu0 %v2728
    %2790 = vmatprep.subr.bf16.mxu0 %v2733
    %2791 = vmatpush1.bf16.msra.mxu0 %v2732
    %2792 = vmatprep.subr.bf16.mxu0 %v2737
    %2793 = vmatpush1.bf16.msra.mxu0 %v2736
    %2794 = vmatprep.subr.bf16.mxu0 %v2741
    %2795 = vmatpush1.bf16.msra.mxu0 %v2740
    %2796 = vmatprep.subr.bf16.mxu0 %v2745
    %2797 = vmatpush1.bf16.msra.mxu0 %v2744
    %2798 = vmatprep.subr.bf16.mxu0 %v2749
    %2799 = vmatpush1.bf16.msra.mxu0 %v2748
    %2800 = vmatprep.subr.bf16.mxu0 0
    %2801 = vmatpush1.bf16.msra.mxu0 0
    %2802 = vmatprep.subr.bf16.mxu0 0
    %2803 = vmatpush1.bf16.msra.mxu0 0
    %2804 = vmatprep.subr.bf16.mxu0 0
    %2805 = vmatpush1.bf16.msra.mxu0 0
    %2806 = vmatprep.subr.bf16.mxu0 0
    %2807 = vmatpush1.bf16.msra.mxu0 0
    %2808 = vmatprep.subr.bf16.mxu0 0
    %2809 = vmatpush1.bf16.msra.mxu0 0
    %2810 = vmatprep.subr.bf16.mxu0 0
    %2811 = vmatpush1.bf16.msra.mxu0 0
    %2812 = vmatprep.subr.bf16.mxu0 0
    %2813 = vmatpush1.bf16.msra.mxu0 0
    %2814 = vmatprep.subr.bf16.mxu0 0
    %2815 = vmatpush1.bf16.msra.mxu0 0
    %2816 = vmatprep.mubr.bf16.mxu0 0
    %2817 = vmatmul.mubr.bf16.gmra.mrb[0].mxu0 %v2568
    %v2818 = vpop.f32.mrb[0].mxu0
    %v2819 = vadd.f32 %v2607, %v2818
    %v2820 = vpop.f32.mrb[0].mxu0
    %v2821 = vadd.f32 %v2611, %v2820
    %v2822 = vpop.f32.mrb[0].mxu0
    %v2823 = vadd.f32 %v2607, %v2822
    %v2824 = vpop.f32.mrb[0].mxu0
    %v2825 = vadd.f32 %v2611, %v2824
    %2826 = vdwg.mxu0
    %2827 = vmatprep.subr.bf16.mxu0 %v2723
    %2828 = vmatpush1.bf16.msra.mxu0 %v2722
    %2829 = vmatprep.subr.bf16.mxu0 %v2727
    %2830 = vmatpush1.bf16.msra.mxu0 %v2726
    %2831 = vmatprep.subr.bf16.mxu0 %v2731
    %2832 = vmatpush1.bf16.msra.mxu0 %v2730
    %2833 = vmatprep.subr.bf16.mxu0 %v2735
    %2834 = vmatpush1.bf16.msra.mxu0 %v2734
    %2835 = vmatprep.subr.bf16.mxu0 %v2739
    %2836 = vmatpush1.bf16.msra.mxu0 %v2738
    %2837 = vmatprep.subr.bf16.mxu0 %v2743
    %2838 = vmatpush1.bf16.msra.mxu0 %v2742
    %2839 = vmatprep.subr.bf16.mxu0 %v2747
    %2840 = vmatpush1.bf16.msra.mxu0 %v2746
    %2841 = vmatprep.subr.bf16.mxu0 %v2751
    %2842 = vmatpush1.bf16.msra.mxu0 %v2750
    %2843 = vmatprep.subr.bf16.mxu0 0
    %2844 = vmatpush1.bf16.msra.mxu0 0
    %2845 = vmatprep.subr.bf16.mxu0 0
    %2846 = vmatpush1.bf16.msra.mxu0 0
    %2847 = vmatprep.subr.bf16.mxu0 0
    %2848 = vmatpush1.bf16.msra.mxu0 0
    %2849 = vmatprep.subr.bf16.mxu0 0
    %2850 = vmatpush1.bf16.msra.mxu0 0
    %2851 = vmatprep.subr.bf16.mxu0 0
    %2852 = vmatpush1.bf16.msra.mxu0 0
    %2853 = vmatprep.subr.bf16.mxu0 0
    %2854 = vmatpush1.bf16.msra.mxu0 0
    %2855 = vmatprep.subr.bf16.mxu0 0
    %2856 = vmatpush1.bf16.msra.mxu0 0
    %2857 = vmatprep.subr.bf16.mxu0 0
    %2858 = vmatpush1.bf16.msra.mxu0 0
    %2859 = vmatprep.mubr.bf16.mxu0 0
    %2860 = vmatmul.mubr.bf16.gmra.mrb[0].mxu0 %v2568
    %v2861 = vpop.f32.mrb[0].mxu0
    %v2862 = vadd.f32 %v2615, %v2861
    %v2863 = vpop.f32.mrb[0].mxu0
    %v2864 = vadd.f32 %v2619, %v2863
    %v2865 = vpop.f32.mrb[0].mxu0
    %v2866 = vadd.f32 %v2615, %v2865
    %v2867 = vpop.f32.mrb[0].mxu0
    %v2868 = vadd.f32 %v2619, %v2867
    %2869 = vdwg.mxu0
    %v2870 = vmul.f32 %v2819, %v2819
    %v2871 = vmul.f32 %v2821, %v2821
    %v2872 = vmul.f32 %v2862, %v2862
    %v2873 = vmul.f32 %v2864, %v2864
    %v2874 = vmul.f32 %v2823, %v2823
    %v2875 = vmul.f32 %v2825, %v2825
    %v2876 = vmul.f32 %v2866, %v2866
    %v2877 = vmul.f32 %v2868, %v2868
    %v2878 = vmul.f32 %v2819, %v2870
    %v2879 = vmul.f32 %v2821, %v2871
    %v2880 = vmul.f32 %v2862, %v2872
    %v2881 = vmul.f32 %v2864, %v2873
    %v2882 = vmul.f32 %v2823, %v2874
    %v2883 = vmul.f32 %v2825, %v2875
    %v2884 = vmul.f32 %v2866, %v2876
    %v2885 = vmul.f32 %v2868, %v2877
    %v2886 = vmul.f32 %v2878, 0.044715
    %v2887 = vmul.f32 %v2879, 0.044715
    %v2888 = vmul.f32 %v2880, 0.044715
    %v2889 = vmul.f32 %v2881, 0.044715
    %v2890 = vmul.f32 %v2882, 0.044715
    %v2891 = vmul.f32 %v2883, 0.044715
    %v2892 = vmul.f32 %v2884, 0.044715
    %v2893 = vmul.f32 %v2885, 0.044715
    %v2894 = vadd.f32 %v2819, %v2886
    %v2895 = vadd.f32 %v2821, %v2887
    %v2896 = vadd.f32 %v2862, %v2888
    %v2897 = vadd.f32 %v2864, %v2889
    %v2898 = vadd.f32 %v2823, %v2890
    %v2899 = vadd.f32 %v2825, %v2891
    %v2900 = vadd.f32 %v2866, %v2892
    %v2901 = vadd.f32 %v2868, %v2893
    %v2902 = vmul.f32 %v2894, 0.7978846
    %v2903 = vmul.f32 %v2895, 0.7978846
    %v2904 = vmul.f32 %v2896, 0.7978846
    %v2905 = vmul.f32 %v2897, 0.7978846
    %v2906 = vmul.f32 %v2898, 0.7978846
    %v2907 = vmul.f32 %v2899, 0.7978846
    %v2908 = vmul.f32 %v2900, 0.7978846
    %v2909 = vmul.f32 %v2901, 0.7978846
    %v2910 = vtanh.pop %v2902
    %v2911 = vtanh.pop %v2903
    %v2912 = vtanh.pop %v2904
    %v2913 = vtanh.pop %v2905
    %v2914 = vtanh.pop %v2906
    %v2915 = vtanh.pop %v2907
    %v2916 = vtanh.pop %v2908
    %v2917 = vtanh.pop %v2909
    %v2918 = vadd.f32 %v2910, 1.0
    %v2919 = vadd.f32 %v2911, 1.0
    %v2920 = vadd.f32 %v2912, 1.0
    %v2921 = vadd.f32 %v2913, 1.0
    %v2922 = vadd.f32 %v2914, 1.0
    %v2923 = vadd.f32 %v2915, 1.0
    %v2924 = vadd.f32 %v2916, 1.0
    %v2925 = vadd.f32 %v2917, 1.0
    %v2926 = vmul.f32 %v2918, 0.5
    %v2927 = vmul.f32 %v2919, 0.5
    %v2928 = vmul.f32 %v2920, 0.5
    %v2929 = vmul.f32 %v2921, 0.5
    %v2930 = vmul.f32 %v2922, 0.5
    %v2931 = vmul.f32 %v2923, 0.5
    %v2932 = vmul.f32 %v2924, 0.5
    %v2933 = vmul.f32 %v2925, 0.5
    %v2934 = vmul.f32 %v2819, %v2926
    %v2935 = vmul.f32 %v2821, %v2927
    %v2936 = vmul.f32 %v2862, %v2928
    %v2937 = vmul.f32 %v2864, %v2929
    %v2938 = vmul.f32 %v2823, %v2930
    %v2939 = vmul.f32 %v2825, %v2931
    %v2940 = vmul.f32 %v2866, %v2932
    %v2941 = vmul.f32 %v2868, %v2933
    %v2942 = vpack.c.bf16 %v2938, %v2934
    %v2943 = vpack.c.bf16 %v2939, %v2935
    %v2944 = vpack.c.bf16 %v2940, %v2936
    %v2945 = vpack.c.bf16 %v2941, %v2937
    %v2946 = vld [vmem:[#allocation4 + $0x180] sm:$0xf]
    %v2947 = vld [vmem:[#allocation4 + $0x184] sm:$0xf]
    %v2948 = vld [vmem:[#allocation4 + $0x188] sm:$0xf]
    %v2949 = vld [vmem:[#allocation4 + $0x18c] sm:$0xf]
    %v2950 = vld [vmem:[#allocation4 + $0x190] sm:$0xf]
    %v2951 = vld [vmem:[#allocation4 + $0x194] sm:$0xf]
    %v2952 = vld [vmem:[#allocation4 + $0x198] sm:$0xf]
    %v2953 = vld [vmem:[#allocation4 + $0x19c] sm:$0xf]
    %v2954 = vld [vmem:[#allocation4 + $0x1a0] sm:$0xf]
    %v2955 = vld [vmem:[#allocation4 + $0x1a4] sm:$0xf]
    %v2956 = vld [vmem:[#allocation4 + $0x1a8] sm:$0xf]
    %v2957 = vld [vmem:[#allocation4 + $0x1ac] sm:$0xf]
    %v2958 = vld [vmem:[#allocation4 + $0x1b0] sm:$0xf]
    %v2959 = vld [vmem:[#allocation4 + $0x1b4] sm:$0xf]
    %v2960 = vld [vmem:[#allocation4 + $0x1b8] sm:$0xf]
    %v2961 = vld [vmem:[#allocation4 + $0x1bc] sm:$0xf]
    %v2962 = vld [vmem:[#allocation4 + $0x1c0] sm:$0xf]
    %v2963 = vld [vmem:[#allocation4 + $0x1c4] sm:$0xf]
    %v2964 = vld [vmem:[#allocation4 + $0x1c8] sm:$0xf]
    %v2965 = vld [vmem:[#allocation4 + $0x1cc] sm:$0xf]
    %v2966 = vld [vmem:[#allocation4 + $0x1d0] sm:$0xf]
    %v2967 = vld [vmem:[#allocation4 + $0x1d4] sm:$0xf]
    %v2968 = vld [vmem:[#allocation4 + $0x1d8] sm:$0xf]
    %v2969 = vld [vmem:[#allocation4 + $0x1dc] sm:$0xf]
    %v2970 = vld [vmem:[#allocation4 + $0x1e0] sm:$0xf]
    %v2971 = vld [vmem:[#allocation4 + $0x1e4] sm:$0xf]
    %v2972 = vld [vmem:[#allocation4 + $0x1e8] sm:$0xf]
    %v2973 = vld [vmem:[#allocation4 + $0x1ec] sm:$0xf]
    %v2974 = vld [vmem:[#allocation4 + $0x1f0] sm:$0xf]
    %v2975 = vld [vmem:[#allocation4 + $0x1f4] sm:$0xf]
    %v2976 = vld [vmem:[#allocation4 + $0x1f8] sm:$0xf]
    %v2977 = vld [vmem:[#allocation4 + $0x1fc] sm:$0xf]
    %v2978 = vld [vmem:[#allocation4 + $0x200] sm:$0xf]
    %v2979 = vld [vmem:[#allocation4 + $0x204] sm:$0xf]
    %v2980 = vld [vmem:[#allocation4 + $0x208] sm:$0xf]
    %v2981 = vld [vmem:[#allocation4 + $0x20c] sm:$0xf]
    %v2982 = vld [vmem:[#allocation4 + $0x210] sm:$0xf]
    %v2983 = vld [vmem:[#allocation4 + $0x214] sm:$0xf]
    %v2984 = vld [vmem:[#allocation4 + $0x218] sm:$0xf]
    %v2985 = vld [vmem:[#allocation4 + $0x21c] sm:$0xf]
    %v2986 = vld [vmem:[#allocation4 + $0x220] sm:$0xf]
    %v2987 = vld [vmem:[#allocation4 + $0x224] sm:$0xf]
    %v2988 = vld [vmem:[#allocation4 + $0x228] sm:$0xf]
    %v2989 = vld [vmem:[#allocation4 + $0x22c] sm:$0xf]
    %v2990 = vld [vmem:[#allocation4 + $0x230] sm:$0xf]
    %v2991 = vld [vmem:[#allocation4 + $0x234] sm:$0xf]
    %v2992 = vld [vmem:[#allocation4 + $0x238] sm:$0xf]
    %v2993 = vld [vmem:[#allocation4 + $0x23c] sm:$0xf]
    %v2994 = vld [vmem:[#allocation4 + $0x240] sm:$0xf]
    %v2995 = vld [vmem:[#allocation4 + $0x244] sm:$0xf]
    %v2996 = vld [vmem:[#allocation4 + $0x248] sm:$0xf]
    %v2997 = vld [vmem:[#allocation4 + $0x24c] sm:$0xf]
    %v2998 = vld [vmem:[#allocation4 + $0x250] sm:$0xf]
    %v2999 = vld [vmem:[#allocation4 + $0x254] sm:$0xf]
    %v3000 = vld [vmem:[#allocation4 + $0x258] sm:$0xf]
    %v3001 = vld [vmem:[#allocation4 + $0x25c] sm:$0xf]
    %v3002 = vld [vmem:[#allocation4 + $0x260] sm:$0xf]
    %v3003 = vld [vmem:[#allocation4 + $0x264] sm:$0xf]
    %v3004 = vld [vmem:[#allocation4 + $0x268] sm:$0xf]
    %v3005 = vld [vmem:[#allocation4 + $0x26c] sm:$0xf]
    %v3006 = vld [vmem:[#allocation4 + $0x270] sm:$0xf]
    %v3007 = vld [vmem:[#allocation4 + $0x274] sm:$0xf]
    %v3008 = vld [vmem:[#allocation4 + $0x278] sm:$0xf]
    %v3009 = vld [vmem:[#allocation4 + $0x27c] sm:$0xf]
    %v3010 = vld [vmem:[%s1 + $0x47] ss:$0 sm:$0xff]
    %v3075 = vunpack.c.l.b16 %v2946
    %v3076 = vunpack.c.l.b16 %v2947
    %v3077 = vunpack.c.l.b16 %v2948
    %v3078 = vunpack.c.l.b16 %v2949
    %v3079 = vunpack.c.l.b16 %v2950
    %v3080 = vunpack.c.l.b16 %v2951
    %v3081 = vunpack.c.l.b16 %v2952
    %v3082 = vunpack.c.l.b16 %v2953
    %v3083 = vunpack.c.l.b16 %v2954
    %v3084 = vunpack.c.l.b16 %v2955
    %v3085 = vunpack.c.l.b16 %v2956
    %v3086 = vunpack.c.l.b16 %v2957
    %v3087 = vunpack.c.l.b16 %v2958
    %v3088 = vunpack.c.l.b16 %v2959
    %v3089 = vunpack.c.l.b16 %v2960
    %v3090 = vunpack.c.l.b16 %v2961
    %v3091 = vunpack.c.l.b16 %v2962
    %v3092 = vunpack.c.l.b16 %v2963
    %v3093 = vunpack.c.l.b16 %v2964
    %v3094 = vunpack.c.l.b16 %v2965
    %v3095 = vunpack.c.l.b16 %v2966
    %v3096 = vunpack.c.l.b16 %v2967
    %v3097 = vunpack.c.l.b16 %v2968
    %v3098 = vunpack.c.l.b16 %v2969
    %v3099 = vunpack.c.l.b16 %v2970
    %v3100 = vunpack.c.l.b16 %v2971
    %v3101 = vunpack.c.l.b16 %v2972
    %v3102 = vunpack.c.l.b16 %v2973
    %v3103 = vunpack.c.l.b16 %v2974
    %v3104 = vunpack.c.l.b16 %v2975
    %v3105 = vunpack.c.l.b16 %v2976
    %v3106 = vunpack.c.l.b16 %v2977
    %v3107 = vunpack.c.l.b16 %v2978
    %v3108 = vunpack.c.l.b16 %v2979
    %v3109 = vunpack.c.l.b16 %v2980
    %v3110 = vunpack.c.l.b16 %v2981
    %v3111 = vunpack.c.l.b16 %v2982
    %v3112 = vunpack.c.l.b16 %v2983
    %v3113 = vunpack.c.l.b16 %v2984
    %v3114 = vunpack.c.l.b16 %v2985
    %v3115 = vunpack.c.l.b16 %v2986
    %v3116 = vunpack.c.l.b16 %v2987
    %v3117 = vunpack.c.l.b16 %v2988
    %v3118 = vunpack.c.l.b16 %v2989
    %v3119 = vunpack.c.l.b16 %v2990
    %v3120 = vunpack.c.l.b16 %v2991
    %v3121 = vunpack.c.l.b16 %v2992
    %v3122 = vunpack.c.l.b16 %v2993
    %v3123 = vunpack.c.l.b16 %v2994
    %v3124 = vunpack.c.l.b16 %v2995
    %v3125 = vunpack.c.l.b16 %v2996
    %v3126 = vunpack.c.l.b16 %v2997
    %v3127 = vunpack.c.l.b16 %v2998
    %v3128 = vunpack.c.l.b16 %v2999
    %v3129 = vunpack.c.l.b16 %v3000
    %v3130 = vunpack.c.l.b16 %v3001
    %v3131 = vunpack.c.l.b16 %v3002
    %v3132 = vunpack.c.l.b16 %v3003
    %v3133 = vunpack.c.l.b16 %v3004
    %v3134 = vunpack.c.l.b16 %v3005
    %v3135 = vunpack.c.l.b16 %v3006
    %v3136 = vunpack.c.l.b16 %v3007
    %v3137 = vunpack.c.l.b16 %v3008
    %v3138 = vunpack.c.l.b16 %v3009
    %v3139 = vpack.c.b16 %v3076, %v3075
    %v3140 = vpack.c.b16 %v3078, %v3077
    %v3141 = vpack.c.b16 %v3080, %v3079
    %v3142 = vpack.c.b16 %v3082, %v3081
    %v3143 = vpack.c.b16 %v3084, %v3083
    %v3144 = vpack.c.b16 %v3086, %v3085
    %v3145 = vpack.c.b16 %v3088, %v3087
    %v3146 = vpack.c.b16 %v3090, %v3089
    %v3147 = vpack.c.b16 %v3092, %v3091
    %v3148 = vpack.c.b16 %v3094, %v3093
    %v3149 = vpack.c.b16 %v3096, %v3095
    %v3150 = vpack.c.b16 %v3098, %v3097
    %v3151 = vpack.c.b16 %v3100, %v3099
    %v3152 = vpack.c.b16 %v3102, %v3101
    %v3153 = vpack.c.b16 %v3104, %v3103
    %v3154 = vpack.c.b16 %v3106, %v3105
    %v3155 = vpack.c.b16 %v3108, %v3107
    %v3156 = vpack.c.b16 %v3110, %v3109
    %v3157 = vpack.c.b16 %v3112, %v3111
    %v3158 = vpack.c.b16 %v3114, %v3113
    %v3159 = vpack.c.b16 %v3116, %v3115
    %v3160 = vpack.c.b16 %v3118, %v3117
    %v3161 = vpack.c.b16 %v3120, %v3119
    %v3162 = vpack.c.b16 %v3122, %v3121
    %v3163 = vpack.c.b16 %v3124, %v3123
    %v3164 = vpack.c.b16 %v3126, %v3125
    %v3165 = vpack.c.b16 %v3128, %v3127
    %v3166 = vpack.c.b16 %v3130, %v3129
    %v3167 = vpack.c.b16 %v3132, %v3131
    %v3168 = vpack.c.b16 %v3134, %v3133
    %v3169 = vpack.c.b16 %v3136, %v3135
    %v3170 = vpack.c.b16 %v3138, %v3137
    %3203 = vmatprep.subr.bf16.mxu0 0
    %3204 = vmatpush1.bf16.msra.mxu0 %v3139
    %3205 = vmatprep.subr.bf16.mxu0 0
    %3206 = vmatpush1.bf16.msra.mxu0 %v3140
    %3207 = vmatprep.subr.bf16.mxu0 0
    %3208 = vmatpush1.bf16.msra.mxu0 %v3141
    %3209 = vmatprep.subr.bf16.mxu0 0
    %3210 = vmatpush1.bf16.msra.mxu0 %v3142
    %3211 = vmatprep.subr.bf16.mxu0 0
    %3212 = vmatpush1.bf16.msra.mxu0 %v3143
    %3213 = vmatprep.subr.bf16.mxu0 0
    %3214 = vmatpush1.bf16.msra.mxu0 %v3144
    %3215 = vmatprep.subr.bf16.mxu0 0
    %3216 = vmatpush1.bf16.msra.mxu0 %v3145
    %3217 = vmatprep.subr.bf16.mxu0 0
    %3218 = vmatpush1.bf16.msra.mxu0 %v3146
    %3219 = vmatprep.subr.bf16.mxu0 0
    %3220 = vmatpush1.bf16.msra.mxu0 %v3147
    %3221 = vmatprep.subr.bf16.mxu0 0
    %3222 = vmatpush1.bf16.msra.mxu0 %v3148
    %3223 = vmatprep.subr.bf16.mxu0 0
    %3224 = vmatpush1.bf16.msra.mxu0 %v3149
    %3225 = vmatprep.subr.bf16.mxu0 0
    %3226 = vmatpush1.bf16.msra.mxu0 %v3150
    %3227 = vmatprep.subr.bf16.mxu0 0
    %3228 = vmatpush1.bf16.msra.mxu0 %v3151
    %3229 = vmatprep.subr.bf16.mxu0 0
    %3230 = vmatpush1.bf16.msra.mxu0 %v3152
    %3231 = vmatprep.subr.bf16.mxu0 0
    %3232 = vmatpush1.bf16.msra.mxu0 %v3153
    %3233 = vmatprep.subr.bf16.mxu0 0
    %3234 = vmatpush1.bf16.msra.mxu0 %v3154
    %3235 = vmatprep.mubr.bf16.mxu0 %v2943
    %3236 = vmatmul.mubr.bf16.gmra.mrb[0].mxu0 %v2942
    %v3237 = vpop.f32.mrb[0].mxu0
    %v3238 = vadd.f32 %v3010, %v3237
    %v3239 = vpop.f32.mrb[0].mxu0
    %v3240 = vpop.f32.mrb[0].mxu0
    %v3241 = vadd.f32 %v3010, %v3240
    %v3242 = vpop.f32.mrb[0].mxu0
    %3243 = vdwg.mxu0
    %3244 = vmatprep.subr.bf16.mxu0 0
    %3245 = vmatpush1.bf16.msra.mxu0 %v3155
    %3246 = vmatprep.subr.bf16.mxu0 0
    %3247 = vmatpush1.bf16.msra.mxu0 %v3156
    %3248 = vmatprep.subr.bf16.mxu0 0
    %3249 = vmatpush1.bf16.msra.mxu0 %v3157
    %3250 = vmatprep.subr.bf16.mxu0 0
    %3251 = vmatpush1.bf16.msra.mxu0 %v3158
    %3252 = vmatprep.subr.bf16.mxu0 0
    %3253 = vmatpush1.bf16.msra.mxu0 %v3159
    %3254 = vmatprep.subr.bf16.mxu0 0
    %3255 = vmatpush1.bf16.msra.mxu0 %v3160
    %3256 = vmatprep.subr.bf16.mxu0 0
    %3257 = vmatpush1.bf16.msra.mxu0 %v3161
    %3258 = vmatprep.subr.bf16.mxu0 0
    %3259 = vmatpush1.bf16.msra.mxu0 %v3162
    %3260 = vmatprep.subr.bf16.mxu0 0
    %3261 = vmatpush1.bf16.msra.mxu0 %v3163
    %3262 = vmatprep.subr.bf16.mxu0 0
    %3263 = vmatpush1.bf16.msra.mxu0 %v3164
    %3264 = vmatprep.subr.bf16.mxu0 0
    %3265 = vmatpush1.bf16.msra.mxu0 %v3165
    %3266 = vmatprep.subr.bf16.mxu0 0
    %3267 = vmatpush1.bf16.msra.mxu0 %v3166
    %3268 = vmatprep.subr.bf16.mxu0 0
    %3269 = vmatpush1.bf16.msra.mxu0 %v3167
    %3270 = vmatprep.subr.bf16.mxu0 0
    %3271 = vmatpush1.bf16.msra.mxu0 %v3168
    %3272 = vmatprep.subr.bf16.mxu0 0
    %3273 = vmatpush1.bf16.msra.mxu0 %v3169
    %3274 = vmatprep.subr.bf16.mxu0 0
    %3275 = vmatpush1.bf16.msra.mxu0 %v3170
    %3276 = vmatprep.mubr.bf16.mxu0 %v2945
    %3277 = vmatmul.mubr.bf16.gmra.mrb[0].mxu0 %v2944
    %v3278 = vpop.f32.mrb[0].mxu0
    %v3279 = vadd.f32 %v3238, %v3278
    %v3280 = vpop.f32.mrb[0].mxu0
    %v3281 = vpop.f32.mrb[0].mxu0
    %v3282 = vadd.f32 %v3241, %v3281
    %v3283 = vpop.f32.mrb[0].mxu0
    %3284 = vdwg.mxu0
    %v3285 = vadd.f32 %v2566, %v3279
    %v3286 = vadd.f32 %v2567, %v3282
    %v3287 = vld [vmem:[%s1 + $0x80] ss:$0 sm:$0xff]
    %v3288 = vld [vmem:[%s1 + $0x81] ss:$0 sm:$0xff]
    %3289 = vadd.xlane.f32.xlu0 %v3285
    %v3290 = vpop.xlane.xlu0 %3289
    %3291 = vadd.xlane.f32.xlu0 %v3286
    %v3292 = vpop.xlane.xlu0 %3291
    %v3293 = vmul.f32 %v3290, %v87
    %v3294 = vmul.f32 %v3292, %v87
    %v3295 = vsub.f32 %v3285, %v3293
    %v3296 = vsub.f32 %v3286, %v3294
    %v3297 = vmul.f32 %v3295, %v3295
    %v3298 = vmul.f32 %v3296, %v3296
    %3299 = vadd.xlane.f32.xlu0 %v3297
    %v3300 = vpop.xlane.xlu0 %3299
    %3301 = vadd.xlane.f32.xlu0 %v3298
    %v3302 = vpop.xlane.xlu0 %3301
    %v3303 = vmul.f32 %v3300, %v87
    %v3304 = vmul.f32 %v3302, %v87
    %v3305 = vadd.f32 %v3303, 1e-12
    %v3306 = vadd.f32 %v3304, 1e-12
    %v3307 = vrsqrt.pop %v3305
    %v3308 = vrsqrt.pop %v3306
    %v3309 = vmul.f32 %v3295, %v3307
    %v3310 = vmul.f32 %v3296, %v3308
    %v3311 = vmul.f32 %v3309, %v3287
    %v3312 = vmul.f32 %v3310, %v3287
    %v3313 = vadd.f32 %v3311, %v3288
    %v3314 = vadd.f32 %v3312, %v3288
    %v3315 = vpack.c.bf16 %v3314, %v3313
    %v3316 = vld [vmem:[#allocation9] sm:$0xff]
    %v3317 = vld [vmem:[#allocation9 + $0x8] sm:$0xff]
    %v3318 = vld [vmem:[#allocation9 + $0x10] sm:$0xff]
    %v3319 = vld [vmem:[#allocation9 + $0x18] sm:$0xff]
    %v3320 = vld [vmem:[#allocation9 + $0x20] sm:$0xff]
    %v3321 = vld [vmem:[#allocation9 + $0x28] sm:$0xff]
    %v3322 = vld [vmem:[#allocation9 + $0x30] sm:$0xff]
    %v3323 = vld [vmem:[#allocation9 + $0x38] sm:$0xff]
    %v3324 = vld [vmem:[#allocation9 + $0x40] sm:$0xff]
    %v3325 = vld [vmem:[#allocation9 + $0x48] sm:$0xff]
    %v3326 = vld [vmem:[#allocation9 + $0x50] sm:$0xff]
    %v3327 = vld [vmem:[#allocation9 + $0x58] sm:$0xff]
    %v3328 = vld [vmem:[#allocation9 + $0x60] sm:$0xff]
    %v3329 = vld [vmem:[#allocation9 + $0x68] sm:$0xff]
    %v3330 = vld [vmem:[#allocation9 + $0x70] sm:$0xff]
    %v3331 = vld [vmem:[#allocation9 + $0x78] sm:$0xff]
    %v3332 = vld [vmem:[#allocation9 + $0x80] sm:$0xff]
    %v3333 = vld [vmem:[#allocation9 + $0x88] sm:$0xff]
    %v3334 = vld [vmem:[#allocation9 + $0x90] sm:$0xff]
    %v3335 = vld [vmem:[#allocation9 + $0x98] sm:$0xff]
    %v3336 = vld [vmem:[#allocation9 + $0xa0] sm:$0xff]
    %v3337 = vld [vmem:[#allocation9 + $0xa8] sm:$0xff]
    %v3338 = vld [vmem:[#allocation9 + $0xb0] sm:$0xff]
    %v3339 = vld [vmem:[#allocation9 + $0xb8] sm:$0xff]
    %v3340 = vld [vmem:[#allocation9 + $0xc0] sm:$0xff]
    %v3341 = vld [vmem:[#allocation9 + $0xc8] sm:$0xff]
    %v3342 = vld [vmem:[#allocation9 + $0xd0] sm:$0xff]
    %v3343 = vld [vmem:[#allocation9 + $0xd8] sm:$0xff]
    %v3344 = vld [vmem:[#allocation9 + $0xe0] sm:$0xff]
    %v3345 = vld [vmem:[#allocation9 + $0xe8] sm:$0xff]
    %v3346 = vld [vmem:[#allocation9 + $0xf0] sm:$0xff]
    %v3347 = vld [vmem:[#allocation9 + $0xf8] sm:$0xff]
    %v3348 = vld [vmem:[#allocation9 + $0x100] sm:$0xff]
    %v3349 = vld [vmem:[#allocation9 + $0x108] sm:$0xff]
    %v3350 = vld [vmem:[#allocation9 + $0x110] sm:$0xff]
    %v3351 = vld [vmem:[#allocation9 + $0x118] sm:$0xff]
    %v3352 = vld [vmem:[#allocation9 + $0x120] sm:$0xff]
    %v3353 = vld [vmem:[#allocation9 + $0x128] sm:$0xff]
    %v3354 = vld [vmem:[#allocation9 + $0x130] sm:$0xff]
    %v3355 = vld [vmem:[#allocation9 + $0x138] sm:$0xff]
    %v3356 = vld [vmem:[#allocation9 + $0x140] sm:$0xff]
    %v3357 = vld [vmem:[#allocation9 + $0x148] sm:$0xff]
    %v3358 = vld [vmem:[#allocation9 + $0x150] sm:$0xff]
    %v3359 = vld [vmem:[#allocation9 + $0x158] sm:$0xff]
    %v3360 = vld [vmem:[#allocation9 + $0x160] sm:$0xff]
    %v3361 = vld [vmem:[#allocation9 + $0x168] sm:$0xff]
    %v3362 = vld [vmem:[#allocation9 + $0x170] sm:$0xff]
    %v3363 = vld [vmem:[#allocation9 + $0x178] sm:$0xff]
    %v3364 = vld [vmem:[#allocation9 + $0x180] sm:$0xff]
    %v3365 = vld [vmem:[#allocation9 + $0x188] sm:$0xff]
    %v3366 = vld [vmem:[#allocation9 + $0x190] sm:$0xff]
    %v3367 = vld [vmem:[#allocation9 + $0x198] sm:$0xff]
    %v3368 = vld [vmem:[#allocation9 + $0x1a0] sm:$0xff]
    %v3369 = vld [vmem:[#allocation9 + $0x1a8] sm:$0xff]
    %v3370 = vld [vmem:[#allocation9 + $0x1b0] sm:$0xff]
    %v3371 = vld [vmem:[#allocation9 + $0x1b8] sm:$0xff]
    %v3372 = vld [vmem:[#allocation9 + $0x1c0] sm:$0xff]
    %v3373 = vld [vmem:[#allocation9 + $0x1c8] sm:$0xff]
    %v3374 = vld [vmem:[#allocation9 + $0x1d0] sm:$0xff]
    %v3375 = vld [vmem:[#allocation9 + $0x1d8] sm:$0xff]
    %v3376 = vld [vmem:[#allocation9 + $0x1e0] sm:$0xff]
    %v3377 = vld [vmem:[#allocation9 + $0x1e8] sm:$0xff]
    %v3378 = vld [vmem:[#allocation9 + $0x1f0] sm:$0xff]
    %v3379 = vld [vmem:[#allocation9 + $0x1f8] sm:$0xff]
    %s3380 = scalar_lea.vmem %s1, 130
    %v3381 = vld [vmem:[%s3380] ss:$8 sm:$0xf]
    %v3382 = vld [vmem:[%s3380] ss:$8 sm:$0xf0]
    %v3383 = vor.u32 %v3381, %v3382
    %v3385 = vlaneseq
    %v3386 = vshrl.u32 %v3385, 7
    %v3387 = vsub.s32 0, %v3386
    %v3388 = vrot.slane %v3383, %v3387
    %v3389 = vlaneseq
    %v3390 = vshrl.u32 %v3389, 7
    %v3391 = vsub.s32 1, %v3390
    %v3392 = vrot.slane %v3383, %v3391
    %v3393 = vlaneseq
    %v3394 = vshrl.u32 %v3393, 7
    %v3395 = vsub.s32 2, %v3394
    %v3396 = vrot.slane %v3383, %v3395
    %v3397 = vlaneseq
    %v3398 = vshrl.u32 %v3397, 7
    %v3399 = vsub.s32 3, %v3398
    %v3400 = vrot.slane %v3383, %v3399
    %v3401 = vlaneseq
    %v3402 = vshrl.u32 %v3401, 7
    %v3403 = vsub.s32 4, %v3402
    %v3404 = vrot.slane %v3383, %v3403
    %v3405 = vlaneseq
    %v3406 = vshrl.u32 %v3405, 7
    %v3407 = vsub.s32 5, %v3406
    %v3408 = vrot.slane %v3383, %v3407
    %v3409 = vlaneseq
    %v3410 = vshrl.u32 %v3409, 7
    %v3411 = vsub.s32 6, %v3410
    %v3412 = vrot.slane %v3383, %v3411
    %v3413 = vlaneseq
    %v3414 = vshrl.u32 %v3413, 7
    %v3415 = vsub.s32 7, %v3414
    %v3416 = vrot.slane %v3383, %v3415
    %v3489 = vunpack.c.l.b16 %v3316
    %v3490 = vunpack.c.h.b16 %v3316
    %v3491 = vunpack.c.l.b16 %v3317
    %v3492 = vunpack.c.h.b16 %v3317
    %v3493 = vunpack.c.l.b16 %v3318
    %v3494 = vunpack.c.h.b16 %v3318
    %v3495 = vunpack.c.l.b16 %v3319
    %v3496 = vunpack.c.h.b16 %v3319
    %v3497 = vunpack.c.l.b16 %v3320
    %v3498 = vunpack.c.h.b16 %v3320
    %v3499 = vunpack.c.l.b16 %v3321
    %v3500 = vunpack.c.h.b16 %v3321
    %v3501 = vunpack.c.l.b16 %v3322
    %v3502 = vunpack.c.h.b16 %v3322
    %v3503 = vunpack.c.l.b16 %v3323
    %v3504 = vunpack.c.h.b16 %v3323
    %v3505 = vunpack.c.l.b16 %v3324
    %v3506 = vunpack.c.h.b16 %v3324
    %v3507 = vunpack.c.l.b16 %v3325
    %v3508 = vunpack.c.h.b16 %v3325
    %v3509 = vunpack.c.l.b16 %v3326
    %v3510 = vunpack.c.h.b16 %v3326
    %v3511 = vunpack.c.l.b16 %v3327
    %v3512 = vunpack.c.h.b16 %v3327
    %v3513 = vunpack.c.l.b16 %v3328
    %v3514 = vunpack.c.h.b16 %v3328
    %v3515 = vunpack.c.l.b16 %v3329
    %v3516 = vunpack.c.h.b16 %v3329
    %v3517 = vunpack.c.l.b16 %v3330
    %v3518 = vunpack.c.h.b16 %v3330
    %v3519 = vunpack.c.l.b16 %v3331
    %v3520 = vunpack.c.h.b16 %v3331
    %v3521 = vunpack.c.l.b16 %v3332
    %v3522 = vunpack.c.h.b16 %v3332
    %v3523 = vunpack.c.l.b16 %v3333
    %v3524 = vunpack.c.h.b16 %v3333
    %v3525 = vunpack.c.l.b16 %v3334
    %v3526 = vunpack.c.h.b16 %v3334
    %v3527 = vunpack.c.l.b16 %v3335
    %v3528 = vunpack.c.h.b16 %v3335
    %v3529 = vunpack.c.l.b16 %v3336
    %v3530 = vunpack.c.h.b16 %v3336
    %v3531 = vunpack.c.l.b16 %v3337
    %v3532 = vunpack.c.h.b16 %v3337
    %v3533 = vunpack.c.l.b16 %v3338
    %v3534 = vunpack.c.h.b16 %v3338
    %v3535 = vunpack.c.l.b16 %v3339
    %v3536 = vunpack.c.h.b16 %v3339
    %v3537 = vunpack.c.l.b16 %v3340
    %v3538 = vunpack.c.h.b16 %v3340
    %v3539 = vunpack.c.l.b16 %v3341
    %v3540 = vunpack.c.h.b16 %v3341
    %v3541 = vunpack.c.l.b16 %v3342
    %v3542 = vunpack.c.h.b16 %v3342
    %v3543 = vunpack.c.l.b16 %v3343
    %v3544 = vunpack.c.h.b16 %v3343
    %v3545 = vunpack.c.l.b16 %v3344
    %v3546 = vunpack.c.h.b16 %v3344
    %v3547 = vunpack.c.l.b16 %v3345
    %v3548 = vunpack.c.h.b16 %v3345
    %v3549 = vunpack.c.l.b16 %v3346
    %v3550 = vunpack.c.h.b16 %v3346
    %v3551 = vunpack.c.l.b16 %v3347
    %v3552 = vunpack.c.h.b16 %v3347
    %v3553 = vunpack.c.l.b16 %v3348
    %v3554 = vunpack.c.h.b16 %v3348
    %v3555 = vunpack.c.l.b16 %v3349
    %v3556 = vunpack.c.h.b16 %v3349
    %v3557 = vunpack.c.l.b16 %v3350
    %v3558 = vunpack.c.h.b16 %v3350
    %v3559 = vunpack.c.l.b16 %v3351
    %v3560 = vunpack.c.h.b16 %v3351
    %v3561 = vunpack.c.l.b16 %v3352
    %v3562 = vunpack.c.h.b16 %v3352
    %v3563 = vunpack.c.l.b16 %v3353
    %v3564 = vunpack.c.h.b16 %v3353
    %v3565 = vunpack.c.l.b16 %v3354
    %v3566 = vunpack.c.h.b16 %v3354
    %v3567 = vunpack.c.l.b16 %v3355
    %v3568 = vunpack.c.h.b16 %v3355
    %v3569 = vunpack.c.l.b16 %v3356
    %v3570 = vunpack.c.h.b16 %v3356
    %v3571 = vunpack.c.l.b16 %v3357
    %v3572 = vunpack.c.h.b16 %v3357
    %v3573 = vunpack.c.l.b16 %v3358
    %v3574 = vunpack.c.h.b16 %v3358
    %v3575 = vunpack.c.l.b16 %v3359
    %v3576 = vunpack.c.h.b16 %v3359
    %v3577 = vunpack.c.l.b16 %v3360
    %v3578 = vunpack.c.h.b16 %v3360
    %v3579 = vunpack.c.l.b16 %v3361
    %v3580 = vunpack.c.h.b16 %v3361
    %v3581 = vunpack.c.l.b16 %v3362
    %v3582 = vunpack.c.h.b16 %v3362
    %v3583 = vunpack.c.l.b16 %v3363
    %v3584 = vunpack.c.h.b16 %v3363
    %v3585 = vunpack.c.l.b16 %v3364
    %v3586 = vunpack.c.h.b16 %v3364
    %v3587 = vunpack.c.l.b16 %v3365
    %v3588 = vunpack.c.h.b16 %v3365
    %v3589 = vunpack.c.l.b16 %v3366
    %v3590 = vunpack.c.h.b16 %v3366
    %v3591 = vunpack.c.l.b16 %v3367
    %v3592 = vunpack.c.h.b16 %v3367
    %v3593 = vunpack.c.l.b16 %v3368
    %v3594 = vunpack.c.h.b16 %v3368
    %v3595 = vunpack.c.l.b16 %v3369
    %v3596 = vunpack.c.h.b16 %v3369
    %v3597 = vunpack.c.l.b16 %v3370
    %v3598 = vunpack.c.h.b16 %v3370
    %v3599 = vunpack.c.l.b16 %v3371
    %v3600 = vunpack.c.h.b16 %v3371
    %v3601 = vunpack.c.l.b16 %v3372
    %v3602 = vunpack.c.h.b16 %v3372
    %v3603 = vunpack.c.l.b16 %v3373
    %v3604 = vunpack.c.h.b16 %v3373
    %v3605 = vunpack.c.l.b16 %v3374
    %v3606 = vunpack.c.h.b16 %v3374
    %v3607 = vunpack.c.l.b16 %v3375
    %v3608 = vunpack.c.h.b16 %v3375
    %v3609 = vunpack.c.l.b16 %v3376
    %v3610 = vunpack.c.h.b16 %v3376
    %v3611 = vunpack.c.l.b16 %v3377
    %v3612 = vunpack.c.h.b16 %v3377
    %v3613 = vunpack.c.l.b16 %v3378
    %v3614 = vunpack.c.h.b16 %v3378
    %v3615 = vunpack.c.l.b16 %v3379
    %v3616 = vunpack.c.h.b16 %v3379
    %v3617 = vpack.c.b16 %v3497, %v3489
    %v3618 = vpack.c.b16 %v3498, %v3490
    %v3619 = vpack.c.b16 %v3499, %v3491
    %v3620 = vpack.c.b16 %v3500, %v3492
    %v3621 = vpack.c.b16 %v3501, %v3493
    %v3622 = vpack.c.b16 %v3502, %v3494
    %v3623 = vpack.c.b16 %v3503, %v3495
    %v3624 = vpack.c.b16 %v3504, %v3496
    %v3625 = vpack.c.b16 %v3513, %v3505
    %v3626 = vpack.c.b16 %v3514, %v3506
    %v3627 = vpack.c.b16 %v3515, %v3507
    %v3628 = vpack.c.b16 %v3516, %v3508
    %v3629 = vpack.c.b16 %v3517, %v3509
    %v3630 = vpack.c.b16 %v3518, %v3510
    %v3631 = vpack.c.b16 %v3519, %v3511
    %v3632 = vpack.c.b16 %v3520, %v3512
    %v3633 = vpack.c.b16 %v3529, %v3521
    %v3634 = vpack.c.b16 %v3530, %v3522
    %v3635 = vpack.c.b16 %v3531, %v3523
    %v3636 = vpack.c.b16 %v3532, %v3524
    %v3637 = vpack.c.b16 %v3533, %v3525
    %v3638 = vpack.c.b16 %v3534, %v3526
    %v3639 = vpack.c.b16 %v3535, %v3527
    %v3640 = vpack.c.b16 %v3536, %v3528
    %v3641 = vpack.c.b16 %v3545, %v3537
    %v3642 = vpack.c.b16 %v3546, %v3538
    %v3643 = vpack.c.b16 %v3547, %v3539
    %v3644 = vpack.c.b16 %v3548, %v3540
    %v3645 = vpack.c.b16 %v3549, %v3541
    %v3646 = vpack.c.b16 %v3550, %v3542
    %v3647 = vpack.c.b16 %v3551, %v3543
    %v3648 = vpack.c.b16 %v3552, %v3544
    %v3649 = vpack.c.b16 %v3561, %v3553
    %v3650 = vpack.c.b16 %v3562, %v3554
    %v3651 = vpack.c.b16 %v3563, %v3555
    %v3652 = vpack.c.b16 %v3564, %v3556
    %v3653 = vpack.c.b16 %v3565, %v3557
    %v3654 = vpack.c.b16 %v3566, %v3558
    %v3655 = vpack.c.b16 %v3567, %v3559
    %v3656 = vpack.c.b16 %v3568, %v3560
    %v3657 = vpack.c.b16 %v3577, %v3569
    %v3658 = vpack.c.b16 %v3578, %v3570
    %v3659 = vpack.c.b16 %v3579, %v3571
    %v3660 = vpack.c.b16 %v3580, %v3572
    %v3661 = vpack.c.b16 %v3581, %v3573
    %v3662 = vpack.c.b16 %v3582, %v3574
    %v3663 = vpack.c.b16 %v3583, %v3575
    %v3664 = vpack.c.b16 %v3584, %v3576
    %v3665 = vpack.c.b16 %v3593, %v3585
    %v3666 = vpack.c.b16 %v3594, %v3586
    %v3667 = vpack.c.b16 %v3595, %v3587
    %v3668 = vpack.c.b16 %v3596, %v3588
    %v3669 = vpack.c.b16 %v3597, %v3589
    %v3670 = vpack.c.b16 %v3598, %v3590
    %v3671 = vpack.c.b16 %v3599, %v3591
    %v3672 = vpack.c.b16 %v3600, %v3592
    %v3673 = vpack.c.b16 %v3609, %v3601
    %v3674 = vpack.c.b16 %v3610, %v3602
    %v3675 = vpack.c.b16 %v3611, %v3603
    %v3676 = vpack.c.b16 %v3612, %v3604
    %v3677 = vpack.c.b16 %v3613, %v3605
    %v3678 = vpack.c.b16 %v3614, %v3606
    %v3679 = vpack.c.b16 %v3615, %v3607
    %v3680 = vpack.c.b16 %v3616, %v3608
    %3745 = vmatprep.subr.bf16.mxu0 %v3618
    %3746 = vmatpush1.bf16.msra.mxu0 %v3617
    %3747 = vmatprep.subr.bf16.mxu0 %v3626
    %3748 = vmatpush1.bf16.msra.mxu0 %v3625
    %3749 = vmatprep.subr.bf16.mxu0 %v3634
    %3750 = vmatpush1.bf16.msra.mxu0 %v3633
    %3751 = vmatprep.subr.bf16.mxu0 %v3642
    %3752 = vmatpush1.bf16.msra.mxu0 %v3641
    %3753 = vmatprep.subr.bf16.mxu0 %v3650
    %3754 = vmatpush1.bf16.msra.mxu0 %v3649
    %3755 = vmatprep.subr.bf16.mxu0 %v3658
    %3756 = vmatpush1.bf16.msra.mxu0 %v3657
    %3757 = vmatprep.subr.bf16.mxu0 %v3666
    %3758 = vmatpush1.bf16.msra.mxu0 %v3665
    %3759 = vmatprep.subr.bf16.mxu0 %v3674
    %3760 = vmatpush1.bf16.msra.mxu0 %v3673
    %3761 = vmatprep.subr.bf16.mxu0 0
    %3762 = vmatpush1.bf16.msra.mxu0 0
    %3763 = vmatprep.subr.bf16.mxu0 0
    %3764 = vmatpush1.bf16.msra.mxu0 0
    %3765 = vmatprep.subr.bf16.mxu0 0
    %3766 = vmatpush1.bf16.msra.mxu0 0
    %3767 = vmatprep.subr.bf16.mxu0 0
    %3768 = vmatpush1.bf16.msra.mxu0 0
    %3769 = vmatprep.subr.bf16.mxu0 0
    %3770 = vmatpush1.bf16.msra.mxu0 0
    %3771 = vmatprep.subr.bf16.mxu0 0
    %3772 = vmatpush1.bf16.msra.mxu0 0
    %3773 = vmatprep.subr.bf16.mxu0 0
    %3774 = vmatpush1.bf16.msra.mxu0 0
    %3775 = vmatprep.subr.bf16.mxu0 0
    %3776 = vmatpush1.bf16.msra.mxu0 0
    %3777 = vmatprep.mubr.bf16.mxu0 0
    %3778 = vmatmul.mubr.bf16.gmra.mrb[0].mxu0 %v3315
    %v3779 = vpop.f32.mrb[0].mxu0
    %v3780 = vadd.f32 %v3388, %v3779
    %v3781 = vpop.f32.mrb[0].mxu0
    %v3782 = vadd.f32 %v3392, %v3781
    %v3783 = vpop.f32.mrb[0].mxu0
    %v3784 = vadd.f32 %v3388, %v3783
    %v3785 = vpop.f32.mrb[0].mxu0
    %v3786 = vadd.f32 %v3392, %v3785
    %3787 = vdwg.mxu0
    %3788 = vmatprep.subr.bf16.mxu0 %v3620
    %3789 = vmatpush1.bf16.msra.mxu0 %v3619
    %3790 = vmatprep.subr.bf16.mxu0 %v3628
    %3791 = vmatpush1.bf16.msra.mxu0 %v3627
    %3792 = vmatprep.subr.bf16.mxu0 %v3636
    %3793 = vmatpush1.bf16.msra.mxu0 %v3635
    %3794 = vmatprep.subr.bf16.mxu0 %v3644
    %3795 = vmatpush1.bf16.msra.mxu0 %v3643
    %3796 = vmatprep.subr.bf16.mxu0 %v3652
    %3797 = vmatpush1.bf16.msra.mxu0 %v3651
    %3798 = vmatprep.subr.bf16.mxu0 %v3660
    %3799 = vmatpush1.bf16.msra.mxu0 %v3659
    %3800 = vmatprep.subr.bf16.mxu0 %v3668
    %3801 = vmatpush1.bf16.msra.mxu0 %v3667
    %3802 = vmatprep.subr.bf16.mxu0 %v3676
    %3803 = vmatpush1.bf16.msra.mxu0 %v3675
    %3804 = vmatprep.subr.bf16.mxu0 0
    %3805 = vmatpush1.bf16.msra.mxu0 0
    %3806 = vmatprep.subr.bf16.mxu0 0
    %3807 = vmatpush1.bf16.msra.mxu0 0
    %3808 = vmatprep.subr.bf16.mxu0 0
    %3809 = vmatpush1.bf16.msra.mxu0 0
    %3810 = vmatprep.subr.bf16.mxu0 0
    %3811 = vmatpush1.bf16.msra.mxu0 0
    %3812 = vmatprep.subr.bf16.mxu0 0
    %3813 = vmatpush1.bf16.msra.mxu0 0
    %3814 = vmatprep.subr.bf16.mxu0 0
    %3815 = vmatpush1.bf16.msra.mxu0 0
    %3816 = vmatprep.subr.bf16.mxu0 0
    %3817 = vmatpush1.bf16.msra.mxu0 0
    %3818 = vmatprep.subr.bf16.mxu0 0
    %3819 = vmatpush1.bf16.msra.mxu0 0
    %3820 = vmatprep.mubr.bf16.mxu0 0
    %3821 = vmatmul.mubr.bf16.gmra.mrb[0].mxu0 %v3315
    %v3822 = vpop.f32.mrb[0].mxu0
    %v3823 = vadd.f32 %v3396, %v3822
    %v3824 = vpop.f32.mrb[0].mxu0
    %v3825 = vadd.f32 %v3400, %v3824
    %v3826 = vpop.f32.mrb[0].mxu0
    %v3827 = vadd.f32 %v3396, %v3826
    %v3828 = vpop.f32.mrb[0].mxu0
    %v3829 = vadd.f32 %v3400, %v3828
    %3830 = vdwg.mxu0
    %3831 = vmatprep.subr.bf16.mxu0 %v3622
    %3832 = vmatpush1.bf16.msra.mxu0 %v3621
    %3833 = vmatprep.subr.bf16.mxu0 %v3630
    %3834 = vmatpush1.bf16.msra.mxu0 %v3629
    %3835 = vmatprep.subr.bf16.mxu0 %v3638
    %3836 = vmatpush1.bf16.msra.mxu0 %v3637
    %3837 = vmatprep.subr.bf16.mxu0 %v3646
    %3838 = vmatpush1.bf16.msra.mxu0 %v3645
    %3839 = vmatprep.subr.bf16.mxu0 %v3654
    %3840 = vmatpush1.bf16.msra.mxu0 %v3653
    %3841 = vmatprep.subr.bf16.mxu0 %v3662
    %3842 = vmatpush1.bf16.msra.mxu0 %v3661
    %3843 = vmatprep.subr.bf16.mxu0 %v3670
    %3844 = vmatpush1.bf16.msra.mxu0 %v3669
    %3845 = vmatprep.subr.bf16.mxu0 %v3678
    %3846 = vmatpush1.bf16.msra.mxu0 %v3677
    %3847 = vmatprep.subr.bf16.mxu0 0
    %3848 = vmatpush1.bf16.msra.mxu0 0
    %3849 = vmatprep.subr.bf16.mxu0 0
    %3850 = vmatpush1.bf16.msra.mxu0 0
    %3851 = vmatprep.subr.bf16.mxu0 0
    %3852 = vmatpush1.bf16.msra.mxu0 0
    %3853 = vmatprep.subr.bf16.mxu0 0
    %3854 = vmatpush1.bf16.msra.mxu0 0
    %3855 = vmatprep.subr.bf16.mxu0 0
    %3856 = vmatpush1.bf16.msra.mxu0 0
    %3857 = vmatprep.subr.bf16.mxu0 0
    %3858 = vmatpush1.bf16.msra.mxu0 0
    %3859 = vmatprep.subr.bf16.mxu0 0
    %3860 = vmatpush1.bf16.msra.mxu0 0
    %3861 = vmatprep.subr.bf16.mxu0 0
    %3862 = vmatpush1.bf16.msra.mxu0 0
    %3863 = vmatprep.mubr.bf16.mxu0 0
    %3864 = vmatmul.mubr.bf16.gmra.mrb[0].mxu0 %v3315
    %v3865 = vpop.f32.mrb[0].mxu0
    %v3866 = vadd.f32 %v3404, %v3865
    %v3867 = vpop.f32.mrb[0].mxu0
    %v3868 = vadd.f32 %v3408, %v3867
    %v3869 = vpop.f32.mrb[0].mxu0
    %v3870 = vadd.f32 %v3404, %v3869
    %v3871 = vpop.f32.mrb[0].mxu0
    %v3872 = vadd.f32 %v3408, %v3871
    %3873 = vdwg.mxu0
    %3874 = vmatprep.subr.bf16.mxu0 %v3624
    %3875 = vmatpush1.bf16.msra.mxu0 %v3623
    %3876 = vmatprep.subr.bf16.mxu0 %v3632
    %3877 = vmatpush1.bf16.msra.mxu0 %v3631
    %3878 = vmatprep.subr.bf16.mxu0 %v3640
    %3879 = vmatpush1.bf16.msra.mxu0 %v3639
    %3880 = vmatprep.subr.bf16.mxu0 %v3648
    %3881 = vmatpush1.bf16.msra.mxu0 %v3647
    %3882 = vmatprep.subr.bf16.mxu0 %v3656
    %3883 = vmatpush1.bf16.msra.mxu0 %v3655
    %3884 = vmatprep.subr.bf16.mxu0 %v3664
    %3885 = vmatpush1.bf16.msra.mxu0 %v3663
    %3886 = vmatprep.subr.bf16.mxu0 %v3672
    %3887 = vmatpush1.bf16.msra.mxu0 %v3671
    %3888 = vmatprep.subr.bf16.mxu0 %v3680
    %3889 = vmatpush1.bf16.msra.mxu0 %v3679
    %3890 = vmatprep.subr.bf16.mxu0 0
    %3891 = vmatpush1.bf16.msra.mxu0 0
    %3892 = vmatprep.subr.bf16.mxu0 0
    %3893 = vmatpush1.bf16.msra.mxu0 0
    %3894 = vmatprep.subr.bf16.mxu0 0
    %3895 = vmatpush1.bf16.msra.mxu0 0
    %3896 = vmatprep.subr.bf16.mxu0 0
    %3897 = vmatpush1.bf16.msra.mxu0 0
    %3898 = vmatprep.subr.bf16.mxu0 0
    %3899 = vmatpush1.bf16.msra.mxu0 0
    %3900 = vmatprep.subr.bf16.mxu0 0
    %3901 = vmatpush1.bf16.msra.mxu0 0
    %3902 = vmatprep.subr.bf16.mxu0 0
    %3903 = vmatpush1.bf16.msra.mxu0 0
    %3904 = vmatprep.subr.bf16.mxu0 0
    %3905 = vmatpush1.bf16.msra.mxu0 0
    %3906 = vmatprep.mubr.bf16.mxu0 0
    %3907 = vmatmul.mubr.bf16.gmra.mrb[0].mxu0 %v3315
    %v3908 = vpop.f32.mrb[0].mxu0
    %v3909 = vadd.f32 %v3412, %v3908
    %v3910 = vpop.f32.mrb[0].mxu0
    %v3911 = vadd.f32 %v3416, %v3910
    %v3912 = vpop.f32.mrb[0].mxu0
    %v3913 = vadd.f32 %v3412, %v3912
    %v3914 = vpop.f32.mrb[0].mxu0
    %v3915 = vadd.f32 %v3416, %v3914
    %3916 = vdwg.mxu0
    %3917 = vst [vmem:[#allocation2] sm:$0xff] %v3780
    %3918 = vst [vmem:[#allocation2 + $0x8] sm:$0xff] %v3782
    %3919 = vst [vmem:[#allocation2 + $0x10] sm:$0xff] %v3823
    %3920 = vst [vmem:[#allocation2 + $0x18] sm:$0xff] %v3825
    %3921 = vst [vmem:[#allocation2 + $0x20] sm:$0xff] %v3866
    %3922 = vst [vmem:[#allocation2 + $0x28] sm:$0xff] %v3868
    %3923 = vst [vmem:[#allocation2 + $0x30] sm:$0xff] %v3909
    %3924 = vst [vmem:[#allocation2 + $0x38] sm:$0xff] %v3911
    %3925 = vst [vmem:[#allocation2 + $0x40] sm:$0xff] %v3784
    %3926 = vst [vmem:[#allocation2 + $0x48] sm:$0xff] %v3786
    %3927 = vst [vmem:[#allocation2 + $0x50] sm:$0xff] %v3827
    %3928 = vst [vmem:[#allocation2 + $0x58] sm:$0xff] %v3829
    %3929 = vst [vmem:[#allocation2 + $0x60] sm:$0xff] %v3870
    %3930 = vst [vmem:[#allocation2 + $0x68] sm:$0xff] %v3872
    %3931 = vst [vmem:[#allocation2 + $0x70] sm:$0xff] %v3913
    %3932 = vst [vmem:[#allocation2 + $0x78] sm:$0xff] %v3915
    %v3933 = vld [vmem:[#allocation9 + $0x200] sm:$0xff]
    %v3934 = vld [vmem:[#allocation9 + $0x208] sm:$0xff]
    %v3935 = vld [vmem:[#allocation9 + $0x210] sm:$0xff]
    %v3936 = vld [vmem:[#allocation9 + $0x218] sm:$0xff]
    %v3937 = vld [vmem:[#allocation9 + $0x220] sm:$0xff]
    %v3938 = vld [vmem:[#allocation9 + $0x228] sm:$0xff]
    %v3939 = vld [vmem:[#allocation9 + $0x230] sm:$0xff]
    %v3940 = vld [vmem:[#allocation9 + $0x238] sm:$0xff]
    %v3941 = vld [vmem:[#allocation9 + $0x240] sm:$0xff]
    %v3942 = vld [vmem:[#allocation9 + $0x248] sm:$0xff]
    %v3943 = vld [vmem:[#allocation9 + $0x250] sm:$0xff]
    %v3944 = vld [vmem:[#allocation9 + $0x258] sm:$0xff]
    %v3945 = vld [vmem:[#allocation9 + $0x260] sm:$0xff]
    %v3946 = vld [vmem:[#allocation9 + $0x268] sm:$0xff]
    %v3947 = vld [vmem:[#allocation9 + $0x270] sm:$0xff]
    %v3948 = vld [vmem:[#allocation9 + $0x278] sm:$0xff]
    %v3949 = vld [vmem:[#allocation9 + $0x280] sm:$0xff]
    %v3950 = vld [vmem:[#allocation9 + $0x288] sm:$0xff]
    %v3951 = vld [vmem:[#allocation9 + $0x290] sm:$0xff]
    %v3952 = vld [vmem:[#allocation9 + $0x298] sm:$0xff]
    %v3953 = vld [vmem:[#allocation9 + $0x2a0] sm:$0xff]
    %v3954 = vld [vmem:[#allocation9 + $0x2a8] sm:$0xff]
    %v3955 = vld [vmem:[#allocation9 + $0x2b0] sm:$0xff]
    %v3956 = vld [vmem:[#allocation9 + $0x2b8] sm:$0xff]
    %v3957 = vld [vmem:[#allocation9 + $0x2c0] sm:$0xff]
    %v3958 = vld [vmem:[#allocation9 + $0x2c8] sm:$0xff]
    %v3959 = vld [vmem:[#allocation9 + $0x2d0] sm:$0xff]
    %v3960 = vld [vmem:[#allocation9 + $0x2d8] sm:$0xff]
    %v3961 = vld [vmem:[#allocation9 + $0x2e0] sm:$0xff]
    %v3962 = vld [vmem:[#allocation9 + $0x2e8] sm:$0xff]
    %v3963 = vld [vmem:[#allocation9 + $0x2f0] sm:$0xff]
    %v3964 = vld [vmem:[#allocation9 + $0x2f8] sm:$0xff]
    %v3965 = vld [vmem:[#allocation9 + $0x300] sm:$0xff]
    %v3966 = vld [vmem:[#allocation9 + $0x308] sm:$0xff]
    %v3967 = vld [vmem:[#allocation9 + $0x310] sm:$0xff]
    %v3968 = vld [vmem:[#allocation9 + $0x318] sm:$0xff]
    %v3969 = vld [vmem:[#allocation9 + $0x320] sm:$0xff]
    %v3970 = vld [vmem:[#allocation9 + $0x328] sm:$0xff]
    %v3971 = vld [vmem:[#allocation9 + $0x330] sm:$0xff]
    %v3972 = vld [vmem:[#allocation9 + $0x338] sm:$0xff]
    %v3973 = vld [vmem:[#allocation9 + $0x340] sm:$0xff]
    %v3974 = vld [vmem:[#allocation9 + $0x348] sm:$0xff]
    %v3975 = vld [vmem:[#allocation9 + $0x350] sm:$0xff]
    %v3976 = vld [vmem:[#allocation9 + $0x358] sm:$0xff]
    %v3977 = vld [vmem:[#allocation9 + $0x360] sm:$0xff]
    %v3978 = vld [vmem:[#allocation9 + $0x368] sm:$0xff]
    %v3979 = vld [vmem:[#allocation9 + $0x370] sm:$0xff]
    %v3980 = vld [vmem:[#allocation9 + $0x378] sm:$0xff]
    %v3981 = vld [vmem:[#allocation9 + $0x380] sm:$0xff]
    %v3982 = vld [vmem:[#allocation9 + $0x388] sm:$0xff]
    %v3983 = vld [vmem:[#allocation9 + $0x390] sm:$0xff]
    %v3984 = vld [vmem:[#allocation9 + $0x398] sm:$0xff]
    %v3985 = vld [vmem:[#allocation9 + $0x3a0] sm:$0xff]
    %v3986 = vld [vmem:[#allocation9 + $0x3a8] sm:$0xff]
    %v3987 = vld [vmem:[#allocation9 + $0x3b0] sm:$0xff]
    %v3988 = vld [vmem:[#allocation9 + $0x3b8] sm:$0xff]
    %v3989 = vld [vmem:[#allocation9 + $0x3c0] sm:$0xff]
    %v3990 = vld [vmem:[#allocation9 + $0x3c8] sm:$0xff]
    %v3991 = vld [vmem:[#allocation9 + $0x3d0] sm:$0xff]
    %v3992 = vld [vmem:[#allocation9 + $0x3d8] sm:$0xff]
    %v3993 = vld [vmem:[#allocation9 + $0x3e0] sm:$0xff]
    %v3994 = vld [vmem:[#allocation9 + $0x3e8] sm:$0xff]
    %v3995 = vld [vmem:[#allocation9 + $0x3f0] sm:$0xff]
    %v3996 = vld [vmem:[#allocation9 + $0x3f8] sm:$0xff]
    %v4061 = vunpack.c.l.b16 %v3933
    %v4062 = vunpack.c.h.b16 %v3933
    %v4063 = vunpack.c.l.b16 %v3934
    %v4064 = vunpack.c.h.b16 %v3934
    %v4065 = vunpack.c.l.b16 %v3935
    %v4066 = vunpack.c.h.b16 %v3935
    %v4067 = vunpack.c.l.b16 %v3936
    %v4068 = vunpack.c.h.b16 %v3936
    %v4069 = vunpack.c.l.b16 %v3937
    %v4070 = vunpack.c.h.b16 %v3937
    %v4071 = vunpack.c.l.b16 %v3938
    %v4072 = vunpack.c.h.b16 %v3938
    %v4073 = vunpack.c.l.b16 %v3939
    %v4074 = vunpack.c.h.b16 %v3939
    %v4075 = vunpack.c.l.b16 %v3940
    %v4076 = vunpack.c.h.b16 %v3940
    %v4077 = vunpack.c.l.b16 %v3941
    %v4078 = vunpack.c.h.b16 %v3941
    %v4079 = vunpack.c.l.b16 %v3942
    %v4080 = vunpack.c.h.b16 %v3942
    %v4081 = vunpack.c.l.b16 %v3943
    %v4082 = vunpack.c.h.b16 %v3943
    %v4083 = vunpack.c.l.b16 %v3944
    %v4084 = vunpack.c.h.b16 %v3944
    %v4085 = vunpack.c.l.b16 %v3945
    %v4086 = vunpack.c.h.b16 %v3945
    %v4087 = vunpack.c.l.b16 %v3946
    %v4088 = vunpack.c.h.b16 %v3946
    %v4089 = vunpack.c.l.b16 %v3947
    %v4090 = vunpack.c.h.b16 %v3947
    %v4091 = vunpack.c.l.b16 %v3948
    %v4092 = vunpack.c.h.b16 %v3948
    %v4093 = vunpack.c.l.b16 %v3949
    %v4094 = vunpack.c.h.b16 %v3949
    %v4095 = vunpack.c.l.b16 %v3950
    %v4096 = vunpack.c.h.b16 %v3950
    %v4097 = vunpack.c.l.b16 %v3951
    %v4098 = vunpack.c.h.b16 %v3951
    %v4099 = vunpack.c.l.b16 %v3952
    %v4100 = vunpack.c.h.b16 %v3952
    %v4101 = vunpack.c.l.b16 %v3953
    %v4102 = vunpack.c.h.b16 %v3953
    %v4103 = vunpack.c.l.b16 %v3954
    %v4104 = vunpack.c.h.b16 %v3954
    %v4105 = vunpack.c.l.b16 %v3955
    %v4106 = vunpack.c.h.b16 %v3955
    %v4107 = vunpack.c.l.b16 %v3956
    %v4108 = vunpack.c.h.b16 %v3956
    %v4109 = vunpack.c.l.b16 %v3957
    %v4110 = vunpack.c.h.b16 %v3957
    %v4111 = vunpack.c.l.b16 %v3958
    %v4112 = vunpack.c.h.b16 %v3958
    %v4113 = vunpack.c.l.b16 %v3959
    %v4114 = vunpack.c.h.b16 %v3959
    %v4115 = vunpack.c.l.b16 %v3960
    %v4116 = vunpack.c.h.b16 %v3960
    %v4117 = vunpack.c.l.b16 %v3961
    %v4118 = vunpack.c.h.b16 %v3961
    %v4119 = vunpack.c.l.b16 %v3962
    %v4120 = vunpack.c.h.b16 %v3962
    %v4121 = vunpack.c.l.b16 %v3963
    %v4122 = vunpack.c.h.b16 %v3963
    %v4123 = vunpack.c.l.b16 %v3964
    %v4124 = vunpack.c.h.b16 %v3964
    %v4125 = vunpack.c.l.b16 %v3965
    %v4126 = vunpack.c.h.b16 %v3965
    %v4127 = vunpack.c.l.b16 %v3966
    %v4128 = vunpack.c.h.b16 %v3966
    %v4129 = vunpack.c.l.b16 %v3967
    %v4130 = vunpack.c.h.b16 %v3967
    %v4131 = vunpack.c.l.b16 %v3968
    %v4132 = vunpack.c.h.b16 %v3968
    %v4133 = vunpack.c.l.b16 %v3969
    %v4134 = vunpack.c.h.b16 %v3969
    %v4135 = vunpack.c.l.b16 %v3970
    %v4136 = vunpack.c.h.b16 %v3970
    %v4137 = vunpack.c.l.b16 %v3971
    %v4138 = vunpack.c.h.b16 %v3971
    %v4139 = vunpack.c.l.b16 %v3972
    %v4140 = vunpack.c.h.b16 %v3972
    %v4141 = vunpack.c.l.b16 %v3973
    %v4142 = vunpack.c.h.b16 %v3973
    %v4143 = vunpack.c.l.b16 %v3974
    %v4144 = vunpack.c.h.b16 %v3974
    %v4145 = vunpack.c.l.b16 %v3975
    %v4146 = vunpack.c.h.b16 %v3975
    %v4147 = vunpack.c.l.b16 %v3976
    %v4148 = vunpack.c.h.b16 %v3976
    %v4149 = vunpack.c.l.b16 %v3977
    %v4150 = vunpack.c.h.b16 %v3977
    %v4151 = vunpack.c.l.b16 %v3978
    %v4152 = vunpack.c.h.b16 %v3978
    %v4153 = vunpack.c.l.b16 %v3979
    %v4154 = vunpack.c.h.b16 %v3979
    %v4155 = vunpack.c.l.b16 %v3980
    %v4156 = vunpack.c.h.b16 %v3980
    %v4157 = vunpack.c.l.b16 %v3981
    %v4158 = vunpack.c.h.b16 %v3981
    %v4159 = vunpack.c.l.b16 %v3982
    %v4160 = vunpack.c.h.b16 %v3982
    %v4161 = vunpack.c.l.b16 %v3983
    %v4162 = vunpack.c.h.b16 %v3983
    %v4163 = vunpack.c.l.b16 %v3984
    %v4164 = vunpack.c.h.b16 %v3984
    %v4165 = vunpack.c.l.b16 %v3985
    %v4166 = vunpack.c.h.b16 %v3985
    %v4167 = vunpack.c.l.b16 %v3986
    %v4168 = vunpack.c.h.b16 %v3986
    %v4169 = vunpack.c.l.b16 %v3987
    %v4170 = vunpack.c.h.b16 %v3987
    %v4171 = vunpack.c.l.b16 %v3988
    %v4172 = vunpack.c.h.b16 %v3988
    %v4173 = vunpack.c.l.b16 %v3989
    %v4174 = vunpack.c.h.b16 %v3989
    %v4175 = vunpack.c.l.b16 %v3990
    %v4176 = vunpack.c.h.b16 %v3990
    %v4177 = vunpack.c.l.b16 %v3991
    %v4178 = vunpack.c.h.b16 %v3991
    %v4179 = vunpack.c.l.b16 %v3992
    %v4180 = vunpack.c.h.b16 %v3992
    %v4181 = vunpack.c.l.b16 %v3993
    %v4182 = vunpack.c.h.b16 %v3993
    %v4183 = vunpack.c.l.b16 %v3994
    %v4184 = vunpack.c.h.b16 %v3994
    %v4185 = vunpack.c.l.b16 %v3995
    %v4186 = vunpack.c.h.b16 %v3995
    %v4187 = vunpack.c.l.b16 %v3996
    %v4188 = vunpack.c.h.b16 %v3996
    %v4189 = vpack.c.b16 %v4069, %v4061
    %v4190 = vpack.c.b16 %v4070, %v4062
    %v4191 = vpack.c.b16 %v4071, %v4063
    %v4192 = vpack.c.b16 %v4072, %v4064
    %v4193 = vpack.c.b16 %v4073, %v4065
    %v4194 = vpack.c.b16 %v4074, %v4066
    %v4195 = vpack.c.b16 %v4075, %v4067
    %v4196 = vpack.c.b16 %v4076, %v4068
    %v4197 = vpack.c.b16 %v4085, %v4077
    %v4198 = vpack.c.b16 %v4086, %v4078
    %v4199 = vpack.c.b16 %v4087, %v4079
    %v4200 = vpack.c.b16 %v4088, %v4080
    %v4201 = vpack.c.b16 %v4089, %v4081
    %v4202 = vpack.c.b16 %v4090, %v4082
    %v4203 = vpack.c.b16 %v4091, %v4083
    %v4204 = vpack.c.b16 %v4092, %v4084
    %v4205 = vpack.c.b16 %v4101, %v4093
    %v4206 = vpack.c.b16 %v4102, %v4094
    %v4207 = vpack.c.b16 %v4103, %v4095
    %v4208 = vpack.c.b16 %v4104, %v4096
    %v4209 = vpack.c.b16 %v4105, %v4097
    %v4210 = vpack.c.b16 %v4106, %v4098
    %v4211 = vpack.c.b16 %v4107, %v4099
    %v4212 = vpack.c.b16 %v4108, %v4100
    %v4213 = vpack.c.b16 %v4117, %v4109
    %v4214 = vpack.c.b16 %v4118, %v4110
    %v4215 = vpack.c.b16 %v4119, %v4111
    %v4216 = vpack.c.b16 %v4120, %v4112
    %v4217 = vpack.c.b16 %v4121, %v4113
    %v4218 = vpack.c.b16 %v4122, %v4114
    %v4219 = vpack.c.b16 %v4123, %v4115
    %v4220 = vpack.c.b16 %v4124, %v4116
    %v4221 = vpack.c.b16 %v4133, %v4125
    %v4222 = vpack.c.b16 %v4134, %v4126
    %v4223 = vpack.c.b16 %v4135, %v4127
    %v4224 = vpack.c.b16 %v4136, %v4128
    %v4225 = vpack.c.b16 %v4137, %v4129
    %v4226 = vpack.c.b16 %v4138, %v4130
    %v4227 = vpack.c.b16 %v4139, %v4131
    %v4228 = vpack.c.b16 %v4140, %v4132
    %v4229 = vpack.c.b16 %v4149, %v4141
    %v4230 = vpack.c.b16 %v4150, %v4142
    %v4231 = vpack.c.b16 %v4151, %v4143
    %v4232 = vpack.c.b16 %v4152, %v4144
    %v4233 = vpack.c.b16 %v4153, %v4145
    %v4234 = vpack.c.b16 %v4154, %v4146
    %v4235 = vpack.c.b16 %v4155, %v4147
    %v4236 = vpack.c.b16 %v4156, %v4148
    %v4237 = vpack.c.b16 %v4165, %v4157
    %v4238 = vpack.c.b16 %v4166, %v4158
    %v4239 = vpack.c.b16 %v4167, %v4159
    %v4240 = vpack.c.b16 %v4168, %v4160
    %v4241 = vpack.c.b16 %v4169, %v4161
    %v4242 = vpack.c.b16 %v4170, %v4162
    %v4243 = vpack.c.b16 %v4171, %v4163
    %v4244 = vpack.c.b16 %v4172, %v4164
    %v4245 = vpack.c.b16 %v4181, %v4173
    %v4246 = vpack.c.b16 %v4182, %v4174
    %v4247 = vpack.c.b16 %v4183, %v4175
    %v4248 = vpack.c.b16 %v4184, %v4176
    %v4249 = vpack.c.b16 %v4185, %v4177
    %v4250 = vpack.c.b16 %v4186, %v4178
    %v4251 = vpack.c.b16 %v4187, %v4179
    %v4252 = vpack.c.b16 %v4188, %v4180
    %4317 = vmatprep.subr.bf16.mxu0 %v4190
    %4318 = vmatpush1.bf16.msra.mxu0 %v4189
    %4319 = vmatprep.subr.bf16.mxu0 %v4198
    %4320 = vmatpush1.bf16.msra.mxu0 %v4197
    %4321 = vmatprep.subr.bf16.mxu0 %v4206
    %4322 = vmatpush1.bf16.msra.mxu0 %v4205
    %4323 = vmatprep.subr.bf16.mxu0 %v4214
    %4324 = vmatpush1.bf16.msra.mxu0 %v4213
    %4325 = vmatprep.subr.bf16.mxu0 %v4222
    %4326 = vmatpush1.bf16.msra.mxu0 %v4221
    %4327 = vmatprep.subr.bf16.mxu0 %v4230
    %4328 = vmatpush1.bf16.msra.mxu0 %v4229
    %4329 = vmatprep.subr.bf16.mxu0 %v4238
    %4330 = vmatpush1.bf16.msra.mxu0 %v4237
    %4331 = vmatprep.subr.bf16.mxu0 %v4246
    %4332 = vmatpush1.bf16.msra.mxu0 %v4245
    %4333 = vmatprep.subr.bf16.mxu0 0
    %4334 = vmatpush1.bf16.msra.mxu0 0
    %4335 = vmatprep.subr.bf16.mxu0 0
    %4336 = vmatpush1.bf16.msra.mxu0 0
    %4337 = vmatprep.subr.bf16.mxu0 0
    %4338 = vmatpush1.bf16.msra.mxu0 0
    %4339 = vmatprep.subr.bf16.mxu0 0
    %4340 = vmatpush1.bf16.msra.mxu0 0
    %4341 = vmatprep.subr.bf16.mxu0 0
    %4342 = vmatpush1.bf16.msra.mxu0 0
    %4343 = vmatprep.subr.bf16.mxu0 0
    %4344 = vmatpush1.bf16.msra.mxu0 0
    %4345 = vmatprep.subr.bf16.mxu0 0
    %4346 = vmatpush1.bf16.msra.mxu0 0
    %4347 = vmatprep.subr.bf16.mxu0 0
    %4348 = vmatpush1.bf16.msra.mxu0 0
    %4349 = vmatprep.mubr.bf16.mxu0 0
    %4350 = vmatmul.mubr.bf16.gmra.mrb[0].mxu0 0
    %v4351 = vpop.f32.mrb[0].mxu0
    %v4352 = vadd.f32 0.0, %v4351
    %v4353 = vpop.f32.mrb[0].mxu0
    %v4354 = vadd.f32 0.0, %v4353
    %v4355 = vpop.f32.mrb[0].mxu0
    %v4356 = vpop.f32.mrb[0].mxu0
    %4357 = vdwg.mxu0
    %4358 = vmatprep.subr.bf16.mxu0 %v4192
    %4359 = vmatpush1.bf16.msra.mxu0 %v4191
    %4360 = vmatprep.subr.bf16.mxu0 %v4200
    %4361 = vmatpush1.bf16.msra.mxu0 %v4199
    %4362 = vmatprep.subr.bf16.mxu0 %v4208
    %4363 = vmatpush1.bf16.msra.mxu0 %v4207
    %4364 = vmatprep.subr.bf16.mxu0 %v4216
    %4365 = vmatpush1.bf16.msra.mxu0 %v4215
    %4366 = vmatprep.subr.bf16.mxu0 %v4224
    %4367 = vmatpush1.bf16.msra.mxu0 %v4223
    %4368 = vmatprep.subr.bf16.mxu0 %v4232
    %4369 = vmatpush1.bf16.msra.mxu0 %v4231
    %4370 = vmatprep.subr.bf16.mxu0 %v4240
    %4371 = vmatpush1.bf16.msra.mxu0 %v4239
    %4372 = vmatprep.subr.bf16.mxu0 %v4248
    %4373 = vmatpush1.bf16.msra.mxu0 %v4247
    %4374 = vmatprep.subr.bf16.mxu0 0
    %4375 = vmatpush1.bf16.msra.mxu0 0
    %4376 = vmatprep.subr.bf16.mxu0 0
    %4377 = vmatpush1.bf16.msra.mxu0 0
    %4378 = vmatprep.subr.bf16.mxu0 0
    %4379 = vmatpush1.bf16.msra.mxu0 0
    %4380 = vmatprep.subr.bf16.mxu0 0
    %4381 = vmatpush1.bf16.msra.mxu0 0
    %4382 = vmatprep.subr.bf16.mxu0 0
    %4383 = vmatpush1.bf16.msra.mxu0 0
    %4384 = vmatprep.subr.bf16.mxu0 0
    %4385 = vmatpush1.bf16.msra.mxu0 0
    %4386 = vmatprep.subr.bf16.mxu0 0
    %4387 = vmatpush1.bf16.msra.mxu0 0
    %4388 = vmatprep.subr.bf16.mxu0 0
    %4389 = vmatpush1.bf16.msra.mxu0 0
    %4390 = vmatprep.mubr.bf16.mxu0 0
    %4391 = vmatmul.mubr.bf16.gmra.mrb[0].mxu0 0
    %v4392 = vpop.f32.mrb[0].mxu0
    %v4393 = vadd.f32 0.0, %v4392
    %v4394 = vpop.f32.mrb[0].mxu0
    %v4395 = vadd.f32 0.0, %v4394
    %v4396 = vpop.f32.mrb[0].mxu0
    %v4397 = vpop.f32.mrb[0].mxu0
    %4398 = vdwg.mxu0
    %4399 = vmatprep.subr.bf16.mxu0 %v4194
    %4400 = vmatpush1.bf16.msra.mxu0 %v4193
    %4401 = vmatprep.subr.bf16.mxu0 %v4202
    %4402 = vmatpush1.bf16.msra.mxu0 %v4201
    %4403 = vmatprep.subr.bf16.mxu0 %v4210
    %4404 = vmatpush1.bf16.msra.mxu0 %v4209
    %4405 = vmatprep.subr.bf16.mxu0 %v4218
    %4406 = vmatpush1.bf16.msra.mxu0 %v4217
    %4407 = vmatprep.subr.bf16.mxu0 %v4226
    %4408 = vmatpush1.bf16.msra.mxu0 %v4225
    %4409 = vmatprep.subr.bf16.mxu0 %v4234
    %4410 = vmatpush1.bf16.msra.mxu0 %v4233
    %4411 = vmatprep.subr.bf16.mxu0 %v4242
    %4412 = vmatpush1.bf16.msra.mxu0 %v4241
    %4413 = vmatprep.subr.bf16.mxu0 %v4250
    %4414 = vmatpush1.bf16.msra.mxu0 %v4249
    %4415 = vmatprep.subr.bf16.mxu0 0
    %4416 = vmatpush1.bf16.msra.mxu0 0
    %4417 = vmatprep.subr.bf16.mxu0 0
    %4418 = vmatpush1.bf16.msra.mxu0 0
    %4419 = vmatprep.subr.bf16.mxu0 0
    %4420 = vmatpush1.bf16.msra.mxu0 0
    %4421 = vmatprep.subr.bf16.mxu0 0
    %4422 = vmatpush1.bf16.msra.mxu0 0
    %4423 = vmatprep.subr.bf16.mxu0 0
    %4424 = vmatpush1.bf16.msra.mxu0 0
    %4425 = vmatprep.subr.bf16.mxu0 0
    %4426 = vmatpush1.bf16.msra.mxu0 0
    %4427 = vmatprep.subr.bf16.mxu0 0
    %4428 = vmatpush1.bf16.msra.mxu0 0
    %4429 = vmatprep.subr.bf16.mxu0 0
    %4430 = vmatpush1.bf16.msra.mxu0 0
    %4431 = vmatprep.mubr.bf16.mxu0 0
    %4432 = vmatmul.mubr.bf16.gmra.mrb[0].mxu0 0
    %v4433 = vpop.f32.mrb[0].mxu0
    %v4434 = vpop.f32.mrb[0].mxu0
    %v4435 = vpop.f32.mrb[0].mxu0
    %v4436 = vadd.f32 0.0, %v4435
    %v4437 = vpop.f32.mrb[0].mxu0
    %v4438 = vadd.f32 0.0, %v4437
    %4439 = vdwg.mxu0
    %4440 = vmatprep.subr.bf16.mxu0 %v4196
    %4441 = vmatpush1.bf16.msra.mxu0 %v4195
    %4442 = vmatprep.subr.bf16.mxu0 %v4204
    %4443 = vmatpush1.bf16.msra.mxu0 %v4203
    %4444 = vmatprep.subr.bf16.mxu0 %v4212
    %4445 = vmatpush1.bf16.msra.mxu0 %v4211
    %4446 = vmatprep.subr.bf16.mxu0 %v4220
    %4447 = vmatpush1.bf16.msra.mxu0 %v4219
    %4448 = vmatprep.subr.bf16.mxu0 %v4228
    %4449 = vmatpush1.bf16.msra.mxu0 %v4227
    %4450 = vmatprep.subr.bf16.mxu0 %v4236
    %4451 = vmatpush1.bf16.msra.mxu0 %v4235
    %4452 = vmatprep.subr.bf16.mxu0 %v4244
    %4453 = vmatpush1.bf16.msra.mxu0 %v4243
    %4454 = vmatprep.subr.bf16.mxu0 %v4252
    %4455 = vmatpush1.bf16.msra.mxu0 %v4251
    %4456 = vmatprep.subr.bf16.mxu0 0
    %4457 = vmatpush1.bf16.msra.mxu0 0
    %4458 = vmatprep.subr.bf16.mxu0 0
    %4459 = vmatpush1.bf16.msra.mxu0 0
    %4460 = vmatprep.subr.bf16.mxu0 0
    %4461 = vmatpush1.bf16.msra.mxu0 0
    %4462 = vmatprep.subr.bf16.mxu0 0
    %4463 = vmatpush1.bf16.msra.mxu0 0
    %4464 = vmatprep.subr.bf16.mxu0 0
    %4465 = vmatpush1.bf16.msra.mxu0 0
    %4466 = vmatprep.subr.bf16.mxu0 0
    %4467 = vmatpush1.bf16.msra.mxu0 0
    %4468 = vmatprep.subr.bf16.mxu0 0
    %4469 = vmatpush1.bf16.msra.mxu0 0
    %4470 = vmatprep.subr.bf16.mxu0 0
    %4471 = vmatpush1.bf16.msra.mxu0 0
    %4472 = vmatprep.mubr.bf16.mxu0 0
    %4473 = vmatmul.mubr.bf16.gmra.mrb[0].mxu0 0
    %v4474 = vpop.f32.mrb[0].mxu0
    %v4475 = vpop.f32.mrb[0].mxu0
    %v4476 = vpop.f32.mrb[0].mxu0
    %v4477 = vadd.f32 0.0, %v4476
    %v4478 = vpop.f32.mrb[0].mxu0
    %v4479 = vadd.f32 0.0, %v4478
    %4480 = vdwg.mxu0
    %v4481 = vld [vmem:[#allocation2] sm:$0xff]
    %v4482 = vld [vmem:[#allocation2 + $0x8] sm:$0xff]
    %v4483 = vld [vmem:[#allocation2 + $0x10] sm:$0xff]
    %v4484 = vld [vmem:[#allocation2 + $0x18] sm:$0xff]
    %v4485 = vadd.f32 %v4481, %v4352
    %v4486 = vadd.f32 %v4482, %v4354
    %v4487 = vadd.f32 %v4483, %v4393
    %v4488 = vadd.f32 %v4484, %v4395
    %v4489 = vld [vmem:[#allocation2 + $0x60] sm:$0xff]
    %v4490 = vld [vmem:[#allocation2 + $0x68] sm:$0xff]
    %v4491 = vld [vmem:[#allocation2 + $0x70] sm:$0xff]
    %v4492 = vld [vmem:[#allocation2 + $0x78] sm:$0xff]
    %v4493 = vadd.f32 %v4489, %v4436
    %v4494 = vadd.f32 %v4490, %v4438
    %v4495 = vadd.f32 %v4491, %v4477
    %v4496 = vadd.f32 %v4492, %v4479
    %v4497 = vxor.u32 %v4485, 2147483648
    %v4498 = vmul.f32 %v4497, 1.442695
    %v4499 = vpow.pop %v4498
    %v4500 = vadd.f32 %v4499, 1.0
    %v4501 = vrcp.pop %v4500
    %v4502 = vmul.f32 1.0, %v4501
    %v4503 = vxor.u32 %v4486, 2147483648
    %v4504 = vmul.f32 %v4503, 1.442695
    %v4505 = vpow.pop %v4504
    %v4506 = vadd.f32 %v4505, 1.0
    %v4507 = vrcp.pop %v4506
    %v4508 = vmul.f32 1.0, %v4507
    %v4509 = vtanh.pop %v4487
    %v4510 = vxor.u32 %v4488, 2147483648
    %v4511 = vmul.f32 %v4510, 1.442695
    %v4512 = vpow.pop %v4511
    %v4513 = vadd.f32 %v4512, 1.0
    %v4514 = vrcp.pop %v4513
    %v4515 = vmul.f32 1.0, %v4514
    %v4516 = vmul.f32 %v4508, 0.0
    %v4517 = vmul.f32 %v4502, %v4509
    %v4518 = vadd.f32 %v4516, %v4517
    %v4519 = vtanh.pop %v4518
    %v4520 = vmul.f32 %v4515, %v4519
    %v4521 = vxor.u32 %v4493, 2147483648
    %v4522 = vmul.f32 %v4521, 1.442695
    %v4523 = vpow.pop %v4522
    %v4524 = vadd.f32 %v4523, 1.0
    %v4525 = vrcp.pop %v4524
    %v4526 = vmul.f32 1.0, %v4525
    %v4527 = vxor.u32 %v4494, 2147483648
    %v4528 = vmul.f32 %v4527, 1.442695
    %v4529 = vpow.pop %v4528
    %v4530 = vadd.f32 %v4529, 1.0
    %v4531 = vrcp.pop %v4530
    %v4532 = vmul.f32 1.0, %v4531
    %v4533 = vtanh.pop %v4495
    %v4534 = vxor.u32 %v4496, 2147483648
    %v4535 = vmul.f32 %v4534, 1.442695
    %v4536 = vpow.pop %v4535
    %v4537 = vadd.f32 %v4536, 1.0
    %v4538 = vrcp.pop %v4537
    %v4539 = vmul.f32 1.0, %v4538
    %v4540 = vmul.f32 %v4532, 0.0
    %v4541 = vmul.f32 %v4526, %v4533
    %v4542 = vadd.f32 %v4540, %v4541
    %v4543 = vtanh.pop %v4542
    %v4544 = vmul.f32 %v4539, %v4543
    %4545 = vst [vmem:[#allocation3] sm:$0xff] %v4520
    %4546 = vst [vmem:[#allocation3 + $0x18] sm:$0xff] %v4544
    %v4547 = vpack.c.bf16 %v4544, %v4520
    %v4548 = vld [vmem:[#allocation9 + $0x200] sm:$0xff]
    %v4549 = vld [vmem:[#allocation9 + $0x208] sm:$0xff]
    %v4550 = vld [vmem:[#allocation9 + $0x210] sm:$0xff]
    %v4551 = vld [vmem:[#allocation9 + $0x218] sm:$0xff]
    %v4552 = vld [vmem:[#allocation9 + $0x220] sm:$0xff]
    %v4553 = vld [vmem:[#allocation9 + $0x228] sm:$0xff]
    %v4554 = vld [vmem:[#allocation9 + $0x230] sm:$0xff]
    %v4555 = vld [vmem:[#allocation9 + $0x238] sm:$0xff]
    %v4556 = vld [vmem:[#allocation9 + $0x240] sm:$0xff]
    %v4557 = vld [vmem:[#allocation9 + $0x248] sm:$0xff]
    %v4558 = vld [vmem:[#allocation9 + $0x250] sm:$0xff]
    %v4559 = vld [vmem:[#allocation9 + $0x258] sm:$0xff]
    %v4560 = vld [vmem:[#allocation9 + $0x260] sm:$0xff]
    %v4561 = vld [vmem:[#allocation9 + $0x268] sm:$0xff]
    %v4562 = vld [vmem:[#allocation9 + $0x270] sm:$0xff]
    %v4563 = vld [vmem:[#allocation9 + $0x278] sm:$0xff]
    %v4564 = vld [vmem:[#allocation9 + $0x280] sm:$0xff]
    %v4565 = vld [vmem:[#allocation9 + $0x288] sm:$0xff]
    %v4566 = vld [vmem:[#allocation9 + $0x290] sm:$0xff]
    %v4567 = vld [vmem:[#allocation9 + $0x298] sm:$0xff]
    %v4568 = vld [vmem:[#allocation9 + $0x2a0] sm:$0xff]
    %v4569 = vld [vmem:[#allocation9 + $0x2a8] sm:$0xff]
    %v4570 = vld [vmem:[#allocation9 + $0x2b0] sm:$0xff]
    %v4571 = vld [vmem:[#allocation9 + $0x2b8] sm:$0xff]
    %v4572 = vld [vmem:[#allocation9 + $0x2c0] sm:$0xff]
    %v4573 = vld [vmem:[#allocation9 + $0x2c8] sm:$0xff]
    %v4574 = vld [vmem:[#allocation9 + $0x2d0] sm:$0xff]
    %v4575 = vld [vmem:[#allocation9 + $0x2d8] sm:$0xff]
    %v4576 = vld [vmem:[#allocation9 + $0x2e0] sm:$0xff]
    %v4577 = vld [vmem:[#allocation9 + $0x2e8] sm:$0xff]
    %v4578 = vld [vmem:[#allocation9 + $0x2f0] sm:$0xff]
    %v4579 = vld [vmem:[#allocation9 + $0x2f8] sm:$0xff]
    %v4580 = vld [vmem:[#allocation9 + $0x300] sm:$0xff]
    %v4581 = vld [vmem:[#allocation9 + $0x308] sm:$0xff]
    %v4582 = vld [vmem:[#allocation9 + $0x310] sm:$0xff]
    %v4583 = vld [vmem:[#allocation9 + $0x318] sm:$0xff]
    %v4584 = vld [vmem:[#allocation9 + $0x320] sm:$0xff]
    %v4585 = vld [vmem:[#allocation9 + $0x328] sm:$0xff]
    %v4586 = vld [vmem:[#allocation9 + $0x330] sm:$0xff]
    %v4587 = vld [vmem:[#allocation9 + $0x338] sm:$0xff]
    %v4588 = vld [vmem:[#allocation9 + $0x340] sm:$0xff]
    %v4589 = vld [vmem:[#allocation9 + $0x348] sm:$0xff]
    %v4590 = vld [vmem:[#allocation9 + $0x350] sm:$0xff]
    %v4591 = vld [vmem:[#allocation9 + $0x358] sm:$0xff]
    %v4592 = vld [vmem:[#allocation9 + $0x360] sm:$0xff]
    %v4593 = vld [vmem:[#allocation9 + $0x368] sm:$0xff]
    %v4594 = vld [vmem:[#allocation9 + $0x370] sm:$0xff]
    %v4595 = vld [vmem:[#allocation9 + $0x378] sm:$0xff]
    %v4596 = vld [vmem:[#allocation9 + $0x380] sm:$0xff]
    %v4597 = vld [vmem:[#allocation9 + $0x388] sm:$0xff]
    %v4598 = vld [vmem:[#allocation9 + $0x390] sm:$0xff]
    %v4599 = vld [vmem:[#allocation9 + $0x398] sm:$0xff]
    %v4600 = vld [vmem:[#allocation9 + $0x3a0] sm:$0xff]
    %v4601 = vld [vmem:[#allocation9 + $0x3a8] sm:$0xff]
    %v4602 = vld [vmem:[#allocation9 + $0x3b0] sm:$0xff]
    %v4603 = vld [vmem:[#allocation9 + $0x3b8] sm:$0xff]
    %v4604 = vld [vmem:[#allocation9 + $0x3c0] sm:$0xff]
    %v4605 = vld [vmem:[#allocation9 + $0x3c8] sm:$0xff]
    %v4606 = vld [vmem:[#allocation9 + $0x3d0] sm:$0xff]
    %v4607 = vld [vmem:[#allocation9 + $0x3d8] sm:$0xff]
    %v4608 = vld [vmem:[#allocation9 + $0x3e0] sm:$0xff]
    %v4609 = vld [vmem:[#allocation9 + $0x3e8] sm:$0xff]
    %v4610 = vld [vmem:[#allocation9 + $0x3f0] sm:$0xff]
    %v4611 = vld [vmem:[#allocation9 + $0x3f8] sm:$0xff]
    %v4676 = vunpack.c.l.b16 %v4548
    %v4677 = vunpack.c.h.b16 %v4548
    %v4678 = vunpack.c.l.b16 %v4549
    %v4679 = vunpack.c.h.b16 %v4549
    %v4680 = vunpack.c.l.b16 %v4550
    %v4681 = vunpack.c.h.b16 %v4550
    %v4682 = vunpack.c.l.b16 %v4551
    %v4683 = vunpack.c.h.b16 %v4551
    %v4684 = vunpack.c.l.b16 %v4552
    %v4685 = vunpack.c.h.b16 %v4552
    %v4686 = vunpack.c.l.b16 %v4553
    %v4687 = vunpack.c.h.b16 %v4553
    %v4688 = vunpack.c.l.b16 %v4554
    %v4689 = vunpack.c.h.b16 %v4554
    %v4690 = vunpack.c.l.b16 %v4555
    %v4691 = vunpack.c.h.b16 %v4555
    %v4692 = vunpack.c.l.b16 %v4556
    %v4693 = vunpack.c.h.b16 %v4556
    %v4694 = vunpack.c.l.b16 %v4557
    %v4695 = vunpack.c.h.b16 %v4557
    %v4696 = vunpack.c.l.b16 %v4558
    %v4697 = vunpack.c.h.b16 %v4558
    %v4698 = vunpack.c.l.b16 %v4559
    %v4699 = vunpack.c.h.b16 %v4559
    %v4700 = vunpack.c.l.b16 %v4560
    %v4701 = vunpack.c.h.b16 %v4560
    %v4702 = vunpack.c.l.b16 %v4561
    %v4703 = vunpack.c.h.b16 %v4561
    %v4704 = vunpack.c.l.b16 %v4562
    %v4705 = vunpack.c.h.b16 %v4562
    %v4706 = vunpack.c.l.b16 %v4563
    %v4707 = vunpack.c.h.b16 %v4563
    %v4708 = vunpack.c.l.b16 %v4564
    %v4709 = vunpack.c.h.b16 %v4564
    %v4710 = vunpack.c.l.b16 %v4565
    %v4711 = vunpack.c.h.b16 %v4565
    %v4712 = vunpack.c.l.b16 %v4566
    %v4713 = vunpack.c.h.b16 %v4566
    %v4714 = vunpack.c.l.b16 %v4567
    %v4715 = vunpack.c.h.b16 %v4567
    %v4716 = vunpack.c.l.b16 %v4568
    %v4717 = vunpack.c.h.b16 %v4568
    %v4718 = vunpack.c.l.b16 %v4569
    %v4719 = vunpack.c.h.b16 %v4569
    %v4720 = vunpack.c.l.b16 %v4570
    %v4721 = vunpack.c.h.b16 %v4570
    %v4722 = vunpack.c.l.b16 %v4571
    %v4723 = vunpack.c.h.b16 %v4571
    %v4724 = vunpack.c.l.b16 %v4572
    %v4725 = vunpack.c.h.b16 %v4572
    %v4726 = vunpack.c.l.b16 %v4573
    %v4727 = vunpack.c.h.b16 %v4573
    %v4728 = vunpack.c.l.b16 %v4574
    %v4729 = vunpack.c.h.b16 %v4574
    %v4730 = vunpack.c.l.b16 %v4575
    %v4731 = vunpack.c.h.b16 %v4575
    %v4732 = vunpack.c.l.b16 %v4576
    %v4733 = vunpack.c.h.b16 %v4576
    %v4734 = vunpack.c.l.b16 %v4577
    %v4735 = vunpack.c.h.b16 %v4577
    %v4736 = vunpack.c.l.b16 %v4578
    %v4737 = vunpack.c.h.b16 %v4578
    %v4738 = vunpack.c.l.b16 %v4579
    %v4739 = vunpack.c.h.b16 %v4579
    %v4740 = vunpack.c.l.b16 %v4580
    %v4741 = vunpack.c.h.b16 %v4580
    %v4742 = vunpack.c.l.b16 %v4581
    %v4743 = vunpack.c.h.b16 %v4581
    %v4744 = vunpack.c.l.b16 %v4582
    %v4745 = vunpack.c.h.b16 %v4582
    %v4746 = vunpack.c.l.b16 %v4583
    %v4747 = vunpack.c.h.b16 %v4583
    %v4748 = vunpack.c.l.b16 %v4584
    %v4749 = vunpack.c.h.b16 %v4584
    %v4750 = vunpack.c.l.b16 %v4585
    %v4751 = vunpack.c.h.b16 %v4585
    %v4752 = vunpack.c.l.b16 %v4586
    %v4753 = vunpack.c.h.b16 %v4586
    %v4754 = vunpack.c.l.b16 %v4587
    %v4755 = vunpack.c.h.b16 %v4587
    %v4756 = vunpack.c.l.b16 %v4588
    %v4757 = vunpack.c.h.b16 %v4588
    %v4758 = vunpack.c.l.b16 %v4589
    %v4759 = vunpack.c.h.b16 %v4589
    %v4760 = vunpack.c.l.b16 %v4590
    %v4761 = vunpack.c.h.b16 %v4590
    %v4762 = vunpack.c.l.b16 %v4591
    %v4763 = vunpack.c.h.b16 %v4591
    %v4764 = vunpack.c.l.b16 %v4592
    %v4765 = vunpack.c.h.b16 %v4592
    %v4766 = vunpack.c.l.b16 %v4593
    %v4767 = vunpack.c.h.b16 %v4593
    %v4768 = vunpack.c.l.b16 %v4594
    %v4769 = vunpack.c.h.b16 %v4594
    %v4770 = vunpack.c.l.b16 %v4595
    %v4771 = vunpack.c.h.b16 %v4595
    %v4772 = vunpack.c.l.b16 %v4596
    %v4773 = vunpack.c.h.b16 %v4596
    %v4774 = vunpack.c.l.b16 %v4597
    %v4775 = vunpack.c.h.b16 %v4597
    %v4776 = vunpack.c.l.b16 %v4598
    %v4777 = vunpack.c.h.b16 %v4598
    %v4778 = vunpack.c.l.b16 %v4599
    %v4779 = vunpack.c.h.b16 %v4599
    %v4780 = vunpack.c.l.b16 %v4600
    %v4781 = vunpack.c.h.b16 %v4600
    %v4782 = vunpack.c.l.b16 %v4601
    %v4783 = vunpack.c.h.b16 %v4601
    %v4784 = vunpack.c.l.b16 %v4602
    %v4785 = vunpack.c.h.b16 %v4602
    %v4786 = vunpack.c.l.b16 %v4603
    %v4787 = vunpack.c.h.b16 %v4603
    %v4788 = vunpack.c.l.b16 %v4604
    %v4789 = vunpack.c.h.b16 %v4604
    %v4790 = vunpack.c.l.b16 %v4605
    %v4791 = vunpack.c.h.b16 %v4605
    %v4792 = vunpack.c.l.b16 %v4606
    %v4793 = vunpack.c.h.b16 %v4606
    %v4794 = vunpack.c.l.b16 %v4607
    %v4795 = vunpack.c.h.b16 %v4607
    %v4796 = vunpack.c.l.b16 %v4608
    %v4797 = vunpack.c.h.b16 %v4608
    %v4798 = vunpack.c.l.b16 %v4609
    %v4799 = vunpack.c.h.b16 %v4609
    %v4800 = vunpack.c.l.b16 %v4610
    %v4801 = vunpack.c.h.b16 %v4610
    %v4802 = vunpack.c.l.b16 %v4611
    %v4803 = vunpack.c.h.b16 %v4611
    %v4804 = vpack.c.b16 %v4684, %v4676
    %v4805 = vpack.c.b16 %v4685, %v4677
    %v4806 = vpack.c.b16 %v4686, %v4678
    %v4807 = vpack.c.b16 %v4687, %v4679
    %v4808 = vpack.c.b16 %v4688, %v4680
    %v4809 = vpack.c.b16 %v4689, %v4681
    %v4810 = vpack.c.b16 %v4690, %v4682
    %v4811 = vpack.c.b16 %v4691, %v4683
    %v4812 = vpack.c.b16 %v4700, %v4692
    %v4813 = vpack.c.b16 %v4701, %v4693
    %v4814 = vpack.c.b16 %v4702, %v4694
    %v4815 = vpack.c.b16 %v4703, %v4695
    %v4816 = vpack.c.b16 %v4704, %v4696
    %v4817 = vpack.c.b16 %v4705, %v4697
    %v4818 = vpack.c.b16 %v4706, %v4698
    %v4819 = vpack.c.b16 %v4707, %v4699
    %v4820 = vpack.c.b16 %v4716, %v4708
    %v4821 = vpack.c.b16 %v4717, %v4709
    %v4822 = vpack.c.b16 %v4718, %v4710
    %v4823 = vpack.c.b16 %v4719, %v4711
    %v4824 = vpack.c.b16 %v4720, %v4712
    %v4825 = vpack.c.b16 %v4721, %v4713
    %v4826 = vpack.c.b16 %v4722, %v4714
    %v4827 = vpack.c.b16 %v4723, %v4715
    %v4828 = vpack.c.b16 %v4732, %v4724
    %v4829 = vpack.c.b16 %v4733, %v4725
    %v4830 = vpack.c.b16 %v4734, %v4726
    %v4831 = vpack.c.b16 %v4735, %v4727
    %v4832 = vpack.c.b16 %v4736, %v4728
    %v4833 = vpack.c.b16 %v4737, %v4729
    %v4834 = vpack.c.b16 %v4738, %v4730
    %v4835 = vpack.c.b16 %v4739, %v4731
    %v4836 = vpack.c.b16 %v4748, %v4740
    %v4837 = vpack.c.b16 %v4749, %v4741
    %v4838 = vpack.c.b16 %v4750, %v4742
    %v4839 = vpack.c.b16 %v4751, %v4743
    %v4840 = vpack.c.b16 %v4752, %v4744
    %v4841 = vpack.c.b16 %v4753, %v4745
    %v4842 = vpack.c.b16 %v4754, %v4746
    %v4843 = vpack.c.b16 %v4755, %v4747
    %v4844 = vpack.c.b16 %v4764, %v4756
    %v4845 = vpack.c.b16 %v4765, %v4757
    %v4846 = vpack.c.b16 %v4766, %v4758
    %v4847 = vpack.c.b16 %v4767, %v4759
    %v4848 = vpack.c.b16 %v4768, %v4760
    %v4849 = vpack.c.b16 %v4769, %v4761
    %v4850 = vpack.c.b16 %v4770, %v4762
    %v4851 = vpack.c.b16 %v4771, %v4763
    %v4852 = vpack.c.b16 %v4780, %v4772
    %v4853 = vpack.c.b16 %v4781, %v4773
    %v4854 = vpack.c.b16 %v4782, %v4774
    %v4855 = vpack.c.b16 %v4783, %v4775
    %v4856 = vpack.c.b16 %v4784, %v4776
    %v4857 = vpack.c.b16 %v4785, %v4777
    %v4858 = vpack.c.b16 %v4786, %v4778
    %v4859 = vpack.c.b16 %v4787, %v4779
    %v4860 = vpack.c.b16 %v4796, %v4788
    %v4861 = vpack.c.b16 %v4797, %v4789
    %v4862 = vpack.c.b16 %v4798, %v4790
    %v4863 = vpack.c.b16 %v4799, %v4791
    %v4864 = vpack.c.b16 %v4800, %v4792
    %v4865 = vpack.c.b16 %v4801, %v4793
    %v4866 = vpack.c.b16 %v4802, %v4794
    %v4867 = vpack.c.b16 %v4803, %v4795
    %4932 = vmatprep.subr.bf16.mxu0 %v4805
    %4933 = vmatpush1.bf16.msra.mxu0 %v4804
    %4934 = vmatprep.subr.bf16.mxu0 %v4813
    %4935 = vmatpush1.bf16.msra.mxu0 %v4812
    %4936 = vmatprep.subr.bf16.mxu0 %v4821
    %4937 = vmatpush1.bf16.msra.mxu0 %v4820
    %4938 = vmatprep.subr.bf16.mxu0 %v4829
    %4939 = vmatpush1.bf16.msra.mxu0 %v4828
    %4940 = vmatprep.subr.bf16.mxu0 %v4837
    %4941 = vmatpush1.bf16.msra.mxu0 %v4836
    %4942 = vmatprep.subr.bf16.mxu0 %v4845
    %4943 = vmatpush1.bf16.msra.mxu0 %v4844
    %4944 = vmatprep.subr.bf16.mxu0 %v4853
    %4945 = vmatpush1.bf16.msra.mxu0 %v4852
    %4946 = vmatprep.subr.bf16.mxu0 %v4861
    %4947 = vmatpush1.bf16.msra.mxu0 %v4860
    %4948 = vmatprep.subr.bf16.mxu0 0
    %4949 = vmatpush1.bf16.msra.mxu0 0
    %4950 = vmatprep.subr.bf16.mxu0 0
    %4951 = vmatpush1.bf16.msra.mxu0 0
    %4952 = vmatprep.subr.bf16.mxu0 0
    %4953 = vmatpush1.bf16.msra.mxu0 0
    %4954 = vmatprep.subr.bf16.mxu0 0
    %4955 = vmatpush1.bf16.msra.mxu0 0
    %4956 = vmatprep.subr.bf16.mxu0 0
    %4957 = vmatpush1.bf16.msra.mxu0 0
    %4958 = vmatprep.subr.bf16.mxu0 0
    %4959 = vmatpush1.bf16.msra.mxu0 0
    %4960 = vmatprep.subr.bf16.mxu0 0
    %4961 = vmatpush1.bf16.msra.mxu0 0
    %4962 = vmatprep.subr.bf16.mxu0 0
    %4963 = vmatpush1.bf16.msra.mxu0 0
    %4964 = vmatprep.mubr.bf16.mxu0 0
    %4965 = vmatmul.mubr.bf16.gmra.mrb[0].mxu0 %v4547
    %v4966 = vpop.f32.mrb[0].mxu0
    %v4967 = vadd.f32 0.0, %v4966
    %v4968 = vpop.f32.mrb[0].mxu0
    %v4969 = vadd.f32 0.0, %v4968
    %v4970 = vpop.f32.mrb[0].mxu0
    %v4971 = vpop.f32.mrb[0].mxu0
    %4972 = vdwg.mxu0
    %4973 = vmatprep.subr.bf16.mxu0 %v4807
    %4974 = vmatpush1.bf16.msra.mxu0 %v4806
    %4975 = vmatprep.subr.bf16.mxu0 %v4815
    %4976 = vmatpush1.bf16.msra.mxu0 %v4814
    %4977 = vmatprep.subr.bf16.mxu0 %v4823
    %4978 = vmatpush1.bf16.msra.mxu0 %v4822
    %4979 = vmatprep.subr.bf16.mxu0 %v4831
    %4980 = vmatpush1.bf16.msra.mxu0 %v4830
    %4981 = vmatprep.subr.bf16.mxu0 %v4839
    %4982 = vmatpush1.bf16.msra.mxu0 %v4838
    %4983 = vmatprep.subr.bf16.mxu0 %v4847
    %4984 = vmatpush1.bf16.msra.mxu0 %v4846
    %4985 = vmatprep.subr.bf16.mxu0 %v4855
    %4986 = vmatpush1.bf16.msra.mxu0 %v4854
    %4987 = vmatprep.subr.bf16.mxu0 %v4863
    %4988 = vmatpush1.bf16.msra.mxu0 %v4862
    %4989 = vmatprep.subr.bf16.mxu0 0
    %4990 = vmatpush1.bf16.msra.mxu0 0
    %4991 = vmatprep.subr.bf16.mxu0 0
    %4992 = vmatpush1.bf16.msra.mxu0 0
    %4993 = vmatprep.subr.bf16.mxu0 0
    %4994 = vmatpush1.bf16.msra.mxu0 0
    %4995 = vmatprep.subr.bf16.mxu0 0
    %4996 = vmatpush1.bf16.msra.mxu0 0
    %4997 = vmatprep.subr.bf16.mxu0 0
    %4998 = vmatpush1.bf16.msra.mxu0 0
    %4999 = vmatprep.subr.bf16.mxu0 0
    %5000 = vmatpush1.bf16.msra.mxu0 0
    %5001 = vmatprep.subr.bf16.mxu0 0
    %5002 = vmatpush1.bf16.msra.mxu0 0
    %5003 = vmatprep.subr.bf16.mxu0 0
    %5004 = vmatpush1.bf16.msra.mxu0 0
    %5005 = vmatprep.mubr.bf16.mxu0 0
    %5006 = vmatmul.mubr.bf16.gmra.mrb[0].mxu0 %v4547
    %v5007 = vpop.f32.mrb[0].mxu0
    %v5008 = vadd.f32 0.0, %v5007
    %v5009 = vpop.f32.mrb[0].mxu0
    %v5010 = vadd.f32 0.0, %v5009
    %v5011 = vpop.f32.mrb[0].mxu0
    %v5012 = vpop.f32.mrb[0].mxu0
    %5013 = vdwg.mxu0
    %5014 = vmatprep.subr.bf16.mxu0 %v4809
    %5015 = vmatpush1.bf16.msra.mxu0 %v4808
    %5016 = vmatprep.subr.bf16.mxu0 %v4817
    %5017 = vmatpush1.bf16.msra.mxu0 %v4816
    %5018 = vmatprep.subr.bf16.mxu0 %v4825
    %5019 = vmatpush1.bf16.msra.mxu0 %v4824
    %5020 = vmatprep.subr.bf16.mxu0 %v4833
    %5021 = vmatpush1.bf16.msra.mxu0 %v4832
    %5022 = vmatprep.subr.bf16.mxu0 %v4841
    %5023 = vmatpush1.bf16.msra.mxu0 %v4840
    %5024 = vmatprep.subr.bf16.mxu0 %v4849
    %5025 = vmatpush1.bf16.msra.mxu0 %v4848
    %5026 = vmatprep.subr.bf16.mxu0 %v4857
    %5027 = vmatpush1.bf16.msra.mxu0 %v4856
    %5028 = vmatprep.subr.bf16.mxu0 %v4865
    %5029 = vmatpush1.bf16.msra.mxu0 %v4864
    %5030 = vmatprep.subr.bf16.mxu0 0
    %5031 = vmatpush1.bf16.msra.mxu0 0
    %5032 = vmatprep.subr.bf16.mxu0 0
    %5033 = vmatpush1.bf16.msra.mxu0 0
    %5034 = vmatprep.subr.bf16.mxu0 0
    %5035 = vmatpush1.bf16.msra.mxu0 0
    %5036 = vmatprep.subr.bf16.mxu0 0
    %5037 = vmatpush1.bf16.msra.mxu0 0
    %5038 = vmatprep.subr.bf16.mxu0 0
    %5039 = vmatpush1.bf16.msra.mxu0 0
    %5040 = vmatprep.subr.bf16.mxu0 0
    %5041 = vmatpush1.bf16.msra.mxu0 0
    %5042 = vmatprep.subr.bf16.mxu0 0
    %5043 = vmatpush1.bf16.msra.mxu0 0
    %5044 = vmatprep.subr.bf16.mxu0 0
    %5045 = vmatpush1.bf16.msra.mxu0 0
    %5046 = vmatprep.mubr.bf16.mxu0 0
    %5047 = vmatmul.mubr.bf16.gmra.mrb[0].mxu0 %v4547
    %v5048 = vpop.f32.mrb[0].mxu0
    %v5049 = vpop.f32.mrb[0].mxu0
    %v5050 = vpop.f32.mrb[0].mxu0
    %v5051 = vadd.f32 0.0, %v5050
    %v5052 = vpop.f32.mrb[0].mxu0
    %v5053 = vadd.f32 0.0, %v5052
    %5054 = vdwg.mxu0
    %5055 = vmatprep.subr.bf16.mxu0 %v4811
    %5056 = vmatpush1.bf16.msra.mxu0 %v4810
    %5057 = vmatprep.subr.bf16.mxu0 %v4819
    %5058 = vmatpush1.bf16.msra.mxu0 %v4818
    %5059 = vmatprep.subr.bf16.mxu0 %v4827
    %5060 = vmatpush1.bf16.msra.mxu0 %v4826
    %5061 = vmatprep.subr.bf16.mxu0 %v4835
    %5062 = vmatpush1.bf16.msra.mxu0 %v4834
    %5063 = vmatprep.subr.bf16.mxu0 %v4843
    %5064 = vmatpush1.bf16.msra.mxu0 %v4842
    %5065 = vmatprep.subr.bf16.mxu0 %v4851
    %5066 = vmatpush1.bf16.msra.mxu0 %v4850
    %5067 = vmatprep.subr.bf16.mxu0 %v4859
    %5068 = vmatpush1.bf16.msra.mxu0 %v4858
    %5069 = vmatprep.subr.bf16.mxu0 %v4867
    %5070 = vmatpush1.bf16.msra.mxu0 %v4866
    %5071 = vmatprep.subr.bf16.mxu0 0
    %5072 = vmatpush1.bf16.msra.mxu0 0
    %5073 = vmatprep.subr.bf16.mxu0 0
    %5074 = vmatpush1.bf16.msra.mxu0 0
    %5075 = vmatprep.subr.bf16.mxu0 0
    %5076 = vmatpush1.bf16.msra.mxu0 0
    %5077 = vmatprep.subr.bf16.mxu0 0
    %5078 = vmatpush1.bf16.msra.mxu0 0
    %5079 = vmatprep.subr.bf16.mxu0 0
    %5080 = vmatpush1.bf16.msra.mxu0 0
    %5081 = vmatprep.subr.bf16.mxu0 0
    %5082 = vmatpush1.bf16.msra.mxu0 0
    %5083 = vmatprep.subr.bf16.mxu0 0
    %5084 = vmatpush1.bf16.msra.mxu0 0
    %5085 = vmatprep.subr.bf16.mxu0 0
    %5086 = vmatpush1.bf16.msra.mxu0 0
    %5087 = vmatprep.mubr.bf16.mxu0 0
    %5088 = vmatmul.mubr.bf16.gmra.mrb[0].mxu0 %v4547
    %v5089 = vpop.f32.mrb[0].mxu0
    %v5090 = vpop.f32.mrb[0].mxu0
    %v5091 = vpop.f32.mrb[0].mxu0
    %v5092 = vadd.f32 0.0, %v5091
    %v5093 = vpop.f32.mrb[0].mxu0
    %v5094 = vadd.f32 0.0, %v5093
    %5095 = vdwg.mxu0
    %v5096 = vld [vmem:[#allocation2 + $0x40] sm:$0xff]
    %v5097 = vld [vmem:[#allocation2 + $0x48] sm:$0xff]
    %v5098 = vld [vmem:[#allocation2 + $0x50] sm:$0xff]
    %v5099 = vld [vmem:[#allocation2 + $0x58] sm:$0xff]
    %v5100 = vadd.f32 %v5096, %v4967
    %v5101 = vadd.f32 %v5097, %v4969
    %v5102 = vadd.f32 %v5098, %v5008
    %v5103 = vadd.f32 %v5099, %v5010
    %v5104 = vld [vmem:[#allocation2 + $0x20] sm:$0xff]
    %v5105 = vld [vmem:[#allocation2 + $0x28] sm:$0xff]
    %v5106 = vld [vmem:[#allocation2 + $0x30] sm:$0xff]
    %v5107 = vld [vmem:[#allocation2 + $0x38] sm:$0xff]
    %v5108 = vadd.f32 %v5104, %v5051
    %v5109 = vadd.f32 %v5105, %v5053
    %v5110 = vadd.f32 %v5106, %v5092
    %v5111 = vadd.f32 %v5107, %v5094
    %v5112 = vxor.u32 %v5100, 2147483648
    %v5113 = vmul.f32 %v5112, 1.442695
    %v5114 = vpow.pop %v5113
    %v5115 = vadd.f32 %v5114, 1.0
    %v5116 = vrcp.pop %v5115
    %v5117 = vmul.f32 1.0, %v5116
    %v5118 = vxor.u32 %v5101, 2147483648
    %v5119 = vmul.f32 %v5118, 1.442695
    %v5120 = vpow.pop %v5119
    %v5121 = vadd.f32 %v5120, 1.0
    %v5122 = vrcp.pop %v5121
    %v5123 = vmul.f32 1.0, %v5122
    %v5124 = vtanh.pop %v5102
    %v5125 = vxor.u32 %v5103, 2147483648
    %v5126 = vmul.f32 %v5125, 1.442695
    %v5127 = vpow.pop %v5126
    %v5128 = vadd.f32 %v5127, 1.0
    %v5129 = vrcp.pop %v5128
    %v5130 = vmul.f32 1.0, %v5129
    %v5131 = vmul.f32 %v5123, %v4518
    %v5132 = vmul.f32 %v5117, %v5124
    %v5133 = vadd.f32 %v5131, %v5132
    %v5134 = vtanh.pop %v5133
    %v5135 = vmul.f32 %v5130, %v5134
    %v5136 = vxor.u32 %v5108, 2147483648
    %v5137 = vmul.f32 %v5136, 1.442695
    %v5138 = vpow.pop %v5137
    %v5139 = vadd.f32 %v5138, 1.0
    %v5140 = vrcp.pop %v5139
    %v5141 = vmul.f32 1.0, %v5140
    %v5142 = vxor.u32 %v5109, 2147483648
    %v5143 = vmul.f32 %v5142, 1.442695
    %v5144 = vpow.pop %v5143
    %v5145 = vadd.f32 %v5144, 1.0
    %v5146 = vrcp.pop %v5145
    %v5147 = vmul.f32 1.0, %v5146
    %v5148 = vtanh.pop %v5110
    %v5149 = vxor.u32 %v5111, 2147483648
    %v5150 = vmul.f32 %v5149, 1.442695
    %v5151 = vpow.pop %v5150
    %v5152 = vadd.f32 %v5151, 1.0
    %v5153 = vrcp.pop %v5152
    %v5154 = vmul.f32 1.0, %v5153
    %v5155 = vmul.f32 %v5147, %v4542
    %v5156 = vmul.f32 %v5141, %v5148
    %v5157 = vadd.f32 %v5155, %v5156
    %v5158 = vtanh.pop %v5157
    %v5159 = vmul.f32 %v5154, %v5158
    %5160 = vst [vmem:[#allocation3 + $0x10] sm:$0xff] %v5135
    %5161 = vst [vmem:[#allocation3 + $0x8] sm:$0xff] %v5159
    %v5162 = vld [vmem:[#allocation3] sm:$0xff]
    %v5163 = vld [vmem:[#allocation3 + $0x8] sm:$0xff]
    %v5164 = vld [vmem:[#allocation3 + $0x10] sm:$0xff]
    %v5165 = vld [vmem:[#allocation3 + $0x18] sm:$0xff]
    %v5166 = vpack.c.bf16 %v5164, %v5162
    %v5167 = vpack.c.bf16 %v5165, %v5163
    %v5168 = vld [vmem:[#allocation4 + $0x280] sm:$0xf]
    %v5169 = vld [vmem:[#allocation4 + $0x284] sm:$0xf]
    %v5170 = vld [vmem:[#allocation4 + $0x288] sm:$0xf]
    %v5171 = vld [vmem:[#allocation4 + $0x28c] sm:$0xf]
    %v5172 = vld [vmem:[#allocation4 + $0x290] sm:$0xf]
    %v5173 = vld [vmem:[#allocation4 + $0x294] sm:$0xf]
    %v5174 = vld [vmem:[#allocation4 + $0x298] sm:$0xf]
    %v5175 = vld [vmem:[#allocation4 + $0x29c] sm:$0xf]
    %v5176 = vld [vmem:[#allocation4 + $0x2a0] sm:$0xf]
    %v5177 = vld [vmem:[#allocation4 + $0x2a4] sm:$0xf]
    %v5178 = vld [vmem:[#allocation4 + $0x2a8] sm:$0xf]
    %v5179 = vld [vmem:[#allocation4 + $0x2ac] sm:$0xf]
    %v5180 = vld [vmem:[#allocation4 + $0x2b0] sm:$0xf]
    %v5181 = vld [vmem:[#allocation4 + $0x2b4] sm:$0xf]
    %v5182 = vld [vmem:[#allocation4 + $0x2b8] sm:$0xf]
    %v5183 = vld [vmem:[#allocation4 + $0x2bc] sm:$0xf]
    %v5184 = vld [vmem:[#allocation4 + $0x2c0] sm:$0xf]
    %v5185 = vld [vmem:[#allocation4 + $0x2c4] sm:$0xf]
    %v5186 = vld [vmem:[#allocation4 + $0x2c8] sm:$0xf]
    %v5187 = vld [vmem:[#allocation4 + $0x2cc] sm:$0xf]
    %v5188 = vld [vmem:[#allocation4 + $0x2d0] sm:$0xf]
    %v5189 = vld [vmem:[#allocation4 + $0x2d4] sm:$0xf]
    %v5190 = vld [vmem:[#allocation4 + $0x2d8] sm:$0xf]
    %v5191 = vld [vmem:[#allocation4 + $0x2dc] sm:$0xf]
    %v5192 = vld [vmem:[#allocation4 + $0x2e0] sm:$0xf]
    %v5193 = vld [vmem:[#allocation4 + $0x2e4] sm:$0xf]
    %v5194 = vld [vmem:[#allocation4 + $0x2e8] sm:$0xf]
    %v5195 = vld [vmem:[#allocation4 + $0x2ec] sm:$0xf]
    %v5196 = vld [vmem:[#allocation4 + $0x2f0] sm:$0xf]
    %v5197 = vld [vmem:[#allocation4 + $0x2f4] sm:$0xf]
    %v5198 = vld [vmem:[#allocation4 + $0x2f8] sm:$0xf]
    %v5199 = vld [vmem:[#allocation4 + $0x2fc] sm:$0xf]
    %v5200 = vld [vmem:[%s1 + $0x83] ss:$0 sm:$0xff]
    %v5233 = vunpack.c.l.b16 %v5168
    %v5234 = vunpack.c.l.b16 %v5169
    %v5235 = vunpack.c.l.b16 %v5170
    %v5236 = vunpack.c.l.b16 %v5171
    %v5237 = vunpack.c.l.b16 %v5172
    %v5238 = vunpack.c.l.b16 %v5173
    %v5239 = vunpack.c.l.b16 %v5174
    %v5240 = vunpack.c.l.b16 %v5175
    %v5241 = vunpack.c.l.b16 %v5176
    %v5242 = vunpack.c.l.b16 %v5177
    %v5243 = vunpack.c.l.b16 %v5178
    %v5244 = vunpack.c.l.b16 %v5179
    %v5245 = vunpack.c.l.b16 %v5180
    %v5246 = vunpack.c.l.b16 %v5181
    %v5247 = vunpack.c.l.b16 %v5182
    %v5248 = vunpack.c.l.b16 %v5183
    %v5249 = vunpack.c.l.b16 %v5184
    %v5250 = vunpack.c.l.b16 %v5185
    %v5251 = vunpack.c.l.b16 %v5186
    %v5252 = vunpack.c.l.b16 %v5187
    %v5253 = vunpack.c.l.b16 %v5188
    %v5254 = vunpack.c.l.b16 %v5189
    %v5255 = vunpack.c.l.b16 %v5190
    %v5256 = vunpack.c.l.b16 %v5191
    %v5257 = vunpack.c.l.b16 %v5192
    %v5258 = vunpack.c.l.b16 %v5193
    %v5259 = vunpack.c.l.b16 %v5194
    %v5260 = vunpack.c.l.b16 %v5195
    %v5261 = vunpack.c.l.b16 %v5196
    %v5262 = vunpack.c.l.b16 %v5197
    %v5263 = vunpack.c.l.b16 %v5198
    %v5264 = vunpack.c.l.b16 %v5199
    %v5265 = vpack.c.b16 %v5234, %v5233
    %v5266 = vpack.c.b16 %v5236, %v5235
    %v5267 = vpack.c.b16 %v5238, %v5237
    %v5268 = vpack.c.b16 %v5240, %v5239
    %v5269 = vpack.c.b16 %v5242, %v5241
    %v5270 = vpack.c.b16 %v5244, %v5243
    %v5271 = vpack.c.b16 %v5246, %v5245
    %v5272 = vpack.c.b16 %v5248, %v5247
    %v5273 = vpack.c.b16 %v5250, %v5249
    %v5274 = vpack.c.b16 %v5252, %v5251
    %v5275 = vpack.c.b16 %v5254, %v5253
    %v5276 = vpack.c.b16 %v5256, %v5255
    %v5277 = vpack.c.b16 %v5258, %v5257
    %v5278 = vpack.c.b16 %v5260, %v5259
    %v5279 = vpack.c.b16 %v5262, %v5261
    %v5280 = vpack.c.b16 %v5264, %v5263
    %5297 = vmatprep.subr.bf16.mxu0 0
    %5298 = vmatpush1.bf16.msra.mxu0 %v5265
    %5299 = vmatprep.subr.bf16.mxu0 0
    %5300 = vmatpush1.bf16.msra.mxu0 %v5266
    %5301 = vmatprep.subr.bf16.mxu0 0
    %5302 = vmatpush1.bf16.msra.mxu0 %v5267
    %5303 = vmatprep.subr.bf16.mxu0 0
    %5304 = vmatpush1.bf16.msra.mxu0 %v5268
    %5305 = vmatprep.subr.bf16.mxu0 0
    %5306 = vmatpush1.bf16.msra.mxu0 %v5269
    %5307 = vmatprep.subr.bf16.mxu0 0
    %5308 = vmatpush1.bf16.msra.mxu0 %v5270
    %5309 = vmatprep.subr.bf16.mxu0 0
    %5310 = vmatpush1.bf16.msra.mxu0 %v5271
    %5311 = vmatprep.subr.bf16.mxu0 0
    %5312 = vmatpush1.bf16.msra.mxu0 %v5272
    %5313 = vmatprep.subr.bf16.mxu0 0
    %5314 = vmatpush1.bf16.msra.mxu0 %v5273
    %5315 = vmatprep.subr.bf16.mxu0 0
    %5316 = vmatpush1.bf16.msra.mxu0 %v5274
    %5317 = vmatprep.subr.bf16.mxu0 0
    %5318 = vmatpush1.bf16.msra.mxu0 %v5275
    %5319 = vmatprep.subr.bf16.mxu0 0
    %5320 = vmatpush1.bf16.msra.mxu0 %v5276
    %5321 = vmatprep.subr.bf16.mxu0 0
    %5322 = vmatpush1.bf16.msra.mxu0 %v5277
    %5323 = vmatprep.subr.bf16.mxu0 0
    %5324 = vmatpush1.bf16.msra.mxu0 %v5278
    %5325 = vmatprep.subr.bf16.mxu0 0
    %5326 = vmatpush1.bf16.msra.mxu0 %v5279
    %5327 = vmatprep.subr.bf16.mxu0 0
    %5328 = vmatpush1.bf16.msra.mxu0 %v5280
    %5329 = vmatprep.mubr.bf16.mxu0 %v5167
    %5330 = vmatmul.mubr.bf16.gmra.mrb[0].mxu0 %v5166
    %v5331 = vpop.f32.mrb[0].mxu0
    %v5332 = vadd.f32 %v5200, %v5331
    %v5333 = vpop.f32.mrb[0].mxu0
    %v5334 = vpop.f32.mrb[0].mxu0
    %v5335 = vadd.f32 %v5200, %v5334
    %v5336 = vpop.f32.mrb[0].mxu0
    %5337 = vdwg.mxu0
    %5338 = vst [vmem:[%s6] sm:$0xff] %v5332
    %5339 = vst [vmem:[%s6 + $0x8] sm:$0xff] %v5335
    // Predicated region
    $region42: #{bert_ner_bilstm.1} parent=1 // pred_check
      _
    $region43: #{bert_ner_bilstm.1} parent=1 // pred_check_branch
      %5341 = sbr.rel (0) target = $region45
    $region44: #{bert_ner_bilstm.1} parent=1 // pred_region
      _
    $region45: #{bert_ner_bilstm.1} parent=1 // pred_fallthru
      _
    // Predicated region
    $region46: #{bert_ner_bilstm.1} parent=1 // pred_check
      _
    $region47: #{bert_ner_bilstm.1} parent=1 // pred_check_branch
      %5343 = sbr.rel (0) target = $region49
    $region48: #{bert_ner_bilstm.1} parent=1 // pred_region
      _
    $region49: #{bert_ner_bilstm.1} parent=1 // pred_fallthru
      _
    %5344 = vsyncpa [#allocation5], 1
    %5345 = vsyncpa [#allocation7], 1
    %5346 = vsyncpa [#allocation10], 1

</llo_original>
